<compile_context>
chip_gen: v5e
topology: v5e:2x2
jax: 0.10.0
libtpu: 0.0.40
codegen_flags: <defaults>
</compile_context>

<pallas_src>
import functools

import jax
import jax.numpy as jnp
from jax.experimental import pallas as pl
from jax.experimental.pallas import tpu as pltpu


# --------------------------- fused branch kernel ------------------------------------
# PyTorch GRU gate order (r, z, n):
#   r = sigmoid(x Wir + bir + h Whr + bhr)
#   z = sigmoid(x Wiz + biz + h Whz + bhz)
#   n = tanh  (x Win + bin + r * (h Whn + bhn))
#   h' = (1 - z) * n + z * h
def _make_branch_kernel(n_layers, T, B, H, collect_hidden):
    n_in_refs = 4 + 6 * n_layers
    n_out_refs = 1 + (n_layers if collect_hidden else 0)

    def kernel(*refs):
        in_refs = refs[:n_in_refs]
        out_refs = refs[n_in_refs:n_in_refs + n_out_refs]
        h_all_ref = refs[n_in_refs + n_out_refs]       # (T*B, H) per-layer staging

        x_ref, avg_ref, wf_ref, bf_ref = in_refs[:4]
        out_ref = out_refs[0]
        hid_refs = out_refs[1:]                        # (T*B, H) each, time-major

        # Folded embedding projection: Linear(4 -> H) for all T*B rows at once.
        x = (jnp.dot(x_ref[...], wf_ref[...], preferred_element_type=jnp.float32)
             + bf_ref[...])                            # (T*B, H), time-major rows

        for l in range(n_layers):
            wih_ref, whh_ref, bih_ref, bhh_ref, g_ref, be_ref = \
                in_refs[4 + 6 * l: 4 + 6 * (l + 1)]
            last = (l == n_layers - 1)

            # Hoisted input projection for every timestep of this layer.
            gi = (jnp.dot(x, wih_ref[...], preferred_element_type=jnp.float32)
                  + bih_ref[...])                      # (T*B, 3H)

            h = jnp.zeros((B, H), jnp.float32)         # GRU h0 == 0 (PyTorch default)
            for t in range(T):                         # static unrolled time loop
                gi_t = gi[t * B:(t + 1) * B, :]        # (B, 3H), static slice
                gh = (jnp.dot(h, whh_ref[...], preferred_element_type=jnp.float32)
                      + bhh_ref[...])                  # (B, 3H)
                r = jax.nn.sigmoid(gi_t[:, 0:H] + gh[:, 0:H])
                z = jax.nn.sigmoid(gi_t[:, H:2 * H] + gh[:, H:2 * H])
                n = jnp.tanh(gi_t[:, 2 * H:3 * H] + r * gh[:, 2 * H:3 * H])
                h = (1.0 - z) * n + z * h
                h_all_ref[t * B:(t + 1) * B, :] = h    # stage raw GRU output

            h_full = h_all_ref[...]                    # (T*B, H)
            if collect_hidden:
                hid_refs[l][...] = h_full              # raw GRU output (pre-LayerNorm)

            # Batched LayerNorm(eps=1e-5, biased var) + ReLU over all T*B rows.
            # Dropout == identity (eval mode).
            mu = jnp.mean(h_full, axis=-1, keepdims=True)
            var = jnp.mean(jnp.square(h_full - mu), axis=-1, keepdims=True)
            y = jnp.maximum(
                (h_full - mu) * jax.lax.rsqrt(var + 1e-5) * g_ref[...] + be_ref[...],
                0.0)                                   # (T*B, H)

            if last:
                # Mean over time as one matmul with the averaging selection matrix.
                out_ref[...] = jnp.dot(avg_ref[...], y,
                                       preferred_element_type=jnp.float32)
            else:
                x = y                                  # next-layer input (stays in vregs)

    return kernel


def fused_branch(ts, w_fold, b_fold, blocks, *, T, B, H, n_in, collect_hidden):
    """ts: (B, T, n_in).  Returns (mean_out (B,H), [hidden (B,T,H) per layer])."""
    n_layers = len(blocks)
    # Tiny wrapper transpose (B,T,n_in)->(T,B,n_in) so the kernel is time-major.
    x_flat = jnp.transpose(ts, (1, 0, 2)).reshape(T * B, n_in)
    # avg_mat[b, t*B + b] = 1/T  ->  avg_mat @ y == mean over time, per batch row.
    avg_mat = ((jnp.arange(T * B)[None, :] % B) == jnp.arange(B)[:, None]
               ).astype(jnp.float32) / T               # (B, T*B)

    in_specs = [
        pl.BlockSpec((T * B, n_in), lambda i: (0, 0)),
        pl.BlockSpec((B, T * B), lambda i: (0, 0)),
        pl.BlockSpec((n_in, H), lambda i: (0, 0)),
        pl.BlockSpec((1, H), lambda i: (0, 0)),
    ]
    inputs = [x_flat, avg_mat, w_fold, b_fold]
    for blk in blocks:
        in_specs += [
            pl.BlockSpec((H, 3 * H), lambda i: (0, 0)),
            pl.BlockSpec((H, 3 * H), lambda i: (0, 0)),
            pl.BlockSpec((1, 3 * H), lambda i: (0, 0)),
            pl.BlockSpec((1, 3 * H), lambda i: (0, 0)),
            pl.BlockSpec((1, H), lambda i: (0, 0)),
            pl.BlockSpec((1, H), lambda i: (0, 0)),
        ]
        inputs += [blk["w_ih"], blk["w_hh"], blk["b_ih"], blk["b_hh"],
                   blk["ln_g"], blk["ln_b"]]

    out_shape = [jax.ShapeDtypeStruct((B, H), jnp.float32)]
    out_specs = [pl.BlockSpec((B, H), lambda i: (0, 0))]
    if collect_hidden:
        out_shape += [jax.ShapeDtypeStruct((T * B, H), jnp.float32)] * n_layers
        out_specs += [pl.BlockSpec((T * B, H), lambda i: (0, 0))] * n_layers

    results = pl.pallas_call(
        _make_branch_kernel(n_layers, T, B, H, collect_hidden),
        out_shape=tuple(out_shape),
        grid_spec=pltpu.PrefetchScalarGridSpec(
            num_scalar_prefetch=0,
            grid=(1,),                                 # whole-array VMEM blocks; no tiling
            in_specs=in_specs,
            out_specs=out_specs,
            scratch_shapes=[pltpu.VMEM((T * B, H), jnp.float32)],
        ),
        compiler_params=pltpu.CompilerParams(dimension_semantics=("arbitrary",)),
    )(*inputs)

    out = results[0]
    # (T*B, H) time-major -> (B, T, H)
    hidden = [jnp.transpose(h.reshape(T, B, H), (1, 0, 2)) for h in results[1:]]
    return out, hidden


# --------------------------- parameters ---------------------------------------------
def init_params(key, n_input=(77, 4), layer=(3, 2), n_embedding=32, n_hidden=128):
    def uniform(k, shape, fan_in):
        bound = 1.0 / (fan_in ** 0.5)
        return jax.random.uniform(k, shape, jnp.float32, -bound, bound)

    keys = iter(jax.random.split(key, 64))
    nin = n_input[1]
    p = {
        # Linear weights stored transposed (in, out); biases as (1, out).
        "en_ts_w": uniform(next(keys), (nin, n_embedding), nin),
        "en_ts_b": uniform(next(keys), (1, n_embedding), nin),
        "en_lin_w": uniform(next(keys), (n_embedding, n_hidden), n_embedding),
        "en_lin_b": uniform(next(keys), (1, n_hidden), n_embedding),
        "de_ts_w": uniform(next(keys), (nin, n_embedding), nin),
        "de_ts_b": uniform(next(keys), (1, n_embedding), nin),
        "de_lin_w": uniform(next(keys), (n_embedding, n_hidden), n_embedding),
        "de_lin_b": uniform(next(keys), (1, n_hidden), n_embedding),
    }

    def make_blocks(count):
        blocks = []
        for _ in range(count):
            blocks.append({
                # PyTorch GRU weight_ih_l0 (3H, H) stored transposed (H, 3H).
                "w_ih": uniform(next(keys), (n_hidden, 3 * n_hidden), n_hidden),
                "w_hh": uniform(next(keys), (n_hidden, 3 * n_hidden), n_hidden),
                "b_ih": uniform(next(keys), (1, 3 * n_hidden), n_hidden),
                "b_hh": uniform(next(keys), (1, 3 * n_hidden), n_hidden),
                "ln_g": jnp.ones((1, n_hidden), jnp.float32),
                "ln_b": jnp.zeros((1, n_hidden), jnp.float32),
            })
        return blocks

    p["encoder"] = make_blocks(layer[0])
    p["decoder"] = make_blocks(layer[1])
    return p


# --------------------------- forward -------------------------------------------------
def forward(params, en_p, en_ts, de_p, de_ts, mask, *,
            len_seq, n_hidden, n_in, compute_encoder=False):
    # en_p, de_p, mask are not used by the reference forward pass.
    del en_p, de_p, mask
    B = de_ts.shape[0]
    T = len_seq

    if compute_encoder:
        # Dead work in the reference (its result never affects out / hidden_list);
        # kept only for optional graph fidelity.
        w_fold_en = jnp.dot(params["en_ts_w"], params["en_lin_w"])
        b_fold_en = jnp.dot(params["en_ts_b"], params["en_lin_w"]) + params["en_lin_b"]
        fused_branch(en_ts, w_fold_en, b_fold_en, params["encoder"],
                     T=T, B=B, H=n_hidden, n_in=n_in, collect_hidden=False)

    # Fold Linear(4->E) and Linear(E->H) into one Linear(4->H) (exact algebra,
    # float rounding order differs slightly from the reference).
    w_fold = jnp.dot(params["de_ts_w"], params["de_lin_w"])                      # (4, H)
    b_fold = jnp.dot(params["de_ts_b"], params["de_lin_w"]) + params["de_lin_b"]  # (1, H)

    out, hidden_list = fused_branch(de_ts, w_fold, b_fold, params["decoder"],
                                    T=T, B=B, H=n_hidden, n_in=n_in,
                                    collect_hidden=True)
    # TODO(synk): train-mode dropout randomness not modeled (eval-mode identity).
    return out, hidden_list


# --------------------------- pure-JAX reference (PyTorch op order) -------------------
def reference_forward(params, de_ts, *, T, H, n_in):
    B = de_ts.shape[0]
    x = de_ts.reshape(-1, n_in) @ params["de_ts_w"] + params["de_ts_b"]
    x = x @ params["de_lin_w"] + params["de_lin_b"]
    x = x.reshape(B, T, H)
    hidden = []
    for blk in params["decoder"]:
        def cell(h, xt, blk=blk):
            gi = xt @ blk["w_ih"] + blk["b_ih"]
            gh = h @ blk["w_hh"] + blk["b_hh"]
            r = jax.nn.sigmoid(gi[:, :H] + gh[:, :H])
            z = jax.nn.sigmoid(gi[:, H:2 * H] + gh[:, H:2 * H])
            n = jnp.tanh(gi[:, 2 * H:] + r * gh[:, 2 * H:])
            h = (1.0 - z) * n + z * h
            return h, h
        _, hs = jax.lax.scan(cell, jnp.zeros((B, H), jnp.float32),
                             jnp.transpose(x, (1, 0, 2)))
        gru_out = jnp.transpose(hs, (1, 0, 2))                     # (B, T, H)
        hidden.append(gru_out)
        mu = gru_out.mean(-1, keepdims=True)
        var = jnp.square(gru_out - mu).mean(-1, keepdims=True)
        x = jnp.maximum((gru_out - mu) * jax.lax.rsqrt(var + 1e-5)
                        * blk["ln_g"][0] + blk["ln_b"][0], 0.0)
    return x.mean(axis=1), hidden


# --------------------------- main -----------------------------------------------------
if __name__ == "__main__":
    B, T, N_IN = 2, 5, 4
    N_EMB, N_HID = 32, 128

    key = jax.random.PRNGKey(0)
    kp, k1, k2, k3, k4 = jax.random.split(key, 5)
    params = init_params(kp, n_input=(77, N_IN), layer=(3, 2),
                         n_embedding=N_EMB, n_hidden=N_HID)

    en_ts = jax.random.normal(k1, (B, T, N_IN), jnp.float32)
    de_ts = jax.random.normal(k2, (B, T, N_IN), jnp.float32)
    en_p = jax.random.normal(k3, (B, 77), jnp.float32)   # unused by forward
    de_p = jax.random.normal(k4, (B, 77), jnp.float32)   # unused by forward
    mask = jnp.ones((B, T), jnp.float32)                 # unused by forward

    fwd = jax.jit(functools.partial(forward, len_seq=T, n_hidden=N_HID, n_in=N_IN))
    out, hidden_list = fwd(params, en_p, en_ts, de_p, de_ts, mask)
    jax.block_until_ready(out)
    for h in hidden_list:
        jax.block_until_ready(h)

    assert out.shape == (B, N_HID)
    assert len(hidden_list) == 2
    assert all(h.shape == (B, T, N_HID) for h in hidden_list)
    assert bool(jnp.all(jnp.isfinite(out)))

    # Numerical check against a pure-JAX reference in the original (unfolded) op order.
    ref_out, ref_hidden = reference_forward(params, de_ts, T=T, H=N_HID, n_in=N_IN)
    assert bool(jnp.allclose(out, ref_out, atol=2e-4, rtol=2e-3)), \
        float(jnp.max(jnp.abs(out - ref_out)))
    for h, rh in zip(hidden_list, ref_hidden):
        assert bool(jnp.allclose(h, rh, atol=2e-4, rtol=2e-3)), \
            float(jnp.max(jnp.abs(h - rh)))

    print("KERNEL_OK")
</pallas_src>

<mosaic_0001>
module attributes {stable_mosaic.version = 11 : i64} {
  func.func @kernel(%arg0: i32, %arg1: memref<10x4xf32, #tpu.memory_space<vmem>>, %arg2: memref<2x10xf32, #tpu.memory_space<vmem>>, %arg3: memref<4x128xf32, #tpu.memory_space<vmem>>, %arg4: memref<1x128xf32, #tpu.memory_space<vmem>>, %arg5: memref<128x384xf32, #tpu.memory_space<vmem>>, %arg6: memref<128x384xf32, #tpu.memory_space<vmem>>, %arg7: memref<1x384xf32, #tpu.memory_space<vmem>>, %arg8: memref<1x384xf32, #tpu.memory_space<vmem>>, %arg9: memref<1x128xf32, #tpu.memory_space<vmem>>, %arg10: memref<1x128xf32, #tpu.memory_space<vmem>>, %arg11: memref<128x384xf32, #tpu.memory_space<vmem>>, %arg12: memref<128x384xf32, #tpu.memory_space<vmem>>, %arg13: memref<1x384xf32, #tpu.memory_space<vmem>>, %arg14: memref<1x384xf32, #tpu.memory_space<vmem>>, %arg15: memref<1x128xf32, #tpu.memory_space<vmem>>, %arg16: memref<1x128xf32, #tpu.memory_space<vmem>>, %arg17: memref<2x128xf32, #tpu.memory_space<vmem>>, %arg18: memref<10x128xf32, #tpu.memory_space<vmem>>, %arg19: memref<10x128xf32, #tpu.memory_space<vmem>>, %arg20: memref<10x128xf32, #tpu.memory_space<vmem>>) attributes {dimension_semantics = [#tpu.dimension_semantics<arbitrary>], iteration_bounds = array<i64: 1>, scalar_prefetch = 0 : i64, scratch_operands = 1 : i64, tpu.core_type = #tpu.core_type<tc>, window_params = [{pipeline_mode = #tpu.pipeline_mode<synchronous>, transform_indices = @transform_0, window_bounds = array<i64: 10, 4>}, {pipeline_mode = #tpu.pipeline_mode<synchronous>, transform_indices = @transform_1, window_bounds = array<i64: 2, 10>}, {pipeline_mode = #tpu.pipeline_mode<synchronous>, transform_indices = @transform_2, window_bounds = array<i64: 4, 128>}, {pipeline_mode = #tpu.pipeline_mode<synchronous>, transform_indices = @transform_3, window_bounds = array<i64: 1, 128>}, {pipeline_mode = #tpu.pipeline_mode<synchronous>, transform_indices = @transform_4, window_bounds = array<i64: 128, 384>}, {pipeline_mode = #tpu.pipeline_mode<synchronous>, transform_indices = @transform_5, window_bounds = array<i64: 128, 384>}, {pipeline_mode = #tpu.pipeline_mode<synchronous>, transform_indices = @transform_6, window_bounds = array<i64: 1, 384>}, {pipeline_mode = #tpu.pipeline_mode<synchronous>, transform_indices = @transform_7, window_bounds = array<i64: 1, 384>}, {pipeline_mode = #tpu.pipeline_mode<synchronous>, transform_indices = @transform_8, window_bounds = array<i64: 1, 128>}, {pipeline_mode = #tpu.pipeline_mode<synchronous>, transform_indices = @transform_9, window_bounds = array<i64: 1, 128>}, {pipeline_mode = #tpu.pipeline_mode<synchronous>, transform_indices = @transform_10, window_bounds = array<i64: 128, 384>}, {pipeline_mode = #tpu.pipeline_mode<synchronous>, transform_indices = @transform_11, window_bounds = array<i64: 128, 384>}, {pipeline_mode = #tpu.pipeline_mode<synchronous>, transform_indices = @transform_12, window_bounds = array<i64: 1, 384>}, {pipeline_mode = #tpu.pipeline_mode<synchronous>, transform_indices = @transform_13, window_bounds = array<i64: 1, 384>}, {pipeline_mode = #tpu.pipeline_mode<synchronous>, transform_indices = @transform_14, window_bounds = array<i64: 1, 128>}, {pipeline_mode = #tpu.pipeline_mode<synchronous>, transform_indices = @transform_15, window_bounds = array<i64: 1, 128>}, {pipeline_mode = #tpu.pipeline_mode<synchronous>, transform_indices = @transform_16, window_bounds = array<i64: 2, 128>}, {pipeline_mode = #tpu.pipeline_mode<synchronous>, transform_indices = @transform_17, window_bounds = array<i64: 10, 128>}, {pipeline_mode = #tpu.pipeline_mode<synchronous>, transform_indices = @transform_18, window_bounds = array<i64: 10, 128>}]} {
    %c0 = arith.constant 0 : index
    %c0_0 = arith.constant 0 : index
    %0 = vector.load %arg1[%c0, %c0_0] : memref<10x4xf32, #tpu.memory_space<vmem>>, vector<10x4xf32>
    %c0_1 = arith.constant 0 : index
    %c0_2 = arith.constant 0 : index
    %1 = vector.load %arg3[%c0_1, %c0_2] : memref<4x128xf32, #tpu.memory_space<vmem>>, vector<4x128xf32>
    %cst = arith.constant dense<0.000000e+00> : vector<10x128xf32>
    %2 = tpu.matmul %0, %1, %cst {dimension_numbers = #tpu.dot_dimension_numbers<[1], [0], [0], [1], [0, 0, 1, 1], [], []>} : vector<10x4xf32>, vector<4x128xf32>, vector<10x128xf32> -> vector<10x128xf32>
    %c0_3 = arith.constant 0 : index
    %c0_4 = arith.constant 0 : index
    %3 = vector.load %arg4[%c0_3, %c0_4] : memref<1x128xf32, #tpu.memory_space<vmem>>, vector<1x128xf32>
    %4 = vector.broadcast %3 : vector<1x128xf32> to vector<10x128xf32>
    %5 = arith.addf %2, %4 : vector<10x128xf32>
    %c0_5 = arith.constant 0 : index
    %c0_6 = arith.constant 0 : index
    %6 = vector.load %arg5[%c0_5, %c0_6] : memref<128x384xf32, #tpu.memory_space<vmem>>, vector<128x384xf32>
    %cst_7 = arith.constant dense<0.000000e+00> : vector<10x384xf32>
    %7 = tpu.matmul %5, %6, %cst_7 {dimension_numbers = #tpu.dot_dimension_numbers<[1], [0], [0], [1], [0, 0, 1, 1], [], []>} : vector<10x128xf32>, vector<128x384xf32>, vector<10x384xf32> -> vector<10x384xf32>
    %c0_8 = arith.constant 0 : index
    %c0_9 = arith.constant 0 : index
    %8 = vector.load %arg7[%c0_8, %c0_9] : memref<1x384xf32, #tpu.memory_space<vmem>>, vector<1x384xf32>
    %9 = vector.broadcast %8 : vector<1x384xf32> to vector<10x384xf32>
    %10 = arith.addf %7, %9 : vector<10x384xf32>
    %cst_10 = arith.constant 0.000000e+00 : f32
    %11 = vector.broadcast %cst_10 : f32 to vector<2x128xf32>
    %12 = vector.extract_strided_slice %10 {offsets = [0, 0], sizes = [2, 384], strides = [1, 1]} : vector<10x384xf32> to vector<2x384xf32>
    %c0_11 = arith.constant 0 : index
    %c0_12 = arith.constant 0 : index
    %13 = vector.load %arg6[%c0_11, %c0_12] : memref<128x384xf32, #tpu.memory_space<vmem>>, vector<128x384xf32>
    %cst_13 = arith.constant dense<0.000000e+00> : vector<2x384xf32>
    %14 = tpu.matmul %11, %13, %cst_13 {dimension_numbers = #tpu.dot_dimension_numbers<[1], [0], [0], [1], [0, 0, 1, 1], [], []>} : vector<2x128xf32>, vector<128x384xf32>, vector<2x384xf32> -> vector<2x384xf32>
    %c0_14 = arith.constant 0 : index
    %c0_15 = arith.constant 0 : index
    %15 = vector.load %arg8[%c0_14, %c0_15] : memref<1x384xf32, #tpu.memory_space<vmem>>, vector<1x384xf32>
    %16 = vector.broadcast %15 : vector<1x384xf32> to vector<2x384xf32>
    %17 = arith.addf %14, %16 : vector<2x384xf32>
    %18 = vector.extract_strided_slice %12 {offsets = [0, 0], sizes = [2, 128], strides = [1, 1]} : vector<2x384xf32> to vector<2x128xf32>
    %19 = vector.extract_strided_slice %17 {offsets = [0, 0], sizes = [2, 128], strides = [1, 1]} : vector<2x384xf32> to vector<2x128xf32>
    %20 = arith.addf %18, %19 : vector<2x128xf32>
    %21 = arith.negf %20 : vector<2x128xf32>
    %22 = math.exp %21 : vector<2x128xf32>
    %cst_16 = arith.constant 1.000000e+00 : f32
    %23 = vector.broadcast %cst_16 : f32 to vector<2x128xf32>
    %24 = arith.addf %23, %22 : vector<2x128xf32>
    %25 = arith.divf %23, %24 : vector<2x128xf32>
    %26 = vector.extract_strided_slice %12 {offsets = [0, 128], sizes = [2, 128], strides = [1, 1]} : vector<2x384xf32> to vector<2x128xf32>
    %27 = vector.extract_strided_slice %17 {offsets = [0, 128], sizes = [2, 128], strides = [1, 1]} : vector<2x384xf32> to vector<2x128xf32>
    %28 = arith.addf %26, %27 : vector<2x128xf32>
    %29 = arith.negf %28 : vector<2x128xf32>
    %30 = math.exp %29 : vector<2x128xf32>
    %cst_17 = arith.constant 1.000000e+00 : f32
    %31 = vector.broadcast %cst_17 : f32 to vector<2x128xf32>
    %32 = arith.addf %31, %30 : vector<2x128xf32>
    %33 = arith.divf %31, %32 : vector<2x128xf32>
    %34 = vector.extract_strided_slice %12 {offsets = [0, 256], sizes = [2, 128], strides = [1, 1]} : vector<2x384xf32> to vector<2x128xf32>
    %35 = vector.extract_strided_slice %17 {offsets = [0, 256], sizes = [2, 128], strides = [1, 1]} : vector<2x384xf32> to vector<2x128xf32>
    %36 = arith.mulf %25, %35 : vector<2x128xf32>
    %37 = arith.addf %34, %36 : vector<2x128xf32>
    %38 = math.tanh %37 : vector<2x128xf32>
    %cst_18 = arith.constant 1.000000e+00 : f32
    %39 = vector.broadcast %cst_18 : f32 to vector<2x128xf32>
    %40 = arith.subf %39, %33 : vector<2x128xf32>
    %41 = arith.mulf %40, %38 : vector<2x128xf32>
    %42 = arith.mulf %33, %11 : vector<2x128xf32>
    %43 = arith.addf %41, %42 : vector<2x128xf32>
    %c0_19 = arith.constant 0 : index
    %c0_20 = arith.constant 0 : index
    %44 = vector.load %arg20[%c0_19, %c0_20] : memref<10x128xf32, #tpu.memory_space<vmem>>, vector<2x128xf32>
    tpu.vector_store %arg20[%c0_19, %c0_20], %43 {strides = array<i32>} : memref<10x128xf32, #tpu.memory_space<vmem>>, vector<2x128xf32>,
    %45 = vector.extract_strided_slice %10 {offsets = [2, 0], sizes = [2, 384], strides = [1, 1]} : vector<10x384xf32> to vector<2x384xf32>
    %c0_21 = arith.constant 0 : index
    %c0_22 = arith.constant 0 : index
    %46 = vector.load %arg6[%c0_21, %c0_22] : memref<128x384xf32, #tpu.memory_space<vmem>>, vector<128x384xf32>
    %cst_23 = arith.constant dense<0.000000e+00> : vector<2x384xf32>
    %47 = tpu.matmul %43, %46, %cst_23 {dimension_numbers = #tpu.dot_dimension_numbers<[1], [0], [0], [1], [0, 0, 1, 1], [], []>} : vector<2x128xf32>, vector<128x384xf32>, vector<2x384xf32> -> vector<2x384xf32>
    %c0_24 = arith.constant 0 : index
    %c0_25 = arith.constant 0 : index
    %48 = vector.load %arg8[%c0_24, %c0_25] : memref<1x384xf32, #tpu.memory_space<vmem>>, vector<1x384xf32>
    %49 = vector.broadcast %48 : vector<1x384xf32> to vector<2x384xf32>
    %50 = arith.addf %47, %49 : vector<2x384xf32>
    %51 = vector.extract_strided_slice %45 {offsets = [0, 0], sizes = [2, 128], strides = [1, 1]} : vector<2x384xf32> to vector<2x128xf32>
    %52 = vector.extract_strided_slice %50 {offsets = [0, 0], sizes = [2, 128], strides = [1, 1]} : vector<2x384xf32> to vector<2x128xf32>
    %53 = arith.addf %51, %52 : vector<2x128xf32>
    %54 = arith.negf %53 : vector<2x128xf32>
    %55 = math.exp %54 : vector<2x128xf32>
    %cst_26 = arith.constant 1.000000e+00 : f32
    %56 = vector.broadcast %cst_26 : f32 to vector<2x128xf32>
    %57 = arith.addf %56, %55 : vector<2x128xf32>
    %58 = arith.divf %56, %57 : vector<2x128xf32>
    %59 = vector.extract_strided_slice %45 {offsets = [0, 128], sizes = [2, 128], strides = [1, 1]} : vector<2x384xf32> to vector<2x128xf32>
    %60 = vector.extract_strided_slice %50 {offsets = [0, 128], sizes = [2, 128], strides = [1, 1]} : vector<2x384xf32> to vector<2x128xf32>
    %61 = arith.addf %59, %60 : vector<2x128xf32>
    %62 = arith.negf %61 : vector<2x128xf32>
    %63 = math.exp %62 : vector<2x128xf32>
    %cst_27 = arith.constant 1.000000e+00 : f32
    %64 = vector.broadcast %cst_27 : f32 to vector<2x128xf32>
    %65 = arith.addf %64, %63 : vector<2x128xf32>
    %66 = arith.divf %64, %65 : vector<2x128xf32>
    %67 = vector.extract_strided_slice %45 {offsets = [0, 256], sizes = [2, 128], strides = [1, 1]} : vector<2x384xf32> to vector<2x128xf32>
    %68 = vector.extract_strided_slice %50 {offsets = [0, 256], sizes = [2, 128], strides = [1, 1]} : vector<2x384xf32> to vector<2x128xf32>
    %69 = arith.mulf %58, %68 : vector<2x128xf32>
    %70 = arith.addf %67, %69 : vector<2x128xf32>
    %71 = math.tanh %70 : vector<2x128xf32>
    %cst_28 = arith.constant 1.000000e+00 : f32
    %72 = vector.broadcast %cst_28 : f32 to vector<2x128xf32>
    %73 = arith.subf %72, %66 : vector<2x128xf32>
    %74 = arith.mulf %73, %71 : vector<2x128xf32>
    %75 = arith.mulf %66, %43 : vector<2x128xf32>
    %76 = arith.addf %74, %75 : vector<2x128xf32>
    %c2 = arith.constant 2 : index
    %c0_29 = arith.constant 0 : index
    %77 = vector.load %arg20[%c2, %c0_29] : memref<10x128xf32, #tpu.memory_space<vmem>>, vector<2x128xf32>
    tpu.vector_store %arg20[%c2, %c0_29], %76 {strides = array<i32>} : memref<10x128xf32, #tpu.memory_space<vmem>>, vector<2x128xf32>,
    %78 = vector.extract_strided_slice %10 {offsets = [4, 0], sizes = [2, 384], strides = [1, 1]} : vector<10x384xf32> to vector<2x384xf32>
    %c0_30 = arith.constant 0 : index
    %c0_31 = arith.constant 0 : index
    %79 = vector.load %arg6[%c0_30, %c0_31] : memref<128x384xf32, #tpu.memory_space<vmem>>, vector<128x384xf32>
    %cst_32 = arith.constant dense<0.000000e+00> : vector<2x384xf32>
    %80 = tpu.matmul %76, %79, %cst_32 {dimension_numbers = #tpu.dot_dimension_numbers<[1], [0], [0], [1], [0, 0, 1, 1], [], []>} : vector<2x128xf32>, vector<128x384xf32>, vector<2x384xf32> -> vector<2x384xf32>
    %c0_33 = arith.constant 0 : index
    %c0_34 = arith.constant 0 : index
    %81 = vector.load %arg8[%c0_33, %c0_34] : memref<1x384xf32, #tpu.memory_space<vmem>>, vector<1x384xf32>
    %82 = vector.broadcast %81 : vector<1x384xf32> to vector<2x384xf32>
    %83 = arith.addf %80, %82 : vector<2x384xf32>
    %84 = vector.extract_strided_slice %78 {offsets = [0, 0], sizes = [2, 128], strides = [1, 1]} : vector<2x384xf32> to vector<2x128xf32>
    %85 = vector.extract_strided_slice %83 {offsets = [0, 0], sizes = [2, 128], strides = [1, 1]} : vector<2x384xf32> to vector<2x128xf32>
    %86 = arith.addf %84, %85 : vector<2x128xf32>
    %87 = arith.negf %86 : vector<2x128xf32>
    %88 = math.exp %87 : vector<2x128xf32>
    %cst_35 = arith.constant 1.000000e+00 : f32
    %89 = vector.broadcast %cst_35 : f32 to vector<2x128xf32>
    %90 = arith.addf %89, %88 : vector<2x128xf32>
    %91 = arith.divf %89, %90 : vector<2x128xf32>
    %92 = vector.extract_strided_slice %78 {offsets = [0, 128], sizes = [2, 128], strides = [1, 1]} : vector<2x384xf32> to vector<2x128xf32>
    %93 = vector.extract_strided_slice %83 {offsets = [0, 128], sizes = [2, 128], strides = [1, 1]} : vector<2x384xf32> to vector<2x128xf32>
    %94 = arith.addf %92, %93 : vector<2x128xf32>
    %95 = arith.negf %94 : vector<2x128xf32>
    %96 = math.exp %95 : vector<2x128xf32>
    %cst_36 = arith.constant 1.000000e+00 : f32
    %97 = vector.broadcast %cst_36 : f32 to vector<2x128xf32>
    %98 = arith.addf %97, %96 : vector<2x128xf32>
    %99 = arith.divf %97, %98 : vector<2x128xf32>
    %100 = vector.extract_strided_slice %78 {offsets = [0, 256], sizes = [2, 128], strides = [1, 1]} : vector<2x384xf32> to vector<2x128xf32>
    %101 = vector.extract_strided_slice %83 {offsets = [0, 256], sizes = [2, 128], strides = [1, 1]} : vector<2x384xf32> to vector<2x128xf32>
    %102 = arith.mulf %91, %101 : vector<2x128xf32>
    %103 = arith.addf %100, %102 : vector<2x128xf32>
    %104 = math.tanh %103 : vector<2x128xf32>
    %cst_37 = arith.constant 1.000000e+00 : f32
    %105 = vector.broadcast %cst_37 : f32 to vector<2x128xf32>
    %106 = arith.subf %105, %99 : vector<2x128xf32>
    %107 = arith.mulf %106, %104 : vector<2x128xf32>
    %108 = arith.mulf %99, %76 : vector<2x128xf32>
    %109 = arith.addf %107, %108 : vector<2x128xf32>
    %c4 = arith.constant 4 : index
    %c0_38 = arith.constant 0 : index
    %110 = vector.load %arg20[%c4, %c0_38] : memref<10x128xf32, #tpu.memory_space<vmem>>, vector<2x128xf32>
    tpu.vector_store %arg20[%c4, %c0_38], %109 {strides = array<i32>} : memref<10x128xf32, #tpu.memory_space<vmem>>, vector<2x128xf32>,
    %111 = vector.extract_strided_slice %10 {offsets = [6, 0], sizes = [2, 384], strides = [1, 1]} : vector<10x384xf32> to vector<2x384xf32>
    %c0_39 = arith.constant 0 : index
    %c0_40 = arith.constant 0 : index
    %112 = vector.load %arg6[%c0_39, %c0_40] : memref<128x384xf32, #tpu.memory_space<vmem>>, vector<128x384xf32>
    %cst_41 = arith.constant dense<0.000000e+00> : vector<2x384xf32>
    %113 = tpu.matmul %109, %112, %cst_41 {dimension_numbers = #tpu.dot_dimension_numbers<[1], [0], [0], [1], [0, 0, 1, 1], [], []>} : vector<2x128xf32>, vector<128x384xf32>, vector<2x384xf32> -> vector<2x384xf32>
    %c0_42 = arith.constant 0 : index
    %c0_43 = arith.constant 0 : index
    %114 = vector.load %arg8[%c0_42, %c0_43] : memref<1x384xf32, #tpu.memory_space<vmem>>, vector<1x384xf32>
    %115 = vector.broadcast %114 : vector<1x384xf32> to vector<2x384xf32>
    %116 = arith.addf %113, %115 : vector<2x384xf32>
    %117 = vector.extract_strided_slice %111 {offsets = [0, 0], sizes = [2, 128], strides = [1, 1]} : vector<2x384xf32> to vector<2x128xf32>
    %118 = vector.extract_strided_slice %116 {offsets = [0, 0], sizes = [2, 128], strides = [1, 1]} : vector<2x384xf32> to vector<2x128xf32>
    %119 = arith.addf %117, %118 : vector<2x128xf32>
    %120 = arith.negf %119 : vector<2x128xf32>
    %121 = math.exp %120 : vector<2x128xf32>
    %cst_44 = arith.constant 1.000000e+00 : f32
    %122 = vector.broadcast %cst_44 : f32 to vector<2x128xf32>
    %123 = arith.addf %122, %121 : vector<2x128xf32>
    %124 = arith.divf %122, %123 : vector<2x128xf32>
    %125 = vector.extract_strided_slice %111 {offsets = [0, 128], sizes = [2, 128], strides = [1, 1]} : vector<2x384xf32> to vector<2x128xf32>
    %126 = vector.extract_strided_slice %116 {offsets = [0, 128], sizes = [2, 128], strides = [1, 1]} : vector<2x384xf32> to vector<2x128xf32>
    %127 = arith.addf %125, %126 : vector<2x128xf32>
    %128 = arith.negf %127 : vector<2x128xf32>
    %129 = math.exp %128 : vector<2x128xf32>
    %cst_45 = arith.constant 1.000000e+00 : f32
    %130 = vector.broadcast %cst_45 : f32 to vector<2x128xf32>
    %131 = arith.addf %130, %129 : vector<2x128xf32>
    %132 = arith.divf %130, %131 : vector<2x128xf32>
    %133 = vector.extract_strided_slice %111 {offsets = [0, 256], sizes = [2, 128], strides = [1, 1]} : vector<2x384xf32> to vector<2x128xf32>
    %134 = vector.extract_strided_slice %116 {offsets = [0, 256], sizes = [2, 128], strides = [1, 1]} : vector<2x384xf32> to vector<2x128xf32>
    %135 = arith.mulf %124, %134 : vector<2x128xf32>
    %136 = arith.addf %133, %135 : vector<2x128xf32>
    %137 = math.tanh %136 : vector<2x128xf32>
    %cst_46 = arith.constant 1.000000e+00 : f32
    %138 = vector.broadcast %cst_46 : f32 to vector<2x128xf32>
    %139 = arith.subf %138, %132 : vector<2x128xf32>
    %140 = arith.mulf %139, %137 : vector<2x128xf32>
    %141 = arith.mulf %132, %109 : vector<2x128xf32>
    %142 = arith.addf %140, %141 : vector<2x128xf32>
    %c6 = arith.constant 6 : index
    %c0_47 = arith.constant 0 : index
    %143 = vector.load %arg20[%c6, %c0_47] : memref<10x128xf32, #tpu.memory_space<vmem>>, vector<2x128xf32>
    tpu.vector_store %arg20[%c6, %c0_47], %142 {strides = array<i32>} : memref<10x128xf32, #tpu.memory_space<vmem>>, vector<2x128xf32>,
    %144 = vector.extract_strided_slice %10 {offsets = [8, 0], sizes = [2, 384], strides = [1, 1]} : vector<10x384xf32> to vector<2x384xf32>
    %c0_48 = arith.constant 0 : index
    %c0_49 = arith.constant 0 : index
    %145 = vector.load %arg6[%c0_48, %c0_49] : memref<128x384xf32, #tpu.memory_space<vmem>>, vector<128x384xf32>
    %cst_50 = arith.constant dense<0.000000e+00> : vector<2x384xf32>
    %146 = tpu.matmul %142, %145, %cst_50 {dimension_numbers = #tpu.dot_dimension_numbers<[1], [0], [0], [1], [0, 0, 1, 1], [], []>} : vector<2x128xf32>, vector<128x384xf32>, vector<2x384xf32> -> vector<2x384xf32>
    %c0_51 = arith.constant 0 : index
    %c0_52 = arith.constant 0 : index
    %147 = vector.load %arg8[%c0_51, %c0_52] : memref<1x384xf32, #tpu.memory_space<vmem>>, vector<1x384xf32>
    %148 = vector.broadcast %147 : vector<1x384xf32> to vector<2x384xf32>
    %149 = arith.addf %146, %148 : vector<2x384xf32>
    %150 = vector.extract_strided_slice %144 {offsets = [0, 0], sizes = [2, 128], strides = [1, 1]} : vector<2x384xf32> to vector<2x128xf32>
    %151 = vector.extract_strided_slice %149 {offsets = [0, 0], sizes = [2, 128], strides = [1, 1]} : vector<2x384xf32> to vector<2x128xf32>
    %152 = arith.addf %150, %151 : vector<2x128xf32>
    %153 = arith.negf %152 : vector<2x128xf32>
    %154 = math.exp %153 : vector<2x128xf32>
    %cst_53 = arith.constant 1.000000e+00 : f32
    %155 = vector.broadcast %cst_53 : f32 to vector<2x128xf32>
    %156 = arith.addf %155, %154 : vector<2x128xf32>
    %157 = arith.divf %155, %156 : vector<2x128xf32>
    %158 = vector.extract_strided_slice %144 {offsets = [0, 128], sizes = [2, 128], strides = [1, 1]} : vector<2x384xf32> to vector<2x128xf32>
    %159 = vector.extract_strided_slice %149 {offsets = [0, 128], sizes = [2, 128], strides = [1, 1]} : vector<2x384xf32> to vector<2x128xf32>
    %160 = arith.addf %158, %159 : vector<2x128xf32>
    %161 = arith.negf %160 : vector<2x128xf32>
    %162 = math.exp %161 : vector<2x128xf32>
    %cst_54 = arith.constant 1.000000e+00 : f32
    %163 = vector.broadcast %cst_54 : f32 to vector<2x128xf32>
    %164 = arith.addf %163, %162 : vector<2x128xf32>
    %165 = arith.divf %163, %164 : vector<2x128xf32>
    %166 = vector.extract_strided_slice %144 {offsets = [0, 256], sizes = [2, 128], strides = [1, 1]} : vector<2x384xf32> to vector<2x128xf32>
    %167 = vector.extract_strided_slice %149 {offsets = [0, 256], sizes = [2, 128], strides = [1, 1]} : vector<2x384xf32> to vector<2x128xf32>
    %168 = arith.mulf %157, %167 : vector<2x128xf32>
    %169 = arith.addf %166, %168 : vector<2x128xf32>
    %170 = math.tanh %169 : vector<2x128xf32>
    %cst_55 = arith.constant 1.000000e+00 : f32
    %171 = vector.broadcast %cst_55 : f32 to vector<2x128xf32>
    %172 = arith.subf %171, %165 : vector<2x128xf32>
    %173 = arith.mulf %172, %170 : vector<2x128xf32>
    %174 = arith.mulf %165, %142 : vector<2x128xf32>
    %175 = arith.addf %173, %174 : vector<2x128xf32>
    %c8 = arith.constant 8 : index
    %c0_56 = arith.constant 0 : index
    %176 = vector.load %arg20[%c8, %c0_56] : memref<10x128xf32, #tpu.memory_space<vmem>>, vector<2x128xf32>
    tpu.vector_store %arg20[%c8, %c0_56], %175 {strides = array<i32>} : memref<10x128xf32, #tpu.memory_space<vmem>>, vector<2x128xf32>,
    %c0_57 = arith.constant 0 : index
    %c0_58 = arith.constant 0 : index
    %177 = vector.load %arg20[%c0_57, %c0_58] : memref<10x128xf32, #tpu.memory_space<vmem>>, vector<10x128xf32>
    %c0_59 = arith.constant 0 : index
    %c0_60 = arith.constant 0 : index
    %178 = vector.load %arg18[%c0_59, %c0_60] : memref<10x128xf32, #tpu.memory_space<vmem>>, vector<10x128xf32>
    tpu.vector_store %arg18[%c0_59, %c0_60], %177 {strides = array<i32>} : memref<10x128xf32, #tpu.memory_space<vmem>>, vector<10x128xf32>,
    %cst_61 = arith.constant dense<0.000000e+00> : vector<10xf32>
    %179 = vector.multi_reduction <add>, %177, %cst_61 [1] : vector<10x128xf32> to vector<10xf32>
    %180 = vector.shape_cast %179 : vector<10xf32> to vector<10x1xf32>
    %cst_62 = arith.constant 1.280000e+02 : f32
    %181 = vector.broadcast %cst_62 : f32 to vector<10x1xf32>
    %182 = arith.divf %180, %181 : vector<10x1xf32>
    %183 = vector.broadcast %182 : vector<10x1xf32> to vector<10x128xf32>
    %184 = arith.subf %177, %183 : vector<10x128xf32>
    %185 = arith.mulf %184, %184 : vector<10x128xf32>
    %cst_63 = arith.constant dense<0.000000e+00> : vector<10xf32>
    %186 = vector.multi_reduction <add>, %185, %cst_63 [1] : vector<10x128xf32> to vector<10xf32>
    %187 = vector.shape_cast %186 : vector<10xf32> to vector<10x1xf32>
    %cst_64 = arith.constant 1.280000e+02 : f32
    %188 = vector.broadcast %cst_64 : f32 to vector<10x1xf32>
    %189 = arith.divf %187, %188 : vector<10x1xf32>
    %190 = vector.broadcast %182 : vector<10x1xf32> to vector<10x128xf32>
    %191 = arith.subf %177, %190 : vector<10x128xf32>
    %cst_65 = arith.constant 9.99999974E-6 : f32
    %192 = vector.broadcast %cst_65 : f32 to vector<10x1xf32>
    %193 = arith.addf %189, %192 : vector<10x1xf32>
    %194 = math.rsqrt %193 : vector<10x1xf32>
    %195 = vector.broadcast %194 : vector<10x1xf32> to vector<10x128xf32>
    %196 = arith.mulf %191, %195 : vector<10x128xf32>
    %c0_66 = arith.constant 0 : index
    %c0_67 = arith.constant 0 : index
    %197 = vector.load %arg9[%c0_66, %c0_67] : memref<1x128xf32, #tpu.memory_space<vmem>>, vector<1x128xf32>
    %198 = vector.broadcast %197 : vector<1x128xf32> to vector<10x128xf32>
    %199 = arith.mulf %196, %198 : vector<10x128xf32>
    %c0_68 = arith.constant 0 : index
    %c0_69 = arith.constant 0 : index
    %200 = vector.load %arg10[%c0_68, %c0_69] : memref<1x128xf32, #tpu.memory_space<vmem>>, vector<1x128xf32>
    %201 = vector.broadcast %200 : vector<1x128xf32> to vector<10x128xf32>
    %202 = arith.addf %199, %201 : vector<10x128xf32>
    %cst_70 = arith.constant 0.000000e+00 : f32
    %203 = vector.broadcast %cst_70 : f32 to vector<10x128xf32>
    %204 = arith.maximumf %202, %203 : vector<10x128xf32>
    %c0_71 = arith.constant 0 : index
    %c0_72 = arith.constant 0 : index
    %205 = vector.load %arg11[%c0_71, %c0_72] : memref<128x384xf32, #tpu.memory_space<vmem>>, vector<128x384xf32>
    %cst_73 = arith.constant dense<0.000000e+00> : vector<10x384xf32>
    %206 = tpu.matmul %204, %205, %cst_73 {dimension_numbers = #tpu.dot_dimension_numbers<[1], [0], [0], [1], [0, 0, 1, 1], [], []>} : vector<10x128xf32>, vector<128x384xf32>, vector<10x384xf32> -> vector<10x384xf32>
    %c0_74 = arith.constant 0 : index
    %c0_75 = arith.constant 0 : index
    %207 = vector.load %arg13[%c0_74, %c0_75] : memref<1x384xf32, #tpu.memory_space<vmem>>, vector<1x384xf32>
    %208 = vector.broadcast %207 : vector<1x384xf32> to vector<10x384xf32>
    %209 = arith.addf %206, %208 : vector<10x384xf32>
    %cst_76 = arith.constant 0.000000e+00 : f32
    %210 = vector.broadcast %cst_76 : f32 to vector<2x128xf32>
    %211 = vector.extract_strided_slice %209 {offsets = [0, 0], sizes = [2, 384], strides = [1, 1]} : vector<10x384xf32> to vector<2x384xf32>
    %c0_77 = arith.constant 0 : index
    %c0_78 = arith.constant 0 : index
    %212 = vector.load %arg12[%c0_77, %c0_78] : memref<128x384xf32, #tpu.memory_space<vmem>>, vector<128x384xf32>
    %cst_79 = arith.constant dense<0.000000e+00> : vector<2x384xf32>
    %213 = tpu.matmul %210, %212, %cst_79 {dimension_numbers = #tpu.dot_dimension_numbers<[1], [0], [0], [1], [0, 0, 1, 1], [], []>} : vector<2x128xf32>, vector<128x384xf32>, vector<2x384xf32> -> vector<2x384xf32>
    %c0_80 = arith.constant 0 : index
    %c0_81 = arith.constant 0 : index
    %214 = vector.load %arg14[%c0_80, %c0_81] : memref<1x384xf32, #tpu.memory_space<vmem>>, vector<1x384xf32>
    %215 = vector.broadcast %214 : vector<1x384xf32> to vector<2x384xf32>
    %216 = arith.addf %213, %215 : vector<2x384xf32>
    %217 = vector.extract_strided_slice %211 {offsets = [0, 0], sizes = [2, 128], strides = [1, 1]} : vector<2x384xf32> to vector<2x128xf32>
    %218 = vector.extract_strided_slice %216 {offsets = [0, 0], sizes = [2, 128], strides = [1, 1]} : vector<2x384xf32> to vector<2x128xf32>
    %219 = arith.addf %217, %218 : vector<2x128xf32>
    %220 = arith.negf %219 : vector<2x128xf32>
    %221 = math.exp %220 : vector<2x128xf32>
    %cst_82 = arith.constant 1.000000e+00 : f32
    %222 = vector.broadcast %cst_82 : f32 to vector<2x128xf32>
    %223 = arith.addf %222, %221 : vector<2x128xf32>
    %224 = arith.divf %222, %223 : vector<2x128xf32>
    %225 = vector.extract_strided_slice %211 {offsets = [0, 128], sizes = [2, 128], strides = [1, 1]} : vector<2x384xf32> to vector<2x128xf32>
    %226 = vector.extract_strided_slice %216 {offsets = [0, 128], sizes = [2, 128], strides = [1, 1]} : vector<2x384xf32> to vector<2x128xf32>
    %227 = arith.addf %225, %226 : vector<2x128xf32>
    %228 = arith.negf %227 : vector<2x128xf32>
    %229 = math.exp %228 : vector<2x128xf32>
    %cst_83 = arith.constant 1.000000e+00 : f32
    %230 = vector.broadcast %cst_83 : f32 to vector<2x128xf32>
    %231 = arith.addf %230, %229 : vector<2x128xf32>
    %232 = arith.divf %230, %231 : vector<2x128xf32>
    %233 = vector.extract_strided_slice %211 {offsets = [0, 256], sizes = [2, 128], strides = [1, 1]} : vector<2x384xf32> to vector<2x128xf32>
    %234 = vector.extract_strided_slice %216 {offsets = [0, 256], sizes = [2, 128], strides = [1, 1]} : vector<2x384xf32> to vector<2x128xf32>
    %235 = arith.mulf %224, %234 : vector<2x128xf32>
    %236 = arith.addf %233, %235 : vector<2x128xf32>
    %237 = math.tanh %236 : vector<2x128xf32>
    %cst_84 = arith.constant 1.000000e+00 : f32
    %238 = vector.broadcast %cst_84 : f32 to vector<2x128xf32>
    %239 = arith.subf %238, %232 : vector<2x128xf32>
    %240 = arith.mulf %239, %237 : vector<2x128xf32>
    %241 = arith.mulf %232, %210 : vector<2x128xf32>
    %242 = arith.addf %240, %241 : vector<2x128xf32>
    %c0_85 = arith.constant 0 : index
    %c0_86 = arith.constant 0 : index
    %243 = vector.load %arg20[%c0_85, %c0_86] : memref<10x128xf32, #tpu.memory_space<vmem>>, vector<2x128xf32>
    tpu.vector_store %arg20[%c0_85, %c0_86], %242 {strides = array<i32>} : memref<10x128xf32, #tpu.memory_space<vmem>>, vector<2x128xf32>,
    %244 = vector.extract_strided_slice %209 {offsets = [2, 0], sizes = [2, 384], strides = [1, 1]} : vector<10x384xf32> to vector<2x384xf32>
    %c0_87 = arith.constant 0 : index
    %c0_88 = arith.constant 0 : index
    %245 = vector.load %arg12[%c0_87, %c0_88] : memref<128x384xf32, #tpu.memory_space<vmem>>, vector<128x384xf32>
    %cst_89 = arith.constant dense<0.000000e+00> : vector<2x384xf32>
    %246 = tpu.matmul %242, %245, %cst_89 {dimension_numbers = #tpu.dot_dimension_numbers<[1], [0], [0], [1], [0, 0, 1, 1], [], []>} : vector<2x128xf32>, vector<128x384xf32>, vector<2x384xf32> -> vector<2x384xf32>
    %c0_90 = arith.constant 0 : index
    %c0_91 = arith.constant 0 : index
    %247 = vector.load %arg14[%c0_90, %c0_91] : memref<1x384xf32, #tpu.memory_space<vmem>>, vector<1x384xf32>
    %248 = vector.broadcast %247 : vector<1x384xf32> to vector<2x384xf32>
    %249 = arith.addf %246, %248 : vector<2x384xf32>
    %250 = vector.extract_strided_slice %244 {offsets = [0, 0], sizes = [2, 128], strides = [1, 1]} : vector<2x384xf32> to vector<2x128xf32>
    %251 = vector.extract_strided_slice %249 {offsets = [0, 0], sizes = [2, 128], strides = [1, 1]} : vector<2x384xf32> to vector<2x128xf32>
    %252 = arith.addf %250, %251 : vector<2x128xf32>
    %253 = arith.negf %252 : vector<2x128xf32>
    %254 = math.exp %253 : vector<2x128xf32>
    %cst_92 = arith.constant 1.000000e+00 : f32
    %255 = vector.broadcast %cst_92 : f32 to vector<2x128xf32>
    %256 = arith.addf %255, %254 : vector<2x128xf32>
    %257 = arith.divf %255, %256 : vector<2x128xf32>
    %258 = vector.extract_strided_slice %244 {offsets = [0, 128], sizes = [2, 128], strides = [1, 1]} : vector<2x384xf32> to vector<2x128xf32>
    %259 = vector.extract_strided_slice %249 {offsets = [0, 128], sizes = [2, 128], strides = [1, 1]} : vector<2x384xf32> to vector<2x128xf32>
    %260 = arith.addf %258, %259 : vector<2x128xf32>
    %261 = arith.negf %260 : vector<2x128xf32>
    %262 = math.exp %261 : vector<2x128xf32>
    %cst_93 = arith.constant 1.000000e+00 : f32
    %263 = vector.broadcast %cst_93 : f32 to vector<2x128xf32>
    %264 = arith.addf %263, %262 : vector<2x128xf32>
    %265 = arith.divf %263, %264 : vector<2x128xf32>
    %266 = vector.extract_strided_slice %244 {offsets = [0, 256], sizes = [2, 128], strides = [1, 1]} : vector<2x384xf32> to vector<2x128xf32>
    %267 = vector.extract_strided_slice %249 {offsets = [0, 256], sizes = [2, 128], strides = [1, 1]} : vector<2x384xf32> to vector<2x128xf32>
    %268 = arith.mulf %257, %267 : vector<2x128xf32>
    %269 = arith.addf %266, %268 : vector<2x128xf32>
    %270 = math.tanh %269 : vector<2x128xf32>
    %cst_94 = arith.constant 1.000000e+00 : f32
    %271 = vector.broadcast %cst_94 : f32 to vector<2x128xf32>
    %272 = arith.subf %271, %265 : vector<2x128xf32>
    %273 = arith.mulf %272, %270 : vector<2x128xf32>
    %274 = arith.mulf %265, %242 : vector<2x128xf32>
    %275 = arith.addf %273, %274 : vector<2x128xf32>
    %c2_95 = arith.constant 2 : index
    %c0_96 = arith.constant 0 : index
    %276 = vector.load %arg20[%c2_95, %c0_96] : memref<10x128xf32, #tpu.memory_space<vmem>>, vector<2x128xf32>
    tpu.vector_store %arg20[%c2_95, %c0_96], %275 {strides = array<i32>} : memref<10x128xf32, #tpu.memory_space<vmem>>, vector<2x128xf32>,
    %277 = vector.extract_strided_slice %209 {offsets = [4, 0], sizes = [2, 384], strides = [1, 1]} : vector<10x384xf32> to vector<2x384xf32>
    %c0_97 = arith.constant 0 : index
    %c0_98 = arith.constant 0 : index
    %278 = vector.load %arg12[%c0_97, %c0_98] : memref<128x384xf32, #tpu.memory_space<vmem>>, vector<128x384xf32>
    %cst_99 = arith.constant dense<0.000000e+00> : vector<2x384xf32>
    %279 = tpu.matmul %275, %278, %cst_99 {dimension_numbers = #tpu.dot_dimension_numbers<[1], [0], [0], [1], [0, 0, 1, 1], [], []>} : vector<2x128xf32>, vector<128x384xf32>, vector<2x384xf32> -> vector<2x384xf32>
    %c0_100 = arith.constant 0 : index
    %c0_101 = arith.constant 0 : index
    %280 = vector.load %arg14[%c0_100, %c0_101] : memref<1x384xf32, #tpu.memory_space<vmem>>, vector<1x384xf32>
    %281 = vector.broadcast %280 : vector<1x384xf32> to vector<2x384xf32>
    %282 = arith.addf %279, %281 : vector<2x384xf32>
    %283 = vector.extract_strided_slice %277 {offsets = [0, 0], sizes = [2, 128], strides = [1, 1]} : vector<2x384xf32> to vector<2x128xf32>
    %284 = vector.extract_strided_slice %282 {offsets = [0, 0], sizes = [2, 128], strides = [1, 1]} : vector<2x384xf32> to vector<2x128xf32>
    %285 = arith.addf %283, %284 : vector<2x128xf32>
    %286 = arith.negf %285 : vector<2x128xf32>
    %287 = math.exp %286 : vector<2x128xf32>
    %cst_102 = arith.constant 1.000000e+00 : f32
    %288 = vector.broadcast %cst_102 : f32 to vector<2x128xf32>
    %289 = arith.addf %288, %287 : vector<2x128xf32>
    %290 = arith.divf %288, %289 : vector<2x128xf32>
    %291 = vector.extract_strided_slice %277 {offsets = [0, 128], sizes = [2, 128], strides = [1, 1]} : vector<2x384xf32> to vector<2x128xf32>
    %292 = vector.extract_strided_slice %282 {offsets = [0, 128], sizes = [2, 128], strides = [1, 1]} : vector<2x384xf32> to vector<2x128xf32>
    %293 = arith.addf %291, %292 : vector<2x128xf32>
    %294 = arith.negf %293 : vector<2x128xf32>
    %295 = math.exp %294 : vector<2x128xf32>
    %cst_103 = arith.constant 1.000000e+00 : f32
    %296 = vector.broadcast %cst_103 : f32 to vector<2x128xf32>
    %297 = arith.addf %296, %295 : vector<2x128xf32>
    %298 = arith.divf %296, %297 : vector<2x128xf32>
    %299 = vector.extract_strided_slice %277 {offsets = [0, 256], sizes = [2, 128], strides = [1, 1]} : vector<2x384xf32> to vector<2x128xf32>
    %300 = vector.extract_strided_slice %282 {offsets = [0, 256], sizes = [2, 128], strides = [1, 1]} : vector<2x384xf32> to vector<2x128xf32>
    %301 = arith.mulf %290, %300 : vector<2x128xf32>
    %302 = arith.addf %299, %301 : vector<2x128xf32>
    %303 = math.tanh %302 : vector<2x128xf32>
    %cst_104 = arith.constant 1.000000e+00 : f32
    %304 = vector.broadcast %cst_104 : f32 to vector<2x128xf32>
    %305 = arith.subf %304, %298 : vector<2x128xf32>
    %306 = arith.mulf %305, %303 : vector<2x128xf32>
    %307 = arith.mulf %298, %275 : vector<2x128xf32>
    %308 = arith.addf %306, %307 : vector<2x128xf32>
    %c4_105 = arith.constant 4 : index
    %c0_106 = arith.constant 0 : index
    %309 = vector.load %arg20[%c4_105, %c0_106] : memref<10x128xf32, #tpu.memory_space<vmem>>, vector<2x128xf32>
    tpu.vector_store %arg20[%c4_105, %c0_106], %308 {strides = array<i32>} : memref<10x128xf32, #tpu.memory_space<vmem>>, vector<2x128xf32>,
    %310 = vector.extract_strided_slice %209 {offsets = [6, 0], sizes = [2, 384], strides = [1, 1]} : vector<10x384xf32> to vector<2x384xf32>
    %c0_107 = arith.constant 0 : index
    %c0_108 = arith.constant 0 : index
    %311 = vector.load %arg12[%c0_107, %c0_108] : memref<128x384xf32, #tpu.memory_space<vmem>>, vector<128x384xf32>
    %cst_109 = arith.constant dense<0.000000e+00> : vector<2x384xf32>
    %312 = tpu.matmul %308, %311, %cst_109 {dimension_numbers = #tpu.dot_dimension_numbers<[1], [0], [0], [1], [0, 0, 1, 1], [], []>} : vector<2x128xf32>, vector<128x384xf32>, vector<2x384xf32> -> vector<2x384xf32>
    %c0_110 = arith.constant 0 : index
    %c0_111 = arith.constant 0 : index
    %313 = vector.load %arg14[%c0_110, %c0_111] : memref<1x384xf32, #tpu.memory_space<vmem>>, vector<1x384xf32>
    %314 = vector.broadcast %313 : vector<1x384xf32> to vector<2x384xf32>
    %315 = arith.addf %312, %314 : vector<2x384xf32>
    %316 = vector.extract_strided_slice %310 {offsets = [0, 0], sizes = [2, 128], strides = [1, 1]} : vector<2x384xf32> to vector<2x128xf32>
    %317 = vector.extract_strided_slice %315 {offsets = [0, 0], sizes = [2, 128], strides = [1, 1]} : vector<2x384xf32> to vector<2x128xf32>
    %318 = arith.addf %316, %317 : vector<2x128xf32>
    %319 = arith.negf %318 : vector<2x128xf32>
    %320 = math.exp %319 : vector<2x128xf32>
    %cst_112 = arith.constant 1.000000e+00 : f32
    %321 = vector.broadcast %cst_112 : f32 to vector<2x128xf32>
    %322 = arith.addf %321, %320 : vector<2x128xf32>
    %323 = arith.divf %321, %322 : vector<2x128xf32>
    %324 = vector.extract_strided_slice %310 {offsets = [0, 128], sizes = [2, 128], strides = [1, 1]} : vector<2x384xf32> to vector<2x128xf32>
    %325 = vector.extract_strided_slice %315 {offsets = [0, 128], sizes = [2, 128], strides = [1, 1]} : vector<2x384xf32> to vector<2x128xf32>
    %326 = arith.addf %324, %325 : vector<2x128xf32>
    %327 = arith.negf %326 : vector<2x128xf32>
    %328 = math.exp %327 : vector<2x128xf32>
    %cst_113 = arith.constant 1.000000e+00 : f32
    %329 = vector.broadcast %cst_113 : f32 to vector<2x128xf32>
    %330 = arith.addf %329, %328 : vector<2x128xf32>
    %331 = arith.divf %329, %330 : vector<2x128xf32>
    %332 = vector.extract_strided_slice %310 {offsets = [0, 256], sizes = [2, 128], strides = [1, 1]} : vector<2x384xf32> to vector<2x128xf32>
    %333 = vector.extract_strided_slice %315 {offsets = [0, 256], sizes = [2, 128], strides = [1, 1]} : vector<2x384xf32> to vector<2x128xf32>
    %334 = arith.mulf %323, %333 : vector<2x128xf32>
    %335 = arith.addf %332, %334 : vector<2x128xf32>
    %336 = math.tanh %335 : vector<2x128xf32>
    %cst_114 = arith.constant 1.000000e+00 : f32
    %337 = vector.broadcast %cst_114 : f32 to vector<2x128xf32>
    %338 = arith.subf %337, %331 : vector<2x128xf32>
    %339 = arith.mulf %338, %336 : vector<2x128xf32>
    %340 = arith.mulf %331, %308 : vector<2x128xf32>
    %341 = arith.addf %339, %340 : vector<2x128xf32>
    %c6_115 = arith.constant 6 : index
    %c0_116 = arith.constant 0 : index
    %342 = vector.load %arg20[%c6_115, %c0_116] : memref<10x128xf32, #tpu.memory_space<vmem>>, vector<2x128xf32>
    tpu.vector_store %arg20[%c6_115, %c0_116], %341 {strides = array<i32>} : memref<10x128xf32, #tpu.memory_space<vmem>>, vector<2x128xf32>,
    %343 = vector.extract_strided_slice %209 {offsets = [8, 0], sizes = [2, 384], strides = [1, 1]} : vector<10x384xf32> to vector<2x384xf32>
    %c0_117 = arith.constant 0 : index
    %c0_118 = arith.constant 0 : index
    %344 = vector.load %arg12[%c0_117, %c0_118] : memref<128x384xf32, #tpu.memory_space<vmem>>, vector<128x384xf32>
    %cst_119 = arith.constant dense<0.000000e+00> : vector<2x384xf32>
    %345 = tpu.matmul %341, %344, %cst_119 {dimension_numbers = #tpu.dot_dimension_numbers<[1], [0], [0], [1], [0, 0, 1, 1], [], []>} : vector<2x128xf32>, vector<128x384xf32>, vector<2x384xf32> -> vector<2x384xf32>
    %c0_120 = arith.constant 0 : index
    %c0_121 = arith.constant 0 : index
    %346 = vector.load %arg14[%c0_120, %c0_121] : memref<1x384xf32, #tpu.memory_space<vmem>>, vector<1x384xf32>
    %347 = vector.broadcast %346 : vector<1x384xf32> to vector<2x384xf32>
    %348 = arith.addf %345, %347 : vector<2x384xf32>
    %349 = vector.extract_strided_slice %343 {offsets = [0, 0], sizes = [2, 128], strides = [1, 1]} : vector<2x384xf32> to vector<2x128xf32>
    %350 = vector.extract_strided_slice %348 {offsets = [0, 0], sizes = [2, 128], strides = [1, 1]} : vector<2x384xf32> to vector<2x128xf32>
    %351 = arith.addf %349, %350 : vector<2x128xf32>
    %352 = arith.negf %351 : vector<2x128xf32>
    %353 = math.exp %352 : vector<2x128xf32>
    %cst_122 = arith.constant 1.000000e+00 : f32
    %354 = vector.broadcast %cst_122 : f32 to vector<2x128xf32>
    %355 = arith.addf %354, %353 : vector<2x128xf32>
    %356 = arith.divf %354, %355 : vector<2x128xf32>
    %357 = vector.extract_strided_slice %343 {offsets = [0, 128], sizes = [2, 128], strides = [1, 1]} : vector<2x384xf32> to vector<2x128xf32>
    %358 = vector.extract_strided_slice %348 {offsets = [0, 128], sizes = [2, 128], strides = [1, 1]} : vector<2x384xf32> to vector<2x128xf32>
    %359 = arith.addf %357, %358 : vector<2x128xf32>
    %360 = arith.negf %359 : vector<2x128xf32>
    %361 = math.exp %360 : vector<2x128xf32>
    %cst_123 = arith.constant 1.000000e+00 : f32
    %362 = vector.broadcast %cst_123 : f32 to vector<2x128xf32>
    %363 = arith.addf %362, %361 : vector<2x128xf32>
    %364 = arith.divf %362, %363 : vector<2x128xf32>
    %365 = vector.extract_strided_slice %343 {offsets = [0, 256], sizes = [2, 128], strides = [1, 1]} : vector<2x384xf32> to vector<2x128xf32>
    %366 = vector.extract_strided_slice %348 {offsets = [0, 256], sizes = [2, 128], strides = [1, 1]} : vector<2x384xf32> to vector<2x128xf32>
    %367 = arith.mulf %356, %366 : vector<2x128xf32>
    %368 = arith.addf %365, %367 : vector<2x128xf32>
    %369 = math.tanh %368 : vector<2x128xf32>
    %cst_124 = arith.constant 1.000000e+00 : f32
    %370 = vector.broadcast %cst_124 : f32 to vector<2x128xf32>
    %371 = arith.subf %370, %364 : vector<2x128xf32>
    %372 = arith.mulf %371, %369 : vector<2x128xf32>
    %373 = arith.mulf %364, %341 : vector<2x128xf32>
    %374 = arith.addf %372, %373 : vector<2x128xf32>
    %c8_125 = arith.constant 8 : index
    %c0_126 = arith.constant 0 : index
    %375 = vector.load %arg20[%c8_125, %c0_126] : memref<10x128xf32, #tpu.memory_space<vmem>>, vector<2x128xf32>
    tpu.vector_store %arg20[%c8_125, %c0_126], %374 {strides = array<i32>} : memref<10x128xf32, #tpu.memory_space<vmem>>, vector<2x128xf32>,
    %c0_127 = arith.constant 0 : index
    %c0_128 = arith.constant 0 : index
    %376 = vector.load %arg20[%c0_127, %c0_128] : memref<10x128xf32, #tpu.memory_space<vmem>>, vector<10x128xf32>
    %c0_129 = arith.constant 0 : index
    %c0_130 = arith.constant 0 : index
    %377 = vector.load %arg19[%c0_129, %c0_130] : memref<10x128xf32, #tpu.memory_space<vmem>>, vector<10x128xf32>
    tpu.vector_store %arg19[%c0_129, %c0_130], %376 {strides = array<i32>} : memref<10x128xf32, #tpu.memory_space<vmem>>, vector<10x128xf32>,
    %cst_131 = arith.constant dense<0.000000e+00> : vector<10xf32>
    %378 = vector.multi_reduction <add>, %376, %cst_131 [1] : vector<10x128xf32> to vector<10xf32>
    %379 = vector.shape_cast %378 : vector<10xf32> to vector<10x1xf32>
    %cst_132 = arith.constant 1.280000e+02 : f32
    %380 = vector.broadcast %cst_132 : f32 to vector<10x1xf32>
    %381 = arith.divf %379, %380 : vector<10x1xf32>
    %382 = vector.broadcast %381 : vector<10x1xf32> to vector<10x128xf32>
    %383 = arith.subf %376, %382 : vector<10x128xf32>
    %384 = arith.mulf %383, %383 : vector<10x128xf32>
    %cst_133 = arith.constant dense<0.000000e+00> : vector<10xf32>
    %385 = vector.multi_reduction <add>, %384, %cst_133 [1] : vector<10x128xf32> to vector<10xf32>
    %386 = vector.shape_cast %385 : vector<10xf32> to vector<10x1xf32>
    %cst_134 = arith.constant 1.280000e+02 : f32
    %387 = vector.broadcast %cst_134 : f32 to vector<10x1xf32>
    %388 = arith.divf %386, %387 : vector<10x1xf32>
    %389 = vector.broadcast %381 : vector<10x1xf32> to vector<10x128xf32>
    %390 = arith.subf %376, %389 : vector<10x128xf32>
    %cst_135 = arith.constant 9.99999974E-6 : f32
    %391 = vector.broadcast %cst_135 : f32 to vector<10x1xf32>
    %392 = arith.addf %388, %391 : vector<10x1xf32>
    %393 = math.rsqrt %392 : vector<10x1xf32>
    %394 = vector.broadcast %393 : vector<10x1xf32> to vector<10x128xf32>
    %395 = arith.mulf %390, %394 : vector<10x128xf32>
    %c0_136 = arith.constant 0 : index
    %c0_137 = arith.constant 0 : index
    %396 = vector.load %arg15[%c0_136, %c0_137] : memref<1x128xf32, #tpu.memory_space<vmem>>, vector<1x128xf32>
    %397 = vector.broadcast %396 : vector<1x128xf32> to vector<10x128xf32>
    %398 = arith.mulf %395, %397 : vector<10x128xf32>
    %c0_138 = arith.constant 0 : index
    %c0_139 = arith.constant 0 : index
    %399 = vector.load %arg16[%c0_138, %c0_139] : memref<1x128xf32, #tpu.memory_space<vmem>>, vector<1x128xf32>
    %400 = vector.broadcast %399 : vector<1x128xf32> to vector<10x128xf32>
    %401 = arith.addf %398, %400 : vector<10x128xf32>
    %cst_140 = arith.constant 0.000000e+00 : f32
    %402 = vector.broadcast %cst_140 : f32 to vector<10x128xf32>
    %403 = arith.maximumf %401, %402 : vector<10x128xf32>
    %c0_141 = arith.constant 0 : index
    %c0_142 = arith.constant 0 : index
    %404 = vector.load %arg2[%c0_141, %c0_142] : memref<2x10xf32, #tpu.memory_space<vmem>>, vector<2x10xf32>
    %cst_143 = arith.constant dense<0.000000e+00> : vector<2x128xf32>
    %405 = tpu.matmul %404, %403, %cst_143 {dimension_numbers = #tpu.dot_dimension_numbers<[1], [0], [0], [1], [0, 0, 1, 1], [], []>} : vector<2x10xf32>, vector<10x128xf32>, vector<2x128xf32> -> vector<2x128xf32>
    %c0_144 = arith.constant 0 : index
    %c0_145 = arith.constant 0 : index
    %406 = vector.load %arg17[%c0_144, %c0_145] : memref<2x128xf32, #tpu.memory_space<vmem>>, vector<2x128xf32>
    tpu.vector_store %arg17[%c0_144, %c0_145], %405 {strides = array<i32>} : memref<2x128xf32, #tpu.memory_space<vmem>>, vector<2x128xf32>,
    return
  }
  func.func @transform_0(%arg0: i32) -> (i32, i32) {
    %c0_i32 = arith.constant 0 : i32
    %c0_i32_0 = arith.constant 0 : i32
    %c0_i32_1 = arith.constant 0 : i32
    return %c0_i32, %c0_i32_0 : i32, i32
  }
  func.func @transform_1(%arg0: i32) -> (i32, i32) {
    %c0_i32 = arith.constant 0 : i32
    %c0_i32_0 = arith.constant 0 : i32
    %c0_i32_1 = arith.constant 0 : i32
    return %c0_i32, %c0_i32_0 : i32, i32
  }
  func.func @transform_2(%arg0: i32) -> (i32, i32) {
    %c0_i32 = arith.constant 0 : i32
    %c0_i32_0 = arith.constant 0 : i32
    %c0_i32_1 = arith.constant 0 : i32
    return %c0_i32, %c0_i32_0 : i32, i32
  }
  func.func @transform_3(%arg0: i32) -> (i32, i32) {
    %c0_i32 = arith.constant 0 : i32
    %c0_i32_0 = arith.constant 0 : i32
    %c0_i32_1 = arith.constant 0 : i32
    return %c0_i32, %c0_i32_0 : i32, i32
  }
  func.func @transform_4(%arg0: i32) -> (i32, i32) {
    %c0_i32 = arith.constant 0 : i32
    %c0_i32_0 = arith.constant 0 : i32
    %c0_i32_1 = arith.constant 0 : i32
    return %c0_i32, %c0_i32_0 : i32, i32
  }
  func.func @transform_5(%arg0: i32) -> (i32, i32) {
    %c0_i32 = arith.constant 0 : i32
    %c0_i32_0 = arith.constant 0 : i32
    %c0_i32_1 = arith.constant 0 : i32
    return %c0_i32, %c0_i32_0 : i32, i32
  }
  func.func @transform_6(%arg0: i32) -> (i32, i32) {
    %c0_i32 = arith.constant 0 : i32
    %c0_i32_0 = arith.constant 0 : i32
    %c0_i32_1 = arith.constant 0 : i32
    return %c0_i32, %c0_i32_0 : i32, i32
  }
  func.func @transform_7(%arg0: i32) -> (i32, i32) {
    %c0_i32 = arith.constant 0 : i32
    %c0_i32_0 = arith.constant 0 : i32
    %c0_i32_1 = arith.constant 0 : i32
    return %c0_i32, %c0_i32_0 : i32, i32
  }
  func.func @transform_8(%arg0: i32) -> (i32, i32) {
    %c0_i32 = arith.constant 0 : i32
    %c0_i32_0 = arith.constant 0 : i32
    %c0_i32_1 = arith.constant 0 : i32
    return %c0_i32, %c0_i32_0 : i32, i32
  }
  func.func @transform_9(%arg0: i32) -> (i32, i32) {
    %c0_i32 = arith.constant 0 : i32
    %c0_i32_0 = arith.constant 0 : i32
    %c0_i32_1 = arith.constant 0 : i32
    return %c0_i32, %c0_i32_0 : i32, i32
  }
  func.func @transform_10(%arg0: i32) -> (i32, i32) {
    %c0_i32 = arith.constant 0 : i32
    %c0_i32_0 = arith.constant 0 : i32
    %c0_i32_1 = arith.constant 0 : i32
    return %c0_i32, %c0_i32_0 : i32, i32
  }
  func.func @transform_11(%arg0: i32) -> (i32, i32) {
    %c0_i32 = arith.constant 0 : i32
    %c0_i32_0 = arith.constant 0 : i32
    %c0_i32_1 = arith.constant 0 : i32
    return %c0_i32, %c0_i32_0 : i32, i32
  }
  func.func @transform_12(%arg0: i32) -> (i32, i32) {
    %c0_i32 = arith.constant 0 : i32
    %c0_i32_0 = arith.constant 0 : i32
    %c0_i32_1 = arith.constant 0 : i32
    return %c0_i32, %c0_i32_0 : i32, i32
  }
  func.func @transform_13(%arg0: i32) -> (i32, i32) {
    %c0_i32 = arith.constant 0 : i32
    %c0_i32_0 = arith.constant 0 : i32
    %c0_i32_1 = arith.constant 0 : i32
    return %c0_i32, %c0_i32_0 : i32, i32
  }
  func.func @transform_14(%arg0: i32) -> (i32, i32) {
    %c0_i32 = arith.constant 0 : i32
    %c0_i32_0 = arith.constant 0 : i32
    %c0_i32_1 = arith.constant 0 : i32
    return %c0_i32, %c0_i32_0 : i32, i32
  }
  func.func @transform_15(%arg0: i32) -> (i32, i32) {
    %c0_i32 = arith.constant 0 : i32
    %c0_i32_0 = arith.constant 0 : i32
    %c0_i32_1 = arith.constant 0 : i32
    return %c0_i32, %c0_i32_0 : i32, i32
  }
  func.func @transform_16(%arg0: i32) -> (i32, i32) {
    %c0_i32 = arith.constant 0 : i32
    %c0_i32_0 = arith.constant 0 : i32
    %c0_i32_1 = arith.constant 0 : i32
    return %c0_i32, %c0_i32_0 : i32, i32
  }
  func.func @transform_17(%arg0: i32) -> (i32, i32) {
    %c0_i32 = arith.constant 0 : i32
    %c0_i32_0 = arith.constant 0 : i32
    %c0_i32_1 = arith.constant 0 : i32
    return %c0_i32, %c0_i32_0 : i32, i32
  }
  func.func @transform_18(%arg0: i32) -> (i32, i32) {
    %c0_i32 = arith.constant 0 : i32
    %c0_i32_0 = arith.constant 0 : i32
    %c0_i32_1 = arith.constant 0 : i32
    return %c0_i32, %c0_i32_0 : i32, i32
  }
}

</mosaic_0001>

<llo_original>
// kernel: forward.1
$region0: #{forward.1}
  #allocation0 [shape = 'u32[]', space=smem, size = 0x4, offset = 0x4, fixed_abs, tag = 'smem constant byte address 0x4 - core index']
  #allocation1 [shape = 'u32[72,128]{1,0:T(1,128)}', space=vmem, size = 0x9000, scoped, tag = 'internal scratch']
  #allocation2 [shape = 'f32[10,128]{1,0:T(8,128)}', space=vmem, size = 0x2000, scoped, tag = 'scratch operand']
  %s0 = inlined_call_operand.vmem [shape: f32[10,4], index: 0, kind: input, shape index: {}]
  %s1 = inlined_call_operand.vmem [shape: f32[2,10], index: 1, kind: input, shape index: {}]
  %s2 = inlined_call_operand.vmem [shape: f32[4,128], index: 2, kind: input, shape index: {}]
  %s3 = inlined_call_operand.vmem [shape: f32[1,128], index: 3, kind: input, shape index: {}]
  %s4 = inlined_call_operand.hbm [shape: f32[128,384], index: 4, kind: input, shape index: {}]
  %s5 = inlined_call_operand.hbm [shape: f32[128,384], index: 5, kind: input, shape index: {}]
  %s6 = inlined_call_operand.vmem [shape: f32[1,384], index: 6, kind: input, shape index: {}]
  %s7 = inlined_call_operand.vmem [shape: f32[1,384], index: 7, kind: input, shape index: {}]
  %s8 = inlined_call_operand.vmem [shape: f32[1,128], index: 8, kind: input, shape index: {}]
  %s9 = inlined_call_operand.vmem [shape: f32[1,128], index: 9, kind: input, shape index: {}]
  %s10 = inlined_call_operand.hbm [shape: f32[128,384], index: 10, kind: input, shape index: {}]
  %s11 = inlined_call_operand.hbm [shape: f32[128,384], index: 11, kind: input, shape index: {}]
  %s12 = inlined_call_operand.vmem [shape: f32[1,384], index: 12, kind: input, shape index: {}]
  %s13 = inlined_call_operand.vmem [shape: f32[1,384], index: 13, kind: input, shape index: {}]
  %s14 = inlined_call_operand.vmem [shape: f32[1,128], index: 14, kind: input, shape index: {}]
  %s15 = inlined_call_operand.vmem [shape: f32[1,128], index: 15, kind: input, shape index: {}]
  %s16 = inlined_call_operand.hbm [shape: f32[2,128], index: 16, kind: output, shape index: {0}]
  %s17 = inlined_call_operand.vmem [shape: f32[10,128], index: 17, kind: output, shape index: {1}]
  %s18 = inlined_call_operand.vmem [shape: f32[10,128], index: 18, kind: output, shape index: {2}]
  %19 = xla_tuple %s16, %s17, %s18
  %s20 = sld [smem:[#allocation0]]
  $region106: #{forward.1} parent=0
    _
  %s22 = ssub.s32 1, %s20
  %s23 = scalar_select 0, %s22, %s20
  $region1: #{forward.1} parent=0
    #allocation3 [shape = 'u8[196608]{0}', space=vmem, size = 0x30000, scoped, tag = 'input window, operand 4, single buffered']
    #allocation4 [shape = 's32[1]{0}', space=sflag, size = 0x4, scoped, tag = 'scoped memory for forward.1']
    #allocation5 [shape = 's32[1]{0}', space=sflag, size = 0x4, scoped, tag = 'scoped memory for forward.1']
    #allocation6 [shape = 'u8[196608]{0}', space=vmem, size = 0x30000, scoped, tag = 'input window, operand 5, single buffered']
    #allocation7 [shape = 's32[1]{0}', space=sflag, size = 0x4, scoped, tag = 'scoped memory for forward.1']
    #allocation8 [shape = 'u8[196608]{0}', space=vmem, size = 0x30000, scoped, tag = 'input window, operand 10, single buffered']
    #allocation9 [shape = 'u8[196608]{0}', space=vmem, size = 0x30000, scoped, tag = 'input window, operand 11, single buffered']
    #allocation10 [shape = 's32[1]{0}', space=sflag, size = 0x4, scoped, tag = 'scoped memory for forward.1']
    #allocation11 [shape = 'u8[1024]{0}', space=vmem, size = 0x400, scoped, tag = 'output window, operand 0, single buffered']
    %24 = vsyncpa [#allocation4], 0
    %25 = vsyncpa [#allocation7], 0
    %26 = vsyncpa [#allocation10], 0
    %27 = vsyncpa [#allocation5], 0
    // Predicated region
    $region2: #{forward.1} parent=1 // pred_check
      _
    $region3: #{forward.1} parent=1 // pred_check_branch
      %29 = sbr.rel (0) target = $region5
    $region4: #{forward.1} parent=1 // pred_region
      _
    $region5: #{forward.1} parent=1 // pred_fallthru
      _
    // Predicated region
    $region6: #{forward.1} parent=1 // pred_check
      _
    $region7: #{forward.1} parent=1 // pred_check_branch
      %31 = sbr.rel (0) target = $region9
    $region8: #{forward.1} parent=1 // pred_region
      _
    $region9: #{forward.1} parent=1 // pred_fallthru
      _
    // Predicated region
    $region10: #{forward.1} parent=1 // pred_check
      _
    $region11: #{forward.1} parent=1 // pred_check_branch
      %33 = sbr.rel (0) target = $region13
    $region12: #{forward.1} parent=1 // pred_region
      _
    $region13: #{forward.1} parent=1 // pred_fallthru
      _
    // Predicated region
    $region14: #{forward.1} parent=1 // pred_check
      _
    $region15: #{forward.1} parent=1 // pred_check_branch
      %35 = sbr.rel (0) target = $region17
    $region16: #{forward.1} parent=1 // pred_region
      _
    $region17: #{forward.1} parent=1 // pred_fallthru
      _
    // Predicated region
    $region18: #{forward.1} parent=1 // pred_check
      _
    $region19: #{forward.1} parent=1 // pred_check_branch
      %37 = sbr.rel (0) target = $region21
    $region20: #{forward.1} parent=1 // pred_region
      %39 = vsyncadd [#allocation4], 0
      %s40 = sshll.u32 %s4, 4
      %s41 = int_to_ptr.hbm [resolvable:$true] %s40
      %s42 = sshll.u32 [#allocation3], 4
      %s43 = int_to_ptr.vmem [resolvable:$true] %s42
      %48 = dma.hbm_to_vmem [thread:$0]  %s41, 6144, %s43, [#allocation4], 384, 384, 24
    $region21: #{forward.1} parent=1 // pred_fallthru
      _
    // Predicated region
    $region22: #{forward.1} parent=1 // pred_check
      _
    $region23: #{forward.1} parent=1 // pred_check_branch
      %50 = sbr.rel (0) target = $region25
    $region24: #{forward.1} parent=1 // pred_region
      %52 = vsyncadd [#allocation7], 0
      %s53 = sshll.u32 %s5, 4
      %s54 = int_to_ptr.hbm [resolvable:$true] %s53
      %s55 = sshll.u32 [#allocation6], 4
      %s56 = int_to_ptr.vmem [resolvable:$true] %s55
      %61 = dma.hbm_to_vmem [thread:$0]  %s54, 6144, %s56, [#allocation7], 384, 384, 24
    $region25: #{forward.1} parent=1 // pred_fallthru
      _
    // Predicated region
    $region26: #{forward.1} parent=1 // pred_check
      _
    $region27: #{forward.1} parent=1 // pred_check_branch
      %63 = sbr.rel (0) target = $region29
    $region28: #{forward.1} parent=1 // pred_region
      _
    $region29: #{forward.1} parent=1 // pred_fallthru
      _
    // Predicated region
    $region30: #{forward.1} parent=1 // pred_check
      _
    $region31: #{forward.1} parent=1 // pred_check_branch
      %65 = sbr.rel (0) target = $region33
    $region32: #{forward.1} parent=1 // pred_region
      _
    $region33: #{forward.1} parent=1 // pred_fallthru
      _
    // Predicated region
    $region34: #{forward.1} parent=1 // pred_check
      _
    $region35: #{forward.1} parent=1 // pred_check_branch
      %67 = sbr.rel (0) target = $region37
    $region36: #{forward.1} parent=1 // pred_region
      _
    $region37: #{forward.1} parent=1 // pred_fallthru
      _
    // Predicated region
    $region38: #{forward.1} parent=1 // pred_check
      _
    $region39: #{forward.1} parent=1 // pred_check_branch
      %69 = sbr.rel (0) target = $region41
    $region40: #{forward.1} parent=1 // pred_region
      _
    $region41: #{forward.1} parent=1 // pred_fallthru
      _
    // Predicated region
    $region42: #{forward.1} parent=1 // pred_check
      _
    $region43: #{forward.1} parent=1 // pred_check_branch
      %71 = sbr.rel (0) target = $region45
    $region44: #{forward.1} parent=1 // pred_region
      %73 = vsyncadd [#allocation7], 0
      %s74 = sshll.u32 %s10, 4
      %s75 = int_to_ptr.hbm [resolvable:$true] %s74
      %s76 = sshll.u32 [#allocation8], 4
      %s77 = int_to_ptr.vmem [resolvable:$true] %s76
      %82 = dma.hbm_to_vmem [thread:$0]  %s75, 6144, %s77, [#allocation7], 384, 384, 24
    $region45: #{forward.1} parent=1 // pred_fallthru
      _
    // Predicated region
    $region46: #{forward.1} parent=1 // pred_check
      _
    $region47: #{forward.1} parent=1 // pred_check_branch
      %84 = sbr.rel (0) target = $region49
    $region48: #{forward.1} parent=1 // pred_region
      %86 = vsyncadd [#allocation10], 0
      %s87 = sshll.u32 %s11, 4
      %s88 = int_to_ptr.hbm [resolvable:$true] %s87
      %s89 = sshll.u32 [#allocation9], 4
      %s90 = int_to_ptr.vmem [resolvable:$true] %s89
      %95 = dma.hbm_to_vmem [thread:$0]  %s88, 6144, %s90, [#allocation10], 384, 384, 24
    $region49: #{forward.1} parent=1 // pred_fallthru
      _
    // Predicated region
    $region50: #{forward.1} parent=1 // pred_check
      _
    $region51: #{forward.1} parent=1 // pred_check_branch
      %97 = sbr.rel (0) target = $region53
    $region52: #{forward.1} parent=1 // pred_region
      _
    $region53: #{forward.1} parent=1 // pred_fallthru
      _
    // Predicated region
    $region54: #{forward.1} parent=1 // pred_check
      _
    $region55: #{forward.1} parent=1 // pred_check_branch
      %99 = sbr.rel (0) target = $region57
    $region56: #{forward.1} parent=1 // pred_region
      _
    $region57: #{forward.1} parent=1 // pred_fallthru
      _
    // Predicated region
    $region58: #{forward.1} parent=1 // pred_check
      _
    $region59: #{forward.1} parent=1 // pred_check_branch
      %101 = sbr.rel (0) target = $region61
    $region60: #{forward.1} parent=1 // pred_region
      _
    $region61: #{forward.1} parent=1 // pred_fallthru
      _
    // Predicated region
    $region62: #{forward.1} parent=1 // pred_check
      _
    $region63: #{forward.1} parent=1 // pred_check_branch
      %103 = sbr.rel (0) target = $region65
    $region64: #{forward.1} parent=1 // pred_region
      _
    $region65: #{forward.1} parent=1 // pred_fallthru
      _
    // Predicated region
    $region66: #{forward.1} parent=1 // pred_check
      _
    $region67: #{forward.1} parent=1 // pred_check_branch
      %105 = sbr.rel (0) target = $region69
    $region68: #{forward.1} parent=1 // pred_region
      %107 = dma.done [#allocation4], 6144
    $region69: #{forward.1} parent=1 // pred_fallthru
      _
    // Predicated region
    $region70: #{forward.1} parent=1 // pred_check
      _
    $region71: #{forward.1} parent=1 // pred_check_branch
      %109 = sbr.rel (0) target = $region73
    $region72: #{forward.1} parent=1 // pred_region
      %111 = dma.done [#allocation7], 6144
    $region73: #{forward.1} parent=1 // pred_fallthru
      _
    // Predicated region
    $region74: #{forward.1} parent=1 // pred_check
      _
    $region75: #{forward.1} parent=1 // pred_check_branch
      %113 = sbr.rel (0) target = $region77
    $region76: #{forward.1} parent=1 // pred_region
      %115 = dma.done [#allocation7], 6144
    $region77: #{forward.1} parent=1 // pred_fallthru
      _
    // Predicated region
    $region78: #{forward.1} parent=1 // pred_check
      _
    $region79: #{forward.1} parent=1 // pred_check_branch
      %117 = sbr.rel (0) target = $region81
    $region80: #{forward.1} parent=1 // pred_region
      %119 = dma.done [#allocation10], 6144
    $region81: #{forward.1} parent=1 // pred_fallthru
      _
    %v120 = vld [vmem:[%s0] sm:$0xff]
    %v121 = vld [vmem:[%s0 + $0x8] sm:$0x3]
    %v122 = vld [vmem:[%s2] sm:$0xf]
    %v123 = vld [vmem:[%s3] sm:$0x1]
    %v125 = vperm.slane %v123, 0
    %vm127 = vcmask 31744
    %v129 = vsel %vm127, %v120, 0
    %v132 = vsel %vm127, %v121, 0
    %vm134 = vcmask 1043456
    %v136 = vsel %vm134, %v122, 0
    %138 = vmatpush.msra.mxu0 0.0
    %139 = vmatpush.msra.mxu0 0.0
    %140 = vmatpush.msra.mxu0 0.0
    %141 = vmatpush.msra.mxu0 0.0
    %142 = vmatpush.msra.mxu0 0.0
    %143 = vmatpush.msra.mxu0 0.0
    %144 = vmatpush.msra.mxu0 0.0
    %145 = vmatpush.msra.mxu0 0.0
    %146 = vmatpush.msra.mxu0 0.0
    %147 = vmatpush.msra.mxu0 0.0
    %148 = vmatpush.msra.mxu0 0.0
    %149 = vmatpush.msra.mxu0 0.0
    %150 = vmatpush.msra.mxu0 0.0
    %151 = vmatpush.msra.mxu0 0.0
    %152 = vmatpush.msra.mxu0 0.0
    %153 = vmatpush.msra.mxu0 %v136
    %154 = vmatmul.f32.gmra.mxu0 %v129
    %v155 = vpop.f32.mrf.mxu0
    %v156 = vadd.f32 %v125, %v155
    %157 = vmatmul.f32.gmra.mxu0 %v132
    %v158 = vpop.f32.mrf.mxu0
    %v159 = vadd.f32 %v125, %v158
    %160 = vdwg.mxu0
    %v161 = vld [vmem:[#allocation3] sm:$0xff]
    %v162 = vld [vmem:[#allocation3 + $0x8] sm:$0xff]
    %v163 = vld [vmem:[#allocation3 + $0x10] sm:$0xff]
    %v164 = vld [vmem:[#allocation3 + $0x18] sm:$0xff]
    %v165 = vld [vmem:[#allocation3 + $0x20] sm:$0xff]
    %v166 = vld [vmem:[#allocation3 + $0x28] sm:$0xff]
    %v167 = vld [vmem:[#allocation3 + $0x30] sm:$0xff]
    %v168 = vld [vmem:[#allocation3 + $0x38] sm:$0xff]
    %v169 = vld [vmem:[#allocation3 + $0x40] sm:$0xff]
    %v170 = vld [vmem:[#allocation3 + $0x48] sm:$0xff]
    %v171 = vld [vmem:[#allocation3 + $0x50] sm:$0xff]
    %v172 = vld [vmem:[#allocation3 + $0x58] sm:$0xff]
    %v173 = vld [vmem:[#allocation3 + $0x60] sm:$0xff]
    %v174 = vld [vmem:[#allocation3 + $0x68] sm:$0xff]
    %v175 = vld [vmem:[#allocation3 + $0x70] sm:$0xff]
    %v176 = vld [vmem:[#allocation3 + $0x78] sm:$0xff]
    %v177 = vld [vmem:[#allocation3 + $0x80] sm:$0xff]
    %v178 = vld [vmem:[#allocation3 + $0x88] sm:$0xff]
    %v179 = vld [vmem:[#allocation3 + $0x90] sm:$0xff]
    %v180 = vld [vmem:[#allocation3 + $0x98] sm:$0xff]
    %v181 = vld [vmem:[#allocation3 + $0xa0] sm:$0xff]
    %v182 = vld [vmem:[#allocation3 + $0xa8] sm:$0xff]
    %v183 = vld [vmem:[#allocation3 + $0xb0] sm:$0xff]
    %v184 = vld [vmem:[#allocation3 + $0xb8] sm:$0xff]
    %v185 = vld [vmem:[#allocation3 + $0xc0] sm:$0xff]
    %v186 = vld [vmem:[#allocation3 + $0xc8] sm:$0xff]
    %v187 = vld [vmem:[#allocation3 + $0xd0] sm:$0xff]
    %v188 = vld [vmem:[#allocation3 + $0xd8] sm:$0xff]
    %v189 = vld [vmem:[#allocation3 + $0xe0] sm:$0xff]
    %v190 = vld [vmem:[#allocation3 + $0xe8] sm:$0xff]
    %v191 = vld [vmem:[#allocation3 + $0xf0] sm:$0xff]
    %v192 = vld [vmem:[#allocation3 + $0xf8] sm:$0xff]
    %v193 = vld [vmem:[#allocation3 + $0x100] sm:$0xff]
    %v194 = vld [vmem:[#allocation3 + $0x108] sm:$0xff]
    %v195 = vld [vmem:[#allocation3 + $0x110] sm:$0xff]
    %v196 = vld [vmem:[#allocation3 + $0x118] sm:$0xff]
    %v197 = vld [vmem:[#allocation3 + $0x120] sm:$0xff]
    %v198 = vld [vmem:[#allocation3 + $0x128] sm:$0xff]
    %v199 = vld [vmem:[#allocation3 + $0x130] sm:$0xff]
    %v200 = vld [vmem:[#allocation3 + $0x138] sm:$0xff]
    %v201 = vld [vmem:[#allocation3 + $0x140] sm:$0xff]
    %v202 = vld [vmem:[#allocation3 + $0x148] sm:$0xff]
    %v203 = vld [vmem:[#allocation3 + $0x150] sm:$0xff]
    %v204 = vld [vmem:[#allocation3 + $0x158] sm:$0xff]
    %v205 = vld [vmem:[#allocation3 + $0x160] sm:$0xff]
    %v206 = vld [vmem:[#allocation3 + $0x168] sm:$0xff]
    %v207 = vld [vmem:[#allocation3 + $0x170] sm:$0xff]
    %v208 = vld [vmem:[#allocation3 + $0x178] sm:$0xff]
    %v209 = vld [vmem:[%s6] sm:$0x7]
    %v211 = vperm.slane %v209, 0
    %v212 = vperm.slane %v209, 1
    %v213 = vperm.slane %v209, 2
    %217 = vmatpush.msra.mxu0 %v206
    %218 = vmatpush.msra.mxu0 %v203
    %219 = vmatpush.msra.mxu0 %v200
    %220 = vmatpush.msra.mxu0 %v197
    %221 = vmatpush.msra.mxu0 %v194
    %222 = vmatpush.msra.mxu0 %v191
    %223 = vmatpush.msra.mxu0 %v188
    %224 = vmatpush.msra.mxu0 %v185
    %225 = vmatpush.msra.mxu0 %v182
    %226 = vmatpush.msra.mxu0 %v179
    %227 = vmatpush.msra.mxu0 %v176
    %228 = vmatpush.msra.mxu0 %v173
    %229 = vmatpush.msra.mxu0 %v170
    %230 = vmatpush.msra.mxu0 %v167
    %231 = vmatpush.msra.mxu0 %v164
    %232 = vmatpush.msra.mxu0 %v161
    %233 = vmatmul.f32.gmra.mxu0 %v156
    %v234 = vpop.f32.mrf.mxu0
    %v235 = vadd.f32 %v211, %v234
    %236 = vmatmul.f32.gmra.mxu0 %v159
    %v237 = vpop.f32.mrf.mxu0
    %v238 = vadd.f32 %v211, %v237
    %239 = vdwg.mxu0
    %240 = vmatpush.msra.mxu0 %v207
    %241 = vmatpush.msra.mxu0 %v204
    %242 = vmatpush.msra.mxu0 %v201
    %243 = vmatpush.msra.mxu0 %v198
    %244 = vmatpush.msra.mxu0 %v195
    %245 = vmatpush.msra.mxu0 %v192
    %246 = vmatpush.msra.mxu0 %v189
    %247 = vmatpush.msra.mxu0 %v186
    %248 = vmatpush.msra.mxu0 %v183
    %249 = vmatpush.msra.mxu0 %v180
    %250 = vmatpush.msra.mxu0 %v177
    %251 = vmatpush.msra.mxu0 %v174
    %252 = vmatpush.msra.mxu0 %v171
    %253 = vmatpush.msra.mxu0 %v168
    %254 = vmatpush.msra.mxu0 %v165
    %255 = vmatpush.msra.mxu0 %v162
    %256 = vmatmul.f32.gmra.mxu0 %v156
    %v257 = vpop.f32.mrf.mxu0
    %v258 = vadd.f32 %v212, %v257
    %259 = vmatmul.f32.gmra.mxu0 %v159
    %v260 = vpop.f32.mrf.mxu0
    %v261 = vadd.f32 %v212, %v260
    %262 = vdwg.mxu0
    %263 = vmatpush.msra.mxu0 %v208
    %264 = vmatpush.msra.mxu0 %v205
    %265 = vmatpush.msra.mxu0 %v202
    %266 = vmatpush.msra.mxu0 %v199
    %267 = vmatpush.msra.mxu0 %v196
    %268 = vmatpush.msra.mxu0 %v193
    %269 = vmatpush.msra.mxu0 %v190
    %270 = vmatpush.msra.mxu0 %v187
    %271 = vmatpush.msra.mxu0 %v184
    %272 = vmatpush.msra.mxu0 %v181
    %273 = vmatpush.msra.mxu0 %v178
    %274 = vmatpush.msra.mxu0 %v175
    %275 = vmatpush.msra.mxu0 %v172
    %276 = vmatpush.msra.mxu0 %v169
    %277 = vmatpush.msra.mxu0 %v166
    %278 = vmatpush.msra.mxu0 %v163
    %279 = vmatmul.f32.gmra.mxu0 %v156
    %v280 = vpop.f32.mrf.mxu0
    %v281 = vadd.f32 %v213, %v280
    %282 = vmatmul.f32.gmra.mxu0 %v159
    %v283 = vpop.f32.mrf.mxu0
    %v284 = vadd.f32 %v213, %v283
    %285 = vdwg.mxu0
    %v286 = vld [vmem:[#allocation6] sm:$0xff]
    %v287 = vld [vmem:[#allocation6 + $0x8] sm:$0xff]
    %v288 = vld [vmem:[#allocation6 + $0x10] sm:$0xff]
    %v289 = vld [vmem:[#allocation6 + $0x18] sm:$0xff]
    %v290 = vld [vmem:[#allocation6 + $0x20] sm:$0xff]
    %v291 = vld [vmem:[#allocation6 + $0x28] sm:$0xff]
    %v292 = vld [vmem:[#allocation6 + $0x30] sm:$0xff]
    %v293 = vld [vmem:[#allocation6 + $0x38] sm:$0xff]
    %v294 = vld [vmem:[#allocation6 + $0x40] sm:$0xff]
    %v295 = vld [vmem:[#allocation6 + $0x48] sm:$0xff]
    %v296 = vld [vmem:[#allocation6 + $0x50] sm:$0xff]
    %v297 = vld [vmem:[#allocation6 + $0x58] sm:$0xff]
    %v298 = vld [vmem:[#allocation6 + $0x60] sm:$0xff]
    %v299 = vld [vmem:[#allocation6 + $0x68] sm:$0xff]
    %v300 = vld [vmem:[#allocation6 + $0x70] sm:$0xff]
    %v301 = vld [vmem:[#allocation6 + $0x78] sm:$0xff]
    %v302 = vld [vmem:[#allocation6 + $0x80] sm:$0xff]
    %v303 = vld [vmem:[#allocation6 + $0x88] sm:$0xff]
    %v304 = vld [vmem:[#allocation6 + $0x90] sm:$0xff]
    %v305 = vld [vmem:[#allocation6 + $0x98] sm:$0xff]
    %v306 = vld [vmem:[#allocation6 + $0xa0] sm:$0xff]
    %v307 = vld [vmem:[#allocation6 + $0xa8] sm:$0xff]
    %v308 = vld [vmem:[#allocation6 + $0xb0] sm:$0xff]
    %v309 = vld [vmem:[#allocation6 + $0xb8] sm:$0xff]
    %v310 = vld [vmem:[#allocation6 + $0xc0] sm:$0xff]
    %v311 = vld [vmem:[#allocation6 + $0xc8] sm:$0xff]
    %v312 = vld [vmem:[#allocation6 + $0xd0] sm:$0xff]
    %v313 = vld [vmem:[#allocation6 + $0xd8] sm:$0xff]
    %v314 = vld [vmem:[#allocation6 + $0xe0] sm:$0xff]
    %v315 = vld [vmem:[#allocation6 + $0xe8] sm:$0xff]
    %v316 = vld [vmem:[#allocation6 + $0xf0] sm:$0xff]
    %v317 = vld [vmem:[#allocation6 + $0xf8] sm:$0xff]
    %v318 = vld [vmem:[#allocation6 + $0x100] sm:$0xff]
    %v319 = vld [vmem:[#allocation6 + $0x108] sm:$0xff]
    %v320 = vld [vmem:[#allocation6 + $0x110] sm:$0xff]
    %v321 = vld [vmem:[#allocation6 + $0x118] sm:$0xff]
    %v322 = vld [vmem:[#allocation6 + $0x120] sm:$0xff]
    %v323 = vld [vmem:[#allocation6 + $0x128] sm:$0xff]
    %v324 = vld [vmem:[#allocation6 + $0x130] sm:$0xff]
    %v325 = vld [vmem:[#allocation6 + $0x138] sm:$0xff]
    %v326 = vld [vmem:[#allocation6 + $0x140] sm:$0xff]
    %v327 = vld [vmem:[#allocation6 + $0x148] sm:$0xff]
    %v328 = vld [vmem:[#allocation6 + $0x150] sm:$0xff]
    %v329 = vld [vmem:[#allocation6 + $0x158] sm:$0xff]
    %v330 = vld [vmem:[#allocation6 + $0x160] sm:$0xff]
    %v331 = vld [vmem:[#allocation6 + $0x168] sm:$0xff]
    %v332 = vld [vmem:[#allocation6 + $0x170] sm:$0xff]
    %v333 = vld [vmem:[#allocation6 + $0x178] sm:$0xff]
    %v334 = vld [vmem:[%s7] sm:$0x7]
    %v336 = vperm.slane %v334, 0
    %v337 = vperm.slane %v334, 1
    %v338 = vperm.slane %v334, 2
    %342 = vmatpush.msra.mxu0 %v331
    %343 = vmatpush.msra.mxu0 %v328
    %344 = vmatpush.msra.mxu0 %v325
    %345 = vmatpush.msra.mxu0 %v322
    %346 = vmatpush.msra.mxu0 %v319
    %347 = vmatpush.msra.mxu0 %v316
    %348 = vmatpush.msra.mxu0 %v313
    %349 = vmatpush.msra.mxu0 %v310
    %350 = vmatpush.msra.mxu0 %v307
    %351 = vmatpush.msra.mxu0 %v304
    %352 = vmatpush.msra.mxu0 %v301
    %353 = vmatpush.msra.mxu0 %v298
    %354 = vmatpush.msra.mxu0 %v295
    %355 = vmatpush.msra.mxu0 %v292
    %356 = vmatpush.msra.mxu0 %v289
    %357 = vmatpush.msra.mxu0 %v286
    %358 = vmatmul.f32.gmra.mxu0 0.0
    %v359 = vpop.f32.mrf.mxu0
    %v360 = vadd.f32 %v336, %v359
    %361 = vdwg.mxu0
    %362 = vmatpush.msra.mxu0 %v332
    %363 = vmatpush.msra.mxu0 %v329
    %364 = vmatpush.msra.mxu0 %v326
    %365 = vmatpush.msra.mxu0 %v323
    %366 = vmatpush.msra.mxu0 %v320
    %367 = vmatpush.msra.mxu0 %v317
    %368 = vmatpush.msra.mxu0 %v314
    %369 = vmatpush.msra.mxu0 %v311
    %370 = vmatpush.msra.mxu0 %v308
    %371 = vmatpush.msra.mxu0 %v305
    %372 = vmatpush.msra.mxu0 %v302
    %373 = vmatpush.msra.mxu0 %v299
    %374 = vmatpush.msra.mxu0 %v296
    %375 = vmatpush.msra.mxu0 %v293
    %376 = vmatpush.msra.mxu0 %v290
    %377 = vmatpush.msra.mxu0 %v287
    %378 = vmatmul.f32.gmra.mxu0 0.0
    %v379 = vpop.f32.mrf.mxu0
    %v380 = vadd.f32 %v337, %v379
    %381 = vdwg.mxu0
    %382 = vmatpush.msra.mxu0 %v333
    %383 = vmatpush.msra.mxu0 %v330
    %384 = vmatpush.msra.mxu0 %v327
    %385 = vmatpush.msra.mxu0 %v324
    %386 = vmatpush.msra.mxu0 %v321
    %387 = vmatpush.msra.mxu0 %v318
    %388 = vmatpush.msra.mxu0 %v315
    %389 = vmatpush.msra.mxu0 %v312
    %390 = vmatpush.msra.mxu0 %v309
    %391 = vmatpush.msra.mxu0 %v306
    %392 = vmatpush.msra.mxu0 %v303
    %393 = vmatpush.msra.mxu0 %v300
    %394 = vmatpush.msra.mxu0 %v297
    %395 = vmatpush.msra.mxu0 %v294
    %396 = vmatpush.msra.mxu0 %v291
    %397 = vmatpush.msra.mxu0 %v288
    %398 = vmatmul.f32.gmra.mxu0 0.0
    %v399 = vpop.f32.mrf.mxu0
    %v400 = vadd.f32 %v338, %v399
    %401 = vdwg.mxu0
    %v402 = vadd.f32 %v235, %v360
    %v403 = vxor.u32 %v402, 2147483648
    %v404 = vmul.f32 %v403, 1.442695
    %v405 = vpow.pop %v404
    %v406 = vadd.f32 %v405, 1.0
    %v407 = vrcp.pop %v406
    %v408 = vmul.f32 %v406, %v407
    %v409 = vsub.f32 1.0, %v408
    %v410 = vmul.f32 %v407, %v409
    %v411 = vadd.f32 %v407, %v410
    %vm412 = vweird.f32 %v406
    %vm413 = vweird.f32 %v407
    %vm414 = vmor %vm412, %vm413
    %v415 = vsel %vm414, %v407, %v411
    %v416 = vand.u32 2147483647, %v406
    %vm417 = vcmp.eq.f32.partialorder %v416, 8.507059e+37
    %v418 = vand.u32 %v406, 2147483648
    %v419 = vor.u32 1.1754944e-38, %v418
    %v420 = vsel %vm417, %v419, %v415
    %v421 = vmul.f32 1.0, %v420
    %v422 = vadd.f32 %v258, %v380
    %v423 = vxor.u32 %v422, 2147483648
    %v424 = vmul.f32 %v423, 1.442695
    %v425 = vpow.pop %v424
    %v426 = vadd.f32 %v425, 1.0
    %v427 = vrcp.pop %v426
    %v428 = vmul.f32 %v426, %v427
    %v429 = vsub.f32 1.0, %v428
    %v430 = vmul.f32 %v427, %v429
    %v431 = vadd.f32 %v427, %v430
    %vm432 = vweird.f32 %v426
    %vm433 = vweird.f32 %v427
    %vm434 = vmor %vm432, %vm433
    %v435 = vsel %vm434, %v427, %v431
    %v436 = vand.u32 2147483647, %v426
    %vm437 = vcmp.eq.f32.partialorder %v436, 8.507059e+37
    %v438 = vand.u32 %v426, 2147483648
    %v439 = vor.u32 1.1754944e-38, %v438
    %v440 = vsel %vm437, %v439, %v435
    %v441 = vmul.f32 1.0, %v440
    %v442 = vmul.f32 %v421, %v400
    %v443 = vadd.f32 %v281, %v442
    %v444 = vtanh.pop %v443
    %v445 = vsub.f32 1.0, %v441
    %v446 = vmul.f32 %v445, %v444
    %v447 = vmul.f32 %v441, 0.0
    %v448 = vadd.f32 %v446, %v447
    %449 = vst [vmem:[#allocation2] sm:$0x3] %v448
    %v450 = vld [vmem:[#allocation6] sm:$0xff]
    %v451 = vld [vmem:[#allocation6 + $0x8] sm:$0xff]
    %v452 = vld [vmem:[#allocation6 + $0x10] sm:$0xff]
    %v453 = vld [vmem:[#allocation6 + $0x18] sm:$0xff]
    %v454 = vld [vmem:[#allocation6 + $0x20] sm:$0xff]
    %v455 = vld [vmem:[#allocation6 + $0x28] sm:$0xff]
    %v456 = vld [vmem:[#allocation6 + $0x30] sm:$0xff]
    %v457 = vld [vmem:[#allocation6 + $0x38] sm:$0xff]
    %v458 = vld [vmem:[#allocation6 + $0x40] sm:$0xff]
    %v459 = vld [vmem:[#allocation6 + $0x48] sm:$0xff]
    %v460 = vld [vmem:[#allocation6 + $0x50] sm:$0xff]
    %v461 = vld [vmem:[#allocation6 + $0x58] sm:$0xff]
    %v462 = vld [vmem:[#allocation6 + $0x60] sm:$0xff]
    %v463 = vld [vmem:[#allocation6 + $0x68] sm:$0xff]
    %v464 = vld [vmem:[#allocation6 + $0x70] sm:$0xff]
    %v465 = vld [vmem:[#allocation6 + $0x78] sm:$0xff]
    %v466 = vld [vmem:[#allocation6 + $0x80] sm:$0xff]
    %v467 = vld [vmem:[#allocation6 + $0x88] sm:$0xff]
    %v468 = vld [vmem:[#allocation6 + $0x90] sm:$0xff]
    %v469 = vld [vmem:[#allocation6 + $0x98] sm:$0xff]
    %v470 = vld [vmem:[#allocation6 + $0xa0] sm:$0xff]
    %v471 = vld [vmem:[#allocation6 + $0xa8] sm:$0xff]
    %v472 = vld [vmem:[#allocation6 + $0xb0] sm:$0xff]
    %v473 = vld [vmem:[#allocation6 + $0xb8] sm:$0xff]
    %v474 = vld [vmem:[#allocation6 + $0xc0] sm:$0xff]
    %v475 = vld [vmem:[#allocation6 + $0xc8] sm:$0xff]
    %v476 = vld [vmem:[#allocation6 + $0xd0] sm:$0xff]
    %v477 = vld [vmem:[#allocation6 + $0xd8] sm:$0xff]
    %v478 = vld [vmem:[#allocation6 + $0xe0] sm:$0xff]
    %v479 = vld [vmem:[#allocation6 + $0xe8] sm:$0xff]
    %v480 = vld [vmem:[#allocation6 + $0xf0] sm:$0xff]
    %v481 = vld [vmem:[#allocation6 + $0xf8] sm:$0xff]
    %v482 = vld [vmem:[#allocation6 + $0x100] sm:$0xff]
    %v483 = vld [vmem:[#allocation6 + $0x108] sm:$0xff]
    %v484 = vld [vmem:[#allocation6 + $0x110] sm:$0xff]
    %v485 = vld [vmem:[#allocation6 + $0x118] sm:$0xff]
    %v486 = vld [vmem:[#allocation6 + $0x120] sm:$0xff]
    %v487 = vld [vmem:[#allocation6 + $0x128] sm:$0xff]
    %v488 = vld [vmem:[#allocation6 + $0x130] sm:$0xff]
    %v489 = vld [vmem:[#allocation6 + $0x138] sm:$0xff]
    %v490 = vld [vmem:[#allocation6 + $0x140] sm:$0xff]
    %v491 = vld [vmem:[#allocation6 + $0x148] sm:$0xff]
    %v492 = vld [vmem:[#allocation6 + $0x150] sm:$0xff]
    %v493 = vld [vmem:[#allocation6 + $0x158] sm:$0xff]
    %v494 = vld [vmem:[#allocation6 + $0x160] sm:$0xff]
    %v495 = vld [vmem:[#allocation6 + $0x168] sm:$0xff]
    %v496 = vld [vmem:[#allocation6 + $0x170] sm:$0xff]
    %v497 = vld [vmem:[#allocation6 + $0x178] sm:$0xff]
    %v498 = vld [vmem:[%s7] sm:$0x7]
    %v500 = vperm.slane %v498, 0
    %v501 = vperm.slane %v498, 1
    %v502 = vperm.slane %v498, 2
    %506 = vmatpush.msra.mxu0 %v495
    %507 = vmatpush.msra.mxu0 %v492
    %508 = vmatpush.msra.mxu0 %v489
    %509 = vmatpush.msra.mxu0 %v486
    %510 = vmatpush.msra.mxu0 %v483
    %511 = vmatpush.msra.mxu0 %v480
    %512 = vmatpush.msra.mxu0 %v477
    %513 = vmatpush.msra.mxu0 %v474
    %514 = vmatpush.msra.mxu0 %v471
    %515 = vmatpush.msra.mxu0 %v468
    %516 = vmatpush.msra.mxu0 %v465
    %517 = vmatpush.msra.mxu0 %v462
    %518 = vmatpush.msra.mxu0 %v459
    %519 = vmatpush.msra.mxu0 %v456
    %520 = vmatpush.msra.mxu0 %v453
    %521 = vmatpush.msra.mxu0 %v450
    %522 = vmatmul.f32.gmra.mxu0 %v448
    %v523 = vpop.f32.mrf.mxu0
    %v524 = vadd.f32 %v500, %v523
    %525 = vdwg.mxu0
    %526 = vmatpush.msra.mxu0 %v496
    %527 = vmatpush.msra.mxu0 %v493
    %528 = vmatpush.msra.mxu0 %v490
    %529 = vmatpush.msra.mxu0 %v487
    %530 = vmatpush.msra.mxu0 %v484
    %531 = vmatpush.msra.mxu0 %v481
    %532 = vmatpush.msra.mxu0 %v478
    %533 = vmatpush.msra.mxu0 %v475
    %534 = vmatpush.msra.mxu0 %v472
    %535 = vmatpush.msra.mxu0 %v469
    %536 = vmatpush.msra.mxu0 %v466
    %537 = vmatpush.msra.mxu0 %v463
    %538 = vmatpush.msra.mxu0 %v460
    %539 = vmatpush.msra.mxu0 %v457
    %540 = vmatpush.msra.mxu0 %v454
    %541 = vmatpush.msra.mxu0 %v451
    %542 = vmatmul.f32.gmra.mxu0 %v448
    %v543 = vpop.f32.mrf.mxu0
    %v544 = vadd.f32 %v501, %v543
    %545 = vdwg.mxu0
    %546 = vmatpush.msra.mxu0 %v497
    %547 = vmatpush.msra.mxu0 %v494
    %548 = vmatpush.msra.mxu0 %v491
    %549 = vmatpush.msra.mxu0 %v488
    %550 = vmatpush.msra.mxu0 %v485
    %551 = vmatpush.msra.mxu0 %v482
    %552 = vmatpush.msra.mxu0 %v479
    %553 = vmatpush.msra.mxu0 %v476
    %554 = vmatpush.msra.mxu0 %v473
    %555 = vmatpush.msra.mxu0 %v470
    %556 = vmatpush.msra.mxu0 %v467
    %557 = vmatpush.msra.mxu0 %v464
    %558 = vmatpush.msra.mxu0 %v461
    %559 = vmatpush.msra.mxu0 %v458
    %560 = vmatpush.msra.mxu0 %v455
    %561 = vmatpush.msra.mxu0 %v452
    %562 = vmatmul.f32.gmra.mxu0 %v448
    %v563 = vpop.f32.mrf.mxu0
    %v564 = vadd.f32 %v502, %v563
    %565 = vdwg.mxu0
    %v567 = vrot.slane %v524, 6
    %v569 = vadd.f32 %v235, %v567
    %v570 = vxor.u32 %v569, 2147483648
    %v571 = vmul.f32 %v570, 1.442695
    %v572 = vpow.pop %v571
    %v573 = vadd.f32 %v572, 1.0
    %v574 = vrcp.pop %v573
    %v575 = vmul.f32 %v573, %v574
    %v576 = vsub.f32 1.0, %v575
    %v577 = vmul.f32 %v574, %v576
    %v578 = vadd.f32 %v574, %v577
    %vm579 = vweird.f32 %v573
    %vm580 = vweird.f32 %v574
    %vm581 = vmor %vm579, %vm580
    %v582 = vsel %vm581, %v574, %v578
    %v583 = vand.u32 2147483647, %v573
    %vm584 = vcmp.eq.f32.partialorder %v583, 8.507059e+37
    %v585 = vand.u32 %v573, 2147483648
    %v586 = vor.u32 1.1754944e-38, %v585
    %v587 = vsel %vm584, %v586, %v582
    %v588 = vmul.f32 1.0, %v587
    %v590 = vrot.slane %v544, 6
    %v592 = vadd.f32 %v258, %v590
    %v593 = vxor.u32 %v592, 2147483648
    %v594 = vmul.f32 %v593, 1.442695
    %v595 = vpow.pop %v594
    %v596 = vadd.f32 %v595, 1.0
    %v597 = vrcp.pop %v596
    %v598 = vmul.f32 %v596, %v597
    %v599 = vsub.f32 1.0, %v598
    %v600 = vmul.f32 %v597, %v599
    %v601 = vadd.f32 %v597, %v600
    %vm602 = vweird.f32 %v596
    %vm603 = vweird.f32 %v597
    %vm604 = vmor %vm602, %vm603
    %v605 = vsel %vm604, %v597, %v601
    %v606 = vand.u32 2147483647, %v596
    %vm607 = vcmp.eq.f32.partialorder %v606, 8.507059e+37
    %v608 = vand.u32 %v596, 2147483648
    %v609 = vor.u32 1.1754944e-38, %v608
    %v610 = vsel %vm607, %v609, %v605
    %v611 = vmul.f32 1.0, %v610
    %v613 = vrot.slane %v564, 6
    %v615 = vmul.f32 %v588, %v613
    %v616 = vadd.f32 %v281, %v615
    %v617 = vtanh.pop %v616
    %v618 = vsub.f32 1.0, %v611
    %v619 = vmul.f32 %v618, %v617
    %v621 = vrot.slane %v448, 6
    %v623 = vmul.f32 %v611, %v621
    %v624 = vadd.f32 %v619, %v623
    %625 = vst [vmem:[#allocation2] sm:$0xc] %v624
    %v626 = vld [vmem:[#allocation6] sm:$0xff]
    %v627 = vld [vmem:[#allocation6 + $0x8] sm:$0xff]
    %v628 = vld [vmem:[#allocation6 + $0x10] sm:$0xff]
    %v629 = vld [vmem:[#allocation6 + $0x18] sm:$0xff]
    %v630 = vld [vmem:[#allocation6 + $0x20] sm:$0xff]
    %v631 = vld [vmem:[#allocation6 + $0x28] sm:$0xff]
    %v632 = vld [vmem:[#allocation6 + $0x30] sm:$0xff]
    %v633 = vld [vmem:[#allocation6 + $0x38] sm:$0xff]
    %v634 = vld [vmem:[#allocation6 + $0x40] sm:$0xff]
    %v635 = vld [vmem:[#allocation6 + $0x48] sm:$0xff]
    %v636 = vld [vmem:[#allocation6 + $0x50] sm:$0xff]
    %v637 = vld [vmem:[#allocation6 + $0x58] sm:$0xff]
    %v638 = vld [vmem:[#allocation6 + $0x60] sm:$0xff]
    %v639 = vld [vmem:[#allocation6 + $0x68] sm:$0xff]
    %v640 = vld [vmem:[#allocation6 + $0x70] sm:$0xff]
    %v641 = vld [vmem:[#allocation6 + $0x78] sm:$0xff]
    %v642 = vld [vmem:[#allocation6 + $0x80] sm:$0xff]
    %v643 = vld [vmem:[#allocation6 + $0x88] sm:$0xff]
    %v644 = vld [vmem:[#allocation6 + $0x90] sm:$0xff]
    %v645 = vld [vmem:[#allocation6 + $0x98] sm:$0xff]
    %v646 = vld [vmem:[#allocation6 + $0xa0] sm:$0xff]
    %v647 = vld [vmem:[#allocation6 + $0xa8] sm:$0xff]
    %v648 = vld [vmem:[#allocation6 + $0xb0] sm:$0xff]
    %v649 = vld [vmem:[#allocation6 + $0xb8] sm:$0xff]
    %v650 = vld [vmem:[#allocation6 + $0xc0] sm:$0xff]
    %v651 = vld [vmem:[#allocation6 + $0xc8] sm:$0xff]
    %v652 = vld [vmem:[#allocation6 + $0xd0] sm:$0xff]
    %v653 = vld [vmem:[#allocation6 + $0xd8] sm:$0xff]
    %v654 = vld [vmem:[#allocation6 + $0xe0] sm:$0xff]
    %v655 = vld [vmem:[#allocation6 + $0xe8] sm:$0xff]
    %v656 = vld [vmem:[#allocation6 + $0xf0] sm:$0xff]
    %v657 = vld [vmem:[#allocation6 + $0xf8] sm:$0xff]
    %v658 = vld [vmem:[#allocation6 + $0x100] sm:$0xff]
    %v659 = vld [vmem:[#allocation6 + $0x108] sm:$0xff]
    %v660 = vld [vmem:[#allocation6 + $0x110] sm:$0xff]
    %v661 = vld [vmem:[#allocation6 + $0x118] sm:$0xff]
    %v662 = vld [vmem:[#allocation6 + $0x120] sm:$0xff]
    %v663 = vld [vmem:[#allocation6 + $0x128] sm:$0xff]
    %v664 = vld [vmem:[#allocation6 + $0x130] sm:$0xff]
    %v665 = vld [vmem:[#allocation6 + $0x138] sm:$0xff]
    %v666 = vld [vmem:[#allocation6 + $0x140] sm:$0xff]
    %v667 = vld [vmem:[#allocation6 + $0x148] sm:$0xff]
    %v668 = vld [vmem:[#allocation6 + $0x150] sm:$0xff]
    %v669 = vld [vmem:[#allocation6 + $0x158] sm:$0xff]
    %v670 = vld [vmem:[#allocation6 + $0x160] sm:$0xff]
    %v671 = vld [vmem:[#allocation6 + $0x168] sm:$0xff]
    %v672 = vld [vmem:[#allocation6 + $0x170] sm:$0xff]
    %v673 = vld [vmem:[#allocation6 + $0x178] sm:$0xff]
    %v674 = vld [vmem:[%s7] sm:$0x7]
    %v676 = vperm.slane %v674, 0
    %v677 = vperm.slane %v674, 1
    %v678 = vperm.slane %v674, 2
    %v683 = vrot.slane %v624, 2
    %685 = vmatpush.msra.mxu0 %v671
    %686 = vmatpush.msra.mxu0 %v668
    %687 = vmatpush.msra.mxu0 %v665
    %688 = vmatpush.msra.mxu0 %v662
    %689 = vmatpush.msra.mxu0 %v659
    %690 = vmatpush.msra.mxu0 %v656
    %691 = vmatpush.msra.mxu0 %v653
    %692 = vmatpush.msra.mxu0 %v650
    %693 = vmatpush.msra.mxu0 %v647
    %694 = vmatpush.msra.mxu0 %v644
    %695 = vmatpush.msra.mxu0 %v641
    %696 = vmatpush.msra.mxu0 %v638
    %697 = vmatpush.msra.mxu0 %v635
    %698 = vmatpush.msra.mxu0 %v632
    %699 = vmatpush.msra.mxu0 %v629
    %700 = vmatpush.msra.mxu0 %v626
    %701 = vmatmul.f32.gmra.mxu0 %v683
    %v702 = vpop.f32.mrf.mxu0
    %v703 = vadd.f32 %v676, %v702
    %704 = vdwg.mxu0
    %705 = vmatpush.msra.mxu0 %v672
    %706 = vmatpush.msra.mxu0 %v669
    %707 = vmatpush.msra.mxu0 %v666
    %708 = vmatpush.msra.mxu0 %v663
    %709 = vmatpush.msra.mxu0 %v660
    %710 = vmatpush.msra.mxu0 %v657
    %711 = vmatpush.msra.mxu0 %v654
    %712 = vmatpush.msra.mxu0 %v651
    %713 = vmatpush.msra.mxu0 %v648
    %714 = vmatpush.msra.mxu0 %v645
    %715 = vmatpush.msra.mxu0 %v642
    %716 = vmatpush.msra.mxu0 %v639
    %717 = vmatpush.msra.mxu0 %v636
    %718 = vmatpush.msra.mxu0 %v633
    %719 = vmatpush.msra.mxu0 %v630
    %720 = vmatpush.msra.mxu0 %v627
    %721 = vmatmul.f32.gmra.mxu0 %v683
    %v722 = vpop.f32.mrf.mxu0
    %v723 = vadd.f32 %v677, %v722
    %724 = vdwg.mxu0
    %725 = vmatpush.msra.mxu0 %v673
    %726 = vmatpush.msra.mxu0 %v670
    %727 = vmatpush.msra.mxu0 %v667
    %728 = vmatpush.msra.mxu0 %v664
    %729 = vmatpush.msra.mxu0 %v661
    %730 = vmatpush.msra.mxu0 %v658
    %731 = vmatpush.msra.mxu0 %v655
    %732 = vmatpush.msra.mxu0 %v652
    %733 = vmatpush.msra.mxu0 %v649
    %734 = vmatpush.msra.mxu0 %v646
    %735 = vmatpush.msra.mxu0 %v643
    %736 = vmatpush.msra.mxu0 %v640
    %737 = vmatpush.msra.mxu0 %v637
    %738 = vmatpush.msra.mxu0 %v634
    %739 = vmatpush.msra.mxu0 %v631
    %740 = vmatpush.msra.mxu0 %v628
    %741 = vmatmul.f32.gmra.mxu0 %v683
    %v742 = vpop.f32.mrf.mxu0
    %v743 = vadd.f32 %v678, %v742
    %744 = vdwg.mxu0
    %v746 = vrot.slane %v703, 4
    %v748 = vadd.f32 %v235, %v746
    %v749 = vxor.u32 %v748, 2147483648
    %v750 = vmul.f32 %v749, 1.442695
    %v751 = vpow.pop %v750
    %v752 = vadd.f32 %v751, 1.0
    %v753 = vrcp.pop %v752
    %v754 = vmul.f32 %v752, %v753
    %v755 = vsub.f32 1.0, %v754
    %v756 = vmul.f32 %v753, %v755
    %v757 = vadd.f32 %v753, %v756
    %vm758 = vweird.f32 %v752
    %vm759 = vweird.f32 %v753
    %vm760 = vmor %vm758, %vm759
    %v761 = vsel %vm760, %v753, %v757
    %v762 = vand.u32 2147483647, %v752
    %vm763 = vcmp.eq.f32.partialorder %v762, 8.507059e+37
    %v764 = vand.u32 %v752, 2147483648
    %v765 = vor.u32 1.1754944e-38, %v764
    %v766 = vsel %vm763, %v765, %v761
    %v767 = vmul.f32 1.0, %v766
    %v769 = vrot.slane %v723, 4
    %v771 = vadd.f32 %v258, %v769
    %v772 = vxor.u32 %v771, 2147483648
    %v773 = vmul.f32 %v772, 1.442695
    %v774 = vpow.pop %v773
    %v775 = vadd.f32 %v774, 1.0
    %v776 = vrcp.pop %v775
    %v777 = vmul.f32 %v775, %v776
    %v778 = vsub.f32 1.0, %v777
    %v779 = vmul.f32 %v776, %v778
    %v780 = vadd.f32 %v776, %v779
    %vm781 = vweird.f32 %v775
    %vm782 = vweird.f32 %v776
    %vm783 = vmor %vm781, %vm782
    %v784 = vsel %vm783, %v776, %v780
    %v785 = vand.u32 2147483647, %v775
    %vm786 = vcmp.eq.f32.partialorder %v785, 8.507059e+37
    %v787 = vand.u32 %v775, 2147483648
    %v788 = vor.u32 1.1754944e-38, %v787
    %v789 = vsel %vm786, %v788, %v784
    %v790 = vmul.f32 1.0, %v789
    %v792 = vrot.slane %v743, 4
    %v794 = vmul.f32 %v767, %v792
    %v795 = vadd.f32 %v281, %v794
    %v796 = vtanh.pop %v795
    %v797 = vsub.f32 1.0, %v790
    %v798 = vmul.f32 %v797, %v796
    %v799 = vrot.slane %v624, 6
    %v801 = vmul.f32 %v790, %v799
    %v802 = vadd.f32 %v798, %v801
    %803 = vst [vmem:[#allocation2] sm:$0x30] %v802
    %v804 = vld [vmem:[#allocation6] sm:$0xff]
    %v805 = vld [vmem:[#allocation6 + $0x8] sm:$0xff]
    %v806 = vld [vmem:[#allocation6 + $0x10] sm:$0xff]
    %v807 = vld [vmem:[#allocation6 + $0x18] sm:$0xff]
    %v808 = vld [vmem:[#allocation6 + $0x20] sm:$0xff]
    %v809 = vld [vmem:[#allocation6 + $0x28] sm:$0xff]
    %v810 = vld [vmem:[#allocation6 + $0x30] sm:$0xff]
    %v811 = vld [vmem:[#allocation6 + $0x38] sm:$0xff]
    %v812 = vld [vmem:[#allocation6 + $0x40] sm:$0xff]
    %v813 = vld [vmem:[#allocation6 + $0x48] sm:$0xff]
    %v814 = vld [vmem:[#allocation6 + $0x50] sm:$0xff]
    %v815 = vld [vmem:[#allocation6 + $0x58] sm:$0xff]
    %v816 = vld [vmem:[#allocation6 + $0x60] sm:$0xff]
    %v817 = vld [vmem:[#allocation6 + $0x68] sm:$0xff]
    %v818 = vld [vmem:[#allocation6 + $0x70] sm:$0xff]
    %v819 = vld [vmem:[#allocation6 + $0x78] sm:$0xff]
    %v820 = vld [vmem:[#allocation6 + $0x80] sm:$0xff]
    %v821 = vld [vmem:[#allocation6 + $0x88] sm:$0xff]
    %v822 = vld [vmem:[#allocation6 + $0x90] sm:$0xff]
    %v823 = vld [vmem:[#allocation6 + $0x98] sm:$0xff]
    %v824 = vld [vmem:[#allocation6 + $0xa0] sm:$0xff]
    %v825 = vld [vmem:[#allocation6 + $0xa8] sm:$0xff]
    %v826 = vld [vmem:[#allocation6 + $0xb0] sm:$0xff]
    %v827 = vld [vmem:[#allocation6 + $0xb8] sm:$0xff]
    %v828 = vld [vmem:[#allocation6 + $0xc0] sm:$0xff]
    %v829 = vld [vmem:[#allocation6 + $0xc8] sm:$0xff]
    %v830 = vld [vmem:[#allocation6 + $0xd0] sm:$0xff]
    %v831 = vld [vmem:[#allocation6 + $0xd8] sm:$0xff]
    %v832 = vld [vmem:[#allocation6 + $0xe0] sm:$0xff]
    %v833 = vld [vmem:[#allocation6 + $0xe8] sm:$0xff]
    %v834 = vld [vmem:[#allocation6 + $0xf0] sm:$0xff]
    %v835 = vld [vmem:[#allocation6 + $0xf8] sm:$0xff]
    %v836 = vld [vmem:[#allocation6 + $0x100] sm:$0xff]
    %v837 = vld [vmem:[#allocation6 + $0x108] sm:$0xff]
    %v838 = vld [vmem:[#allocation6 + $0x110] sm:$0xff]
    %v839 = vld [vmem:[#allocation6 + $0x118] sm:$0xff]
    %v840 = vld [vmem:[#allocation6 + $0x120] sm:$0xff]
    %v841 = vld [vmem:[#allocation6 + $0x128] sm:$0xff]
    %v842 = vld [vmem:[#allocation6 + $0x130] sm:$0xff]
    %v843 = vld [vmem:[#allocation6 + $0x138] sm:$0xff]
    %v844 = vld [vmem:[#allocation6 + $0x140] sm:$0xff]
    %v845 = vld [vmem:[#allocation6 + $0x148] sm:$0xff]
    %v846 = vld [vmem:[#allocation6 + $0x150] sm:$0xff]
    %v847 = vld [vmem:[#allocation6 + $0x158] sm:$0xff]
    %v848 = vld [vmem:[#allocation6 + $0x160] sm:$0xff]
    %v849 = vld [vmem:[#allocation6 + $0x168] sm:$0xff]
    %v850 = vld [vmem:[#allocation6 + $0x170] sm:$0xff]
    %v851 = vld [vmem:[#allocation6 + $0x178] sm:$0xff]
    %v852 = vld [vmem:[%s7] sm:$0x7]
    %v854 = vperm.slane %v852, 0
    %v855 = vperm.slane %v852, 1
    %v856 = vperm.slane %v852, 2
    %v861 = vrot.slane %v802, 4
    %863 = vmatpush.msra.mxu0 %v849
    %864 = vmatpush.msra.mxu0 %v846
    %865 = vmatpush.msra.mxu0 %v843
    %866 = vmatpush.msra.mxu0 %v840
    %867 = vmatpush.msra.mxu0 %v837
    %868 = vmatpush.msra.mxu0 %v834
    %869 = vmatpush.msra.mxu0 %v831
    %870 = vmatpush.msra.mxu0 %v828
    %871 = vmatpush.msra.mxu0 %v825
    %872 = vmatpush.msra.mxu0 %v822
    %873 = vmatpush.msra.mxu0 %v819
    %874 = vmatpush.msra.mxu0 %v816
    %875 = vmatpush.msra.mxu0 %v813
    %876 = vmatpush.msra.mxu0 %v810
    %877 = vmatpush.msra.mxu0 %v807
    %878 = vmatpush.msra.mxu0 %v804
    %879 = vmatmul.f32.gmra.mxu0 %v861
    %v880 = vpop.f32.mrf.mxu0
    %v881 = vadd.f32 %v854, %v880
    %882 = vdwg.mxu0
    %883 = vmatpush.msra.mxu0 %v850
    %884 = vmatpush.msra.mxu0 %v847
    %885 = vmatpush.msra.mxu0 %v844
    %886 = vmatpush.msra.mxu0 %v841
    %887 = vmatpush.msra.mxu0 %v838
    %888 = vmatpush.msra.mxu0 %v835
    %889 = vmatpush.msra.mxu0 %v832
    %890 = vmatpush.msra.mxu0 %v829
    %891 = vmatpush.msra.mxu0 %v826
    %892 = vmatpush.msra.mxu0 %v823
    %893 = vmatpush.msra.mxu0 %v820
    %894 = vmatpush.msra.mxu0 %v817
    %895 = vmatpush.msra.mxu0 %v814
    %896 = vmatpush.msra.mxu0 %v811
    %897 = vmatpush.msra.mxu0 %v808
    %898 = vmatpush.msra.mxu0 %v805
    %899 = vmatmul.f32.gmra.mxu0 %v861
    %v900 = vpop.f32.mrf.mxu0
    %v901 = vadd.f32 %v855, %v900
    %902 = vdwg.mxu0
    %903 = vmatpush.msra.mxu0 %v851
    %904 = vmatpush.msra.mxu0 %v848
    %905 = vmatpush.msra.mxu0 %v845
    %906 = vmatpush.msra.mxu0 %v842
    %907 = vmatpush.msra.mxu0 %v839
    %908 = vmatpush.msra.mxu0 %v836
    %909 = vmatpush.msra.mxu0 %v833
    %910 = vmatpush.msra.mxu0 %v830
    %911 = vmatpush.msra.mxu0 %v827
    %912 = vmatpush.msra.mxu0 %v824
    %913 = vmatpush.msra.mxu0 %v821
    %914 = vmatpush.msra.mxu0 %v818
    %915 = vmatpush.msra.mxu0 %v815
    %916 = vmatpush.msra.mxu0 %v812
    %917 = vmatpush.msra.mxu0 %v809
    %918 = vmatpush.msra.mxu0 %v806
    %919 = vmatmul.f32.gmra.mxu0 %v861
    %v920 = vpop.f32.mrf.mxu0
    %v921 = vadd.f32 %v856, %v920
    %922 = vdwg.mxu0
    %v924 = vrot.slane %v881, 2
    %v926 = vadd.f32 %v235, %v924
    %v927 = vxor.u32 %v926, 2147483648
    %v928 = vmul.f32 %v927, 1.442695
    %v929 = vpow.pop %v928
    %v930 = vadd.f32 %v929, 1.0
    %v931 = vrcp.pop %v930
    %v932 = vmul.f32 %v930, %v931
    %v933 = vsub.f32 1.0, %v932
    %v934 = vmul.f32 %v931, %v933
    %v935 = vadd.f32 %v931, %v934
    %vm936 = vweird.f32 %v930
    %vm937 = vweird.f32 %v931
    %vm938 = vmor %vm936, %vm937
    %v939 = vsel %vm938, %v931, %v935
    %v940 = vand.u32 2147483647, %v930
    %vm941 = vcmp.eq.f32.partialorder %v940, 8.507059e+37
    %v942 = vand.u32 %v930, 2147483648
    %v943 = vor.u32 1.1754944e-38, %v942
    %v944 = vsel %vm941, %v943, %v939
    %v945 = vmul.f32 1.0, %v944
    %v947 = vrot.slane %v901, 2
    %v949 = vadd.f32 %v258, %v947
    %v950 = vxor.u32 %v949, 2147483648
    %v951 = vmul.f32 %v950, 1.442695
    %v952 = vpow.pop %v951
    %v953 = vadd.f32 %v952, 1.0
    %v954 = vrcp.pop %v953
    %v955 = vmul.f32 %v953, %v954
    %v956 = vsub.f32 1.0, %v955
    %v957 = vmul.f32 %v954, %v956
    %v958 = vadd.f32 %v954, %v957
    %vm959 = vweird.f32 %v953
    %vm960 = vweird.f32 %v954
    %vm961 = vmor %vm959, %vm960
    %v962 = vsel %vm961, %v954, %v958
    %v963 = vand.u32 2147483647, %v953
    %vm964 = vcmp.eq.f32.partialorder %v963, 8.507059e+37
    %v965 = vand.u32 %v953, 2147483648
    %v966 = vor.u32 1.1754944e-38, %v965
    %v967 = vsel %vm964, %v966, %v962
    %v968 = vmul.f32 1.0, %v967
    %v970 = vrot.slane %v921, 2
    %v972 = vmul.f32 %v945, %v970
    %v973 = vadd.f32 %v281, %v972
    %v974 = vtanh.pop %v973
    %v975 = vsub.f32 1.0, %v968
    %v976 = vmul.f32 %v975, %v974
    %v977 = vrot.slane %v802, 6
    %v979 = vmul.f32 %v968, %v977
    %v980 = vadd.f32 %v976, %v979
    %981 = vst [vmem:[#allocation2] sm:$0xc0] %v980
    %v982 = vld [vmem:[#allocation6] sm:$0xff]
    %v983 = vld [vmem:[#allocation6 + $0x8] sm:$0xff]
    %v984 = vld [vmem:[#allocation6 + $0x10] sm:$0xff]
    %v985 = vld [vmem:[#allocation6 + $0x18] sm:$0xff]
    %v986 = vld [vmem:[#allocation6 + $0x20] sm:$0xff]
    %v987 = vld [vmem:[#allocation6 + $0x28] sm:$0xff]
    %v988 = vld [vmem:[#allocation6 + $0x30] sm:$0xff]
    %v989 = vld [vmem:[#allocation6 + $0x38] sm:$0xff]
    %v990 = vld [vmem:[#allocation6 + $0x40] sm:$0xff]
    %v991 = vld [vmem:[#allocation6 + $0x48] sm:$0xff]
    %v992 = vld [vmem:[#allocation6 + $0x50] sm:$0xff]
    %v993 = vld [vmem:[#allocation6 + $0x58] sm:$0xff]
    %v994 = vld [vmem:[#allocation6 + $0x60] sm:$0xff]
    %v995 = vld [vmem:[#allocation6 + $0x68] sm:$0xff]
    %v996 = vld [vmem:[#allocation6 + $0x70] sm:$0xff]
    %v997 = vld [vmem:[#allocation6 + $0x78] sm:$0xff]
    %v998 = vld [vmem:[#allocation6 + $0x80] sm:$0xff]
    %v999 = vld [vmem:[#allocation6 + $0x88] sm:$0xff]
    %v1000 = vld [vmem:[#allocation6 + $0x90] sm:$0xff]
    %v1001 = vld [vmem:[#allocation6 + $0x98] sm:$0xff]
    %v1002 = vld [vmem:[#allocation6 + $0xa0] sm:$0xff]
    %v1003 = vld [vmem:[#allocation6 + $0xa8] sm:$0xff]
    %v1004 = vld [vmem:[#allocation6 + $0xb0] sm:$0xff]
    %v1005 = vld [vmem:[#allocation6 + $0xb8] sm:$0xff]
    %v1006 = vld [vmem:[#allocation6 + $0xc0] sm:$0xff]
    %v1007 = vld [vmem:[#allocation6 + $0xc8] sm:$0xff]
    %v1008 = vld [vmem:[#allocation6 + $0xd0] sm:$0xff]
    %v1009 = vld [vmem:[#allocation6 + $0xd8] sm:$0xff]
    %v1010 = vld [vmem:[#allocation6 + $0xe0] sm:$0xff]
    %v1011 = vld [vmem:[#allocation6 + $0xe8] sm:$0xff]
    %v1012 = vld [vmem:[#allocation6 + $0xf0] sm:$0xff]
    %v1013 = vld [vmem:[#allocation6 + $0xf8] sm:$0xff]
    %v1014 = vld [vmem:[#allocation6 + $0x100] sm:$0xff]
    %v1015 = vld [vmem:[#allocation6 + $0x108] sm:$0xff]
    %v1016 = vld [vmem:[#allocation6 + $0x110] sm:$0xff]
    %v1017 = vld [vmem:[#allocation6 + $0x118] sm:$0xff]
    %v1018 = vld [vmem:[#allocation6 + $0x120] sm:$0xff]
    %v1019 = vld [vmem:[#allocation6 + $0x128] sm:$0xff]
    %v1020 = vld [vmem:[#allocation6 + $0x130] sm:$0xff]
    %v1021 = vld [vmem:[#allocation6 + $0x138] sm:$0xff]
    %v1022 = vld [vmem:[#allocation6 + $0x140] sm:$0xff]
    %v1023 = vld [vmem:[#allocation6 + $0x148] sm:$0xff]
    %v1024 = vld [vmem:[#allocation6 + $0x150] sm:$0xff]
    %v1025 = vld [vmem:[#allocation6 + $0x158] sm:$0xff]
    %v1026 = vld [vmem:[#allocation6 + $0x160] sm:$0xff]
    %v1027 = vld [vmem:[#allocation6 + $0x168] sm:$0xff]
    %v1028 = vld [vmem:[#allocation6 + $0x170] sm:$0xff]
    %v1029 = vld [vmem:[#allocation6 + $0x178] sm:$0xff]
    %v1030 = vld [vmem:[%s7] sm:$0x7]
    %v1032 = vperm.slane %v1030, 0
    %v1033 = vperm.slane %v1030, 1
    %v1034 = vperm.slane %v1030, 2
    %v1039 = vrot.slane %v980, 6
    %1041 = vmatpush.msra.mxu0 %v1027
    %1042 = vmatpush.msra.mxu0 %v1024
    %1043 = vmatpush.msra.mxu0 %v1021
    %1044 = vmatpush.msra.mxu0 %v1018
    %1045 = vmatpush.msra.mxu0 %v1015
    %1046 = vmatpush.msra.mxu0 %v1012
    %1047 = vmatpush.msra.mxu0 %v1009
    %1048 = vmatpush.msra.mxu0 %v1006
    %1049 = vmatpush.msra.mxu0 %v1003
    %1050 = vmatpush.msra.mxu0 %v1000
    %1051 = vmatpush.msra.mxu0 %v997
    %1052 = vmatpush.msra.mxu0 %v994
    %1053 = vmatpush.msra.mxu0 %v991
    %1054 = vmatpush.msra.mxu0 %v988
    %1055 = vmatpush.msra.mxu0 %v985
    %1056 = vmatpush.msra.mxu0 %v982
    %1057 = vmatmul.f32.gmra.mxu0 %v1039
    %v1058 = vpop.f32.mrf.mxu0
    %v1059 = vadd.f32 %v1032, %v1058
    %1060 = vdwg.mxu0
    %1061 = vmatpush.msra.mxu0 %v1028
    %1062 = vmatpush.msra.mxu0 %v1025
    %1063 = vmatpush.msra.mxu0 %v1022
    %1064 = vmatpush.msra.mxu0 %v1019
    %1065 = vmatpush.msra.mxu0 %v1016
    %1066 = vmatpush.msra.mxu0 %v1013
    %1067 = vmatpush.msra.mxu0 %v1010
    %1068 = vmatpush.msra.mxu0 %v1007
    %1069 = vmatpush.msra.mxu0 %v1004
    %1070 = vmatpush.msra.mxu0 %v1001
    %1071 = vmatpush.msra.mxu0 %v998
    %1072 = vmatpush.msra.mxu0 %v995
    %1073 = vmatpush.msra.mxu0 %v992
    %1074 = vmatpush.msra.mxu0 %v989
    %1075 = vmatpush.msra.mxu0 %v986
    %1076 = vmatpush.msra.mxu0 %v983
    %1077 = vmatmul.f32.gmra.mxu0 %v1039
    %v1078 = vpop.f32.mrf.mxu0
    %v1079 = vadd.f32 %v1033, %v1078
    %1080 = vdwg.mxu0
    %1081 = vmatpush.msra.mxu0 %v1029
    %1082 = vmatpush.msra.mxu0 %v1026
    %1083 = vmatpush.msra.mxu0 %v1023
    %1084 = vmatpush.msra.mxu0 %v1020
    %1085 = vmatpush.msra.mxu0 %v1017
    %1086 = vmatpush.msra.mxu0 %v1014
    %1087 = vmatpush.msra.mxu0 %v1011
    %1088 = vmatpush.msra.mxu0 %v1008
    %1089 = vmatpush.msra.mxu0 %v1005
    %1090 = vmatpush.msra.mxu0 %v1002
    %1091 = vmatpush.msra.mxu0 %v999
    %1092 = vmatpush.msra.mxu0 %v996
    %1093 = vmatpush.msra.mxu0 %v993
    %1094 = vmatpush.msra.mxu0 %v990
    %1095 = vmatpush.msra.mxu0 %v987
    %1096 = vmatpush.msra.mxu0 %v984
    %1097 = vmatmul.f32.gmra.mxu0 %v1039
    %v1098 = vpop.f32.mrf.mxu0
    %v1099 = vadd.f32 %v1034, %v1098
    %1100 = vdwg.mxu0
    %v1101 = vadd.f32 %v238, %v1059
    %v1102 = vxor.u32 %v1101, 2147483648
    %v1103 = vmul.f32 %v1102, 1.442695
    %v1104 = vpow.pop %v1103
    %v1105 = vadd.f32 %v1104, 1.0
    %v1106 = vrcp.pop %v1105
    %v1107 = vmul.f32 %v1105, %v1106
    %v1108 = vsub.f32 1.0, %v1107
    %v1109 = vmul.f32 %v1106, %v1108
    %v1110 = vadd.f32 %v1106, %v1109
    %vm1111 = vweird.f32 %v1105
    %vm1112 = vweird.f32 %v1106
    %vm1113 = vmor %vm1111, %vm1112
    %v1114 = vsel %vm1113, %v1106, %v1110
    %v1115 = vand.u32 2147483647, %v1105
    %vm1116 = vcmp.eq.f32.partialorder %v1115, 8.507059e+37
    %v1117 = vand.u32 %v1105, 2147483648
    %v1118 = vor.u32 1.1754944e-38, %v1117
    %v1119 = vsel %vm1116, %v1118, %v1114
    %v1120 = vmul.f32 1.0, %v1119
    %v1121 = vadd.f32 %v261, %v1079
    %v1122 = vxor.u32 %v1121, 2147483648
    %v1123 = vmul.f32 %v1122, 1.442695
    %v1124 = vpow.pop %v1123
    %v1125 = vadd.f32 %v1124, 1.0
    %v1126 = vrcp.pop %v1125
    %v1127 = vmul.f32 %v1125, %v1126
    %v1128 = vsub.f32 1.0, %v1127
    %v1129 = vmul.f32 %v1126, %v1128
    %v1130 = vadd.f32 %v1126, %v1129
    %vm1131 = vweird.f32 %v1125
    %vm1132 = vweird.f32 %v1126
    %vm1133 = vmor %vm1131, %vm1132
    %v1134 = vsel %vm1133, %v1126, %v1130
    %v1135 = vand.u32 2147483647, %v1125
    %vm1136 = vcmp.eq.f32.partialorder %v1135, 8.507059e+37
    %v1137 = vand.u32 %v1125, 2147483648
    %v1138 = vor.u32 1.1754944e-38, %v1137
    %v1139 = vsel %vm1136, %v1138, %v1134
    %v1140 = vmul.f32 1.0, %v1139
    %v1141 = vmul.f32 %v1120, %v1099
    %v1142 = vadd.f32 %v284, %v1141
    %v1143 = vtanh.pop %v1142
    %v1144 = vsub.f32 1.0, %v1140
    %v1145 = vmul.f32 %v1144, %v1143
    %v1146 = vmul.f32 %v1140, %v1039
    %v1147 = vadd.f32 %v1145, %v1146
    %1148 = vst [vmem:[#allocation2 + $0x8] sm:$0x3] %v1147
    %v1149 = vld [vmem:[#allocation2] sm:$0xff]
    %v1150 = vld [vmem:[#allocation2 + $0x8] sm:$0x3]
    %1151 = vst [vmem:[%s17] sm:$0xff] %v1149
    %1152 = vst [vmem:[%s17 + $0x8] sm:$0x3] %v1150
    %1153 = vadd.xlane.f32.xlu0 %v1149
    %v1154 = vpop.xlane.xlu0 %1153
    %vm1155 = vcmask 1041408
    %v1156 = vsel %vm1155, %v1150, 0.0
    %1157 = vadd.xlane.f32.xlu0 %v1156
    %v1158 = vpop.xlane.xlu0 %1157
    %v1159 = vrcp.pop 128.0
    %v1160 = vmul.f32 128.0, %v1159
    %v1161 = vsub.f32 1.0, %v1160
    %v1162 = vmul.f32 %v1159, %v1161
    %v1163 = vadd.f32 %v1159, %v1162
    %vm1164 = vweird.f32 %v1159
    %v1165 = vsel %vm1164, %v1159, %v1163
    %v1166 = vmul.f32 %v1154, %v1165
    %v1167 = vmul.f32 %v1158, %v1165
    %v1168 = vsub.f32 %v1149, %v1166
    %v1169 = vsub.f32 %v1150, %v1167
    %v1170 = vmul.f32 %v1168, %v1168
    %v1171 = vmul.f32 %v1169, %v1169
    %1172 = vadd.xlane.f32.xlu0 %v1170
    %v1173 = vpop.xlane.xlu0 %1172
    %v1174 = vsel %vm1155, %v1171, 0.0
    %1175 = vadd.xlane.f32.xlu0 %v1174
    %v1176 = vpop.xlane.xlu0 %1175
    %v1177 = vmul.f32 %v1173, %v1165
    %v1178 = vmul.f32 %v1176, %v1165
    %v1179 = vadd.f32 %v1177, 1e-05
    %v1180 = vadd.f32 %v1178, 1e-05
    %v1181 = vrsqrt.pop %v1179
    %v1182 = vmul.f32 %v1181, %v1179
    %v1183 = vmul.f32 %v1182, %v1181
    %v1184 = vmul.f32 0.5, %v1183
    %v1185 = vsub.f32 1.5, %v1184
    %v1186 = vmul.f32 %v1181, %v1185
    %vm1187 = vweird.f32 %v1179
    %vm1188 = vweird.f32 %v1181
    %vm1189 = vmor %vm1187, %vm1188
    %v1190 = vsel %vm1189, %v1181, %v1186
    %v1191 = vrsqrt.pop %v1180
    %v1192 = vmul.f32 %v1191, %v1180
    %v1193 = vmul.f32 %v1192, %v1191
    %v1194 = vmul.f32 0.5, %v1193
    %v1195 = vsub.f32 1.5, %v1194
    %v1196 = vmul.f32 %v1191, %v1195
    %vm1197 = vweird.f32 %v1180
    %vm1198 = vweird.f32 %v1191
    %vm1199 = vmor %vm1197, %vm1198
    %v1200 = vsel %vm1199, %v1191, %v1196
    %v1201 = vmul.f32 %v1168, %v1190
    %v1202 = vmul.f32 %v1169, %v1200
    %v1203 = vld [vmem:[%s8] sm:$0x1]
    %v1205 = vperm.slane %v1203, 0
    %v1207 = vmul.f32 %v1201, %v1205
    %v1208 = vmul.f32 %v1202, %v1205
    %v1209 = vld [vmem:[%s9] sm:$0x1]
    %v1211 = vperm.slane %v1209, 0
    %v1213 = vadd.f32 %v1207, %v1211
    %v1214 = vadd.f32 %v1208, %v1211
    %v1215 = vmax.f32 %v1213, 0.0
    %v1216 = vmax.f32 %v1214, 0.0
    %v1217 = vld [vmem:[#allocation8] sm:$0xff]
    %v1218 = vld [vmem:[#allocation8 + $0x8] sm:$0xff]
    %v1219 = vld [vmem:[#allocation8 + $0x10] sm:$0xff]
    %v1220 = vld [vmem:[#allocation8 + $0x18] sm:$0xff]
    %v1221 = vld [vmem:[#allocation8 + $0x20] sm:$0xff]
    %v1222 = vld [vmem:[#allocation8 + $0x28] sm:$0xff]
    %v1223 = vld [vmem:[#allocation8 + $0x30] sm:$0xff]
    %v1224 = vld [vmem:[#allocation8 + $0x38] sm:$0xff]
    %v1225 = vld [vmem:[#allocation8 + $0x40] sm:$0xff]
    %v1226 = vld [vmem:[#allocation8 + $0x48] sm:$0xff]
    %v1227 = vld [vmem:[#allocation8 + $0x50] sm:$0xff]
    %v1228 = vld [vmem:[#allocation8 + $0x58] sm:$0xff]
    %v1229 = vld [vmem:[#allocation8 + $0x60] sm:$0xff]
    %v1230 = vld [vmem:[#allocation8 + $0x68] sm:$0xff]
    %v1231 = vld [vmem:[#allocation8 + $0x70] sm:$0xff]
    %v1232 = vld [vmem:[#allocation8 + $0x78] sm:$0xff]
    %v1233 = vld [vmem:[#allocation8 + $0x80] sm:$0xff]
    %v1234 = vld [vmem:[#allocation8 + $0x88] sm:$0xff]
    %v1235 = vld [vmem:[#allocation8 + $0x90] sm:$0xff]
    %v1236 = vld [vmem:[#allocation8 + $0x98] sm:$0xff]
    %v1237 = vld [vmem:[#allocation8 + $0xa0] sm:$0xff]
    %v1238 = vld [vmem:[#allocation8 + $0xa8] sm:$0xff]
    %v1239 = vld [vmem:[#allocation8 + $0xb0] sm:$0xff]
    %v1240 = vld [vmem:[#allocation8 + $0xb8] sm:$0xff]
    %v1241 = vld [vmem:[#allocation8 + $0xc0] sm:$0xff]
    %v1242 = vld [vmem:[#allocation8 + $0xc8] sm:$0xff]
    %v1243 = vld [vmem:[#allocation8 + $0xd0] sm:$0xff]
    %v1244 = vld [vmem:[#allocation8 + $0xd8] sm:$0xff]
    %v1245 = vld [vmem:[#allocation8 + $0xe0] sm:$0xff]
    %v1246 = vld [vmem:[#allocation8 + $0xe8] sm:$0xff]
    %v1247 = vld [vmem:[#allocation8 + $0xf0] sm:$0xff]
    %v1248 = vld [vmem:[#allocation8 + $0xf8] sm:$0xff]
    %v1249 = vld [vmem:[#allocation8 + $0x100] sm:$0xff]
    %v1250 = vld [vmem:[#allocation8 + $0x108] sm:$0xff]
    %v1251 = vld [vmem:[#allocation8 + $0x110] sm:$0xff]
    %v1252 = vld [vmem:[#allocation8 + $0x118] sm:$0xff]
    %v1253 = vld [vmem:[#allocation8 + $0x120] sm:$0xff]
    %v1254 = vld [vmem:[#allocation8 + $0x128] sm:$0xff]
    %v1255 = vld [vmem:[#allocation8 + $0x130] sm:$0xff]
    %v1256 = vld [vmem:[#allocation8 + $0x138] sm:$0xff]
    %v1257 = vld [vmem:[#allocation8 + $0x140] sm:$0xff]
    %v1258 = vld [vmem:[#allocation8 + $0x148] sm:$0xff]
    %v1259 = vld [vmem:[#allocation8 + $0x150] sm:$0xff]
    %v1260 = vld [vmem:[#allocation8 + $0x158] sm:$0xff]
    %v1261 = vld [vmem:[#allocation8 + $0x160] sm:$0xff]
    %v1262 = vld [vmem:[#allocation8 + $0x168] sm:$0xff]
    %v1263 = vld [vmem:[#allocation8 + $0x170] sm:$0xff]
    %v1264 = vld [vmem:[#allocation8 + $0x178] sm:$0xff]
    %v1265 = vld [vmem:[%s12] sm:$0x7]
    %v1267 = vperm.slane %v1265, 0
    %v1268 = vperm.slane %v1265, 1
    %v1269 = vperm.slane %v1265, 2
    %1273 = vmatpush.msra.mxu0 %v1262
    %1274 = vmatpush.msra.mxu0 %v1259
    %1275 = vmatpush.msra.mxu0 %v1256
    %1276 = vmatpush.msra.mxu0 %v1253
    %1277 = vmatpush.msra.mxu0 %v1250
    %1278 = vmatpush.msra.mxu0 %v1247
    %1279 = vmatpush.msra.mxu0 %v1244
    %1280 = vmatpush.msra.mxu0 %v1241
    %1281 = vmatpush.msra.mxu0 %v1238
    %1282 = vmatpush.msra.mxu0 %v1235
    %1283 = vmatpush.msra.mxu0 %v1232
    %1284 = vmatpush.msra.mxu0 %v1229
    %1285 = vmatpush.msra.mxu0 %v1226
    %1286 = vmatpush.msra.mxu0 %v1223
    %1287 = vmatpush.msra.mxu0 %v1220
    %1288 = vmatpush.msra.mxu0 %v1217
    %1289 = vmatmul.f32.gmra.mxu0 %v1215
    %v1290 = vpop.f32.mrf.mxu0
    %v1291 = vadd.f32 %v1267, %v1290
    %1292 = vmatmul.f32.gmra.mxu0 %v1216
    %v1293 = vpop.f32.mrf.mxu0
    %v1294 = vadd.f32 %v1267, %v1293
    %1295 = vdwg.mxu0
    %1296 = vmatpush.msra.mxu0 %v1263
    %1297 = vmatpush.msra.mxu0 %v1260
    %1298 = vmatpush.msra.mxu0 %v1257
    %1299 = vmatpush.msra.mxu0 %v1254
    %1300 = vmatpush.msra.mxu0 %v1251
    %1301 = vmatpush.msra.mxu0 %v1248
    %1302 = vmatpush.msra.mxu0 %v1245
    %1303 = vmatpush.msra.mxu0 %v1242
    %1304 = vmatpush.msra.mxu0 %v1239
    %1305 = vmatpush.msra.mxu0 %v1236
    %1306 = vmatpush.msra.mxu0 %v1233
    %1307 = vmatpush.msra.mxu0 %v1230
    %1308 = vmatpush.msra.mxu0 %v1227
    %1309 = vmatpush.msra.mxu0 %v1224
    %1310 = vmatpush.msra.mxu0 %v1221
    %1311 = vmatpush.msra.mxu0 %v1218
    %1312 = vmatmul.f32.gmra.mxu0 %v1215
    %v1313 = vpop.f32.mrf.mxu0
    %v1314 = vadd.f32 %v1268, %v1313
    %1315 = vmatmul.f32.gmra.mxu0 %v1216
    %v1316 = vpop.f32.mrf.mxu0
    %v1317 = vadd.f32 %v1268, %v1316
    %1318 = vdwg.mxu0
    %1319 = vmatpush.msra.mxu0 %v1264
    %1320 = vmatpush.msra.mxu0 %v1261
    %1321 = vmatpush.msra.mxu0 %v1258
    %1322 = vmatpush.msra.mxu0 %v1255
    %1323 = vmatpush.msra.mxu0 %v1252
    %1324 = vmatpush.msra.mxu0 %v1249
    %1325 = vmatpush.msra.mxu0 %v1246
    %1326 = vmatpush.msra.mxu0 %v1243
    %1327 = vmatpush.msra.mxu0 %v1240
    %1328 = vmatpush.msra.mxu0 %v1237
    %1329 = vmatpush.msra.mxu0 %v1234
    %1330 = vmatpush.msra.mxu0 %v1231
    %1331 = vmatpush.msra.mxu0 %v1228
    %1332 = vmatpush.msra.mxu0 %v1225
    %1333 = vmatpush.msra.mxu0 %v1222
    %1334 = vmatpush.msra.mxu0 %v1219
    %1335 = vmatmul.f32.gmra.mxu0 %v1215
    %v1336 = vpop.f32.mrf.mxu0
    %v1337 = vadd.f32 %v1269, %v1336
    %1338 = vmatmul.f32.gmra.mxu0 %v1216
    %v1339 = vpop.f32.mrf.mxu0
    %v1340 = vadd.f32 %v1269, %v1339
    %1341 = vdwg.mxu0
    %v1342 = vld [vmem:[#allocation9] sm:$0xff]
    %v1343 = vld [vmem:[#allocation9 + $0x8] sm:$0xff]
    %v1344 = vld [vmem:[#allocation9 + $0x10] sm:$0xff]
    %v1345 = vld [vmem:[#allocation9 + $0x18] sm:$0xff]
    %v1346 = vld [vmem:[#allocation9 + $0x20] sm:$0xff]
    %v1347 = vld [vmem:[#allocation9 + $0x28] sm:$0xff]
    %v1348 = vld [vmem:[#allocation9 + $0x30] sm:$0xff]
    %v1349 = vld [vmem:[#allocation9 + $0x38] sm:$0xff]
    %v1350 = vld [vmem:[#allocation9 + $0x40] sm:$0xff]
    %v1351 = vld [vmem:[#allocation9 + $0x48] sm:$0xff]
    %v1352 = vld [vmem:[#allocation9 + $0x50] sm:$0xff]
    %v1353 = vld [vmem:[#allocation9 + $0x58] sm:$0xff]
    %v1354 = vld [vmem:[#allocation9 + $0x60] sm:$0xff]
    %v1355 = vld [vmem:[#allocation9 + $0x68] sm:$0xff]
    %v1356 = vld [vmem:[#allocation9 + $0x70] sm:$0xff]
    %v1357 = vld [vmem:[#allocation9 + $0x78] sm:$0xff]
    %v1358 = vld [vmem:[#allocation9 + $0x80] sm:$0xff]
    %v1359 = vld [vmem:[#allocation9 + $0x88] sm:$0xff]
    %v1360 = vld [vmem:[#allocation9 + $0x90] sm:$0xff]
    %v1361 = vld [vmem:[#allocation9 + $0x98] sm:$0xff]
    %v1362 = vld [vmem:[#allocation9 + $0xa0] sm:$0xff]
    %v1363 = vld [vmem:[#allocation9 + $0xa8] sm:$0xff]
    %v1364 = vld [vmem:[#allocation9 + $0xb0] sm:$0xff]
    %v1365 = vld [vmem:[#allocation9 + $0xb8] sm:$0xff]
    %v1366 = vld [vmem:[#allocation9 + $0xc0] sm:$0xff]
    %v1367 = vld [vmem:[#allocation9 + $0xc8] sm:$0xff]
    %v1368 = vld [vmem:[#allocation9 + $0xd0] sm:$0xff]
    %v1369 = vld [vmem:[#allocation9 + $0xd8] sm:$0xff]
    %v1370 = vld [vmem:[#allocation9 + $0xe0] sm:$0xff]
    %v1371 = vld [vmem:[#allocation9 + $0xe8] sm:$0xff]
    %v1372 = vld [vmem:[#allocation9 + $0xf0] sm:$0xff]
    %v1373 = vld [vmem:[#allocation9 + $0xf8] sm:$0xff]
    %v1374 = vld [vmem:[#allocation9 + $0x100] sm:$0xff]
    %v1375 = vld [vmem:[#allocation9 + $0x108] sm:$0xff]
    %v1376 = vld [vmem:[#allocation9 + $0x110] sm:$0xff]
    %v1377 = vld [vmem:[#allocation9 + $0x118] sm:$0xff]
    %v1378 = vld [vmem:[#allocation9 + $0x120] sm:$0xff]
    %v1379 = vld [vmem:[#allocation9 + $0x128] sm:$0xff]
    %v1380 = vld [vmem:[#allocation9 + $0x130] sm:$0xff]
    %v1381 = vld [vmem:[#allocation9 + $0x138] sm:$0xff]
    %v1382 = vld [vmem:[#allocation9 + $0x140] sm:$0xff]
    %v1383 = vld [vmem:[#allocation9 + $0x148] sm:$0xff]
    %v1384 = vld [vmem:[#allocation9 + $0x150] sm:$0xff]
    %v1385 = vld [vmem:[#allocation9 + $0x158] sm:$0xff]
    %v1386 = vld [vmem:[#allocation9 + $0x160] sm:$0xff]
    %v1387 = vld [vmem:[#allocation9 + $0x168] sm:$0xff]
    %v1388 = vld [vmem:[#allocation9 + $0x170] sm:$0xff]
    %v1389 = vld [vmem:[#allocation9 + $0x178] sm:$0xff]
    %v1390 = vld [vmem:[%s13] sm:$0x7]
    %v1392 = vperm.slane %v1390, 0
    %v1393 = vperm.slane %v1390, 1
    %v1394 = vperm.slane %v1390, 2
    %1398 = vmatpush.msra.mxu0 %v1387
    %1399 = vmatpush.msra.mxu0 %v1384
    %1400 = vmatpush.msra.mxu0 %v1381
    %1401 = vmatpush.msra.mxu0 %v1378
    %1402 = vmatpush.msra.mxu0 %v1375
    %1403 = vmatpush.msra.mxu0 %v1372
    %1404 = vmatpush.msra.mxu0 %v1369
    %1405 = vmatpush.msra.mxu0 %v1366
    %1406 = vmatpush.msra.mxu0 %v1363
    %1407 = vmatpush.msra.mxu0 %v1360
    %1408 = vmatpush.msra.mxu0 %v1357
    %1409 = vmatpush.msra.mxu0 %v1354
    %1410 = vmatpush.msra.mxu0 %v1351
    %1411 = vmatpush.msra.mxu0 %v1348
    %1412 = vmatpush.msra.mxu0 %v1345
    %1413 = vmatpush.msra.mxu0 %v1342
    %1414 = vmatmul.f32.gmra.mxu0 0.0
    %v1415 = vpop.f32.mrf.mxu0
    %v1416 = vadd.f32 %v1392, %v1415
    %1417 = vdwg.mxu0
    %1418 = vmatpush.msra.mxu0 %v1388
    %1419 = vmatpush.msra.mxu0 %v1385
    %1420 = vmatpush.msra.mxu0 %v1382
    %1421 = vmatpush.msra.mxu0 %v1379
    %1422 = vmatpush.msra.mxu0 %v1376
    %1423 = vmatpush.msra.mxu0 %v1373
    %1424 = vmatpush.msra.mxu0 %v1370
    %1425 = vmatpush.msra.mxu0 %v1367
    %1426 = vmatpush.msra.mxu0 %v1364
    %1427 = vmatpush.msra.mxu0 %v1361
    %1428 = vmatpush.msra.mxu0 %v1358
    %1429 = vmatpush.msra.mxu0 %v1355
    %1430 = vmatpush.msra.mxu0 %v1352
    %1431 = vmatpush.msra.mxu0 %v1349
    %1432 = vmatpush.msra.mxu0 %v1346
    %1433 = vmatpush.msra.mxu0 %v1343
    %1434 = vmatmul.f32.gmra.mxu0 0.0
    %v1435 = vpop.f32.mrf.mxu0
    %v1436 = vadd.f32 %v1393, %v1435
    %1437 = vdwg.mxu0
    %1438 = vmatpush.msra.mxu0 %v1389
    %1439 = vmatpush.msra.mxu0 %v1386
    %1440 = vmatpush.msra.mxu0 %v1383
    %1441 = vmatpush.msra.mxu0 %v1380
    %1442 = vmatpush.msra.mxu0 %v1377
    %1443 = vmatpush.msra.mxu0 %v1374
    %1444 = vmatpush.msra.mxu0 %v1371
    %1445 = vmatpush.msra.mxu0 %v1368
    %1446 = vmatpush.msra.mxu0 %v1365
    %1447 = vmatpush.msra.mxu0 %v1362
    %1448 = vmatpush.msra.mxu0 %v1359
    %1449 = vmatpush.msra.mxu0 %v1356
    %1450 = vmatpush.msra.mxu0 %v1353
    %1451 = vmatpush.msra.mxu0 %v1350
    %1452 = vmatpush.msra.mxu0 %v1347
    %1453 = vmatpush.msra.mxu0 %v1344
    %1454 = vmatmul.f32.gmra.mxu0 0.0
    %v1455 = vpop.f32.mrf.mxu0
    %v1456 = vadd.f32 %v1394, %v1455
    %1457 = vdwg.mxu0
    %v1458 = vadd.f32 %v1291, %v1416
    %v1459 = vxor.u32 %v1458, 2147483648
    %v1460 = vmul.f32 %v1459, 1.442695
    %v1461 = vpow.pop %v1460
    %v1462 = vadd.f32 %v1461, 1.0
    %v1463 = vrcp.pop %v1462
    %v1464 = vmul.f32 %v1462, %v1463
    %v1465 = vsub.f32 1.0, %v1464
    %v1466 = vmul.f32 %v1463, %v1465
    %v1467 = vadd.f32 %v1463, %v1466
    %vm1468 = vweird.f32 %v1462
    %vm1469 = vweird.f32 %v1463
    %vm1470 = vmor %vm1468, %vm1469
    %v1471 = vsel %vm1470, %v1463, %v1467
    %v1472 = vand.u32 2147483647, %v1462
    %vm1473 = vcmp.eq.f32.partialorder %v1472, 8.507059e+37
    %v1474 = vand.u32 %v1462, 2147483648
    %v1475 = vor.u32 1.1754944e-38, %v1474
    %v1476 = vsel %vm1473, %v1475, %v1471
    %v1477 = vmul.f32 1.0, %v1476
    %v1478 = vadd.f32 %v1314, %v1436
    %v1479 = vxor.u32 %v1478, 2147483648
    %v1480 = vmul.f32 %v1479, 1.442695
    %v1481 = vpow.pop %v1480
    %v1482 = vadd.f32 %v1481, 1.0
    %v1483 = vrcp.pop %v1482
    %v1484 = vmul.f32 %v1482, %v1483
    %v1485 = vsub.f32 1.0, %v1484
    %v1486 = vmul.f32 %v1483, %v1485
    %v1487 = vadd.f32 %v1483, %v1486
    %vm1488 = vweird.f32 %v1482
    %vm1489 = vweird.f32 %v1483
    %vm1490 = vmor %vm1488, %vm1489
    %v1491 = vsel %vm1490, %v1483, %v1487
    %v1492 = vand.u32 2147483647, %v1482
    %vm1493 = vcmp.eq.f32.partialorder %v1492, 8.507059e+37
    %v1494 = vand.u32 %v1482, 2147483648
    %v1495 = vor.u32 1.1754944e-38, %v1494
    %v1496 = vsel %vm1493, %v1495, %v1491
    %v1497 = vmul.f32 1.0, %v1496
    %v1498 = vmul.f32 %v1477, %v1456
    %v1499 = vadd.f32 %v1337, %v1498
    %v1500 = vtanh.pop %v1499
    %v1501 = vsub.f32 1.0, %v1497
    %v1502 = vmul.f32 %v1501, %v1500
    %v1503 = vmul.f32 %v1497, 0.0
    %v1504 = vadd.f32 %v1502, %v1503
    %1505 = vst [vmem:[#allocation2] sm:$0x3] %v1504
    %v1506 = vld [vmem:[#allocation9] sm:$0xff]
    %v1507 = vld [vmem:[#allocation9 + $0x8] sm:$0xff]
    %v1508 = vld [vmem:[#allocation9 + $0x10] sm:$0xff]
    %v1509 = vld [vmem:[#allocation9 + $0x18] sm:$0xff]
    %v1510 = vld [vmem:[#allocation9 + $0x20] sm:$0xff]
    %v1511 = vld [vmem:[#allocation9 + $0x28] sm:$0xff]
    %v1512 = vld [vmem:[#allocation9 + $0x30] sm:$0xff]
    %v1513 = vld [vmem:[#allocation9 + $0x38] sm:$0xff]
    %v1514 = vld [vmem:[#allocation9 + $0x40] sm:$0xff]
    %v1515 = vld [vmem:[#allocation9 + $0x48] sm:$0xff]
    %v1516 = vld [vmem:[#allocation9 + $0x50] sm:$0xff]
    %v1517 = vld [vmem:[#allocation9 + $0x58] sm:$0xff]
    %v1518 = vld [vmem:[#allocation9 + $0x60] sm:$0xff]
    %v1519 = vld [vmem:[#allocation9 + $0x68] sm:$0xff]
    %v1520 = vld [vmem:[#allocation9 + $0x70] sm:$0xff]
    %v1521 = vld [vmem:[#allocation9 + $0x78] sm:$0xff]
    %v1522 = vld [vmem:[#allocation9 + $0x80] sm:$0xff]
    %v1523 = vld [vmem:[#allocation9 + $0x88] sm:$0xff]
    %v1524 = vld [vmem:[#allocation9 + $0x90] sm:$0xff]
    %v1525 = vld [vmem:[#allocation9 + $0x98] sm:$0xff]
    %v1526 = vld [vmem:[#allocation9 + $0xa0] sm:$0xff]
    %v1527 = vld [vmem:[#allocation9 + $0xa8] sm:$0xff]
    %v1528 = vld [vmem:[#allocation9 + $0xb0] sm:$0xff]
    %v1529 = vld [vmem:[#allocation9 + $0xb8] sm:$0xff]
    %v1530 = vld [vmem:[#allocation9 + $0xc0] sm:$0xff]
    %v1531 = vld [vmem:[#allocation9 + $0xc8] sm:$0xff]
    %v1532 = vld [vmem:[#allocation9 + $0xd0] sm:$0xff]
    %v1533 = vld [vmem:[#allocation9 + $0xd8] sm:$0xff]
    %v1534 = vld [vmem:[#allocation9 + $0xe0] sm:$0xff]
    %v1535 = vld [vmem:[#allocation9 + $0xe8] sm:$0xff]
    %v1536 = vld [vmem:[#allocation9 + $0xf0] sm:$0xff]
    %v1537 = vld [vmem:[#allocation9 + $0xf8] sm:$0xff]
    %v1538 = vld [vmem:[#allocation9 + $0x100] sm:$0xff]
    %v1539 = vld [vmem:[#allocation9 + $0x108] sm:$0xff]
    %v1540 = vld [vmem:[#allocation9 + $0x110] sm:$0xff]
    %v1541 = vld [vmem:[#allocation9 + $0x118] sm:$0xff]
    %v1542 = vld [vmem:[#allocation9 + $0x120] sm:$0xff]
    %v1543 = vld [vmem:[#allocation9 + $0x128] sm:$0xff]
    %v1544 = vld [vmem:[#allocation9 + $0x130] sm:$0xff]
    %v1545 = vld [vmem:[#allocation9 + $0x138] sm:$0xff]
    %v1546 = vld [vmem:[#allocation9 + $0x140] sm:$0xff]
    %v1547 = vld [vmem:[#allocation9 + $0x148] sm:$0xff]
    %v1548 = vld [vmem:[#allocation9 + $0x150] sm:$0xff]
    %v1549 = vld [vmem:[#allocation9 + $0x158] sm:$0xff]
    %v1550 = vld [vmem:[#allocation9 + $0x160] sm:$0xff]
    %v1551 = vld [vmem:[#allocation9 + $0x168] sm:$0xff]
    %v1552 = vld [vmem:[#allocation9 + $0x170] sm:$0xff]
    %v1553 = vld [vmem:[#allocation9 + $0x178] sm:$0xff]
    %v1554 = vld [vmem:[%s13] sm:$0x7]
    %v1556 = vperm.slane %v1554, 0
    %v1557 = vperm.slane %v1554, 1
    %v1558 = vperm.slane %v1554, 2
    %1562 = vmatpush.msra.mxu0 %v1551
    %1563 = vmatpush.msra.mxu0 %v1548
    %1564 = vmatpush.msra.mxu0 %v1545
    %1565 = vmatpush.msra.mxu0 %v1542
    %1566 = vmatpush.msra.mxu0 %v1539
    %1567 = vmatpush.msra.mxu0 %v1536
    %1568 = vmatpush.msra.mxu0 %v1533
    %1569 = vmatpush.msra.mxu0 %v1530
    %1570 = vmatpush.msra.mxu0 %v1527
    %1571 = vmatpush.msra.mxu0 %v1524
    %1572 = vmatpush.msra.mxu0 %v1521
    %1573 = vmatpush.msra.mxu0 %v1518
    %1574 = vmatpush.msra.mxu0 %v1515
    %1575 = vmatpush.msra.mxu0 %v1512
    %1576 = vmatpush.msra.mxu0 %v1509
    %1577 = vmatpush.msra.mxu0 %v1506
    %1578 = vmatmul.f32.gmra.mxu0 %v1504
    %v1579 = vpop.f32.mrf.mxu0
    %v1580 = vadd.f32 %v1556, %v1579
    %1581 = vdwg.mxu0
    %1582 = vmatpush.msra.mxu0 %v1552
    %1583 = vmatpush.msra.mxu0 %v1549
    %1584 = vmatpush.msra.mxu0 %v1546
    %1585 = vmatpush.msra.mxu0 %v1543
    %1586 = vmatpush.msra.mxu0 %v1540
    %1587 = vmatpush.msra.mxu0 %v1537
    %1588 = vmatpush.msra.mxu0 %v1534
    %1589 = vmatpush.msra.mxu0 %v1531
    %1590 = vmatpush.msra.mxu0 %v1528
    %1591 = vmatpush.msra.mxu0 %v1525
    %1592 = vmatpush.msra.mxu0 %v1522
    %1593 = vmatpush.msra.mxu0 %v1519
    %1594 = vmatpush.msra.mxu0 %v1516
    %1595 = vmatpush.msra.mxu0 %v1513
    %1596 = vmatpush.msra.mxu0 %v1510
    %1597 = vmatpush.msra.mxu0 %v1507
    %1598 = vmatmul.f32.gmra.mxu0 %v1504
    %v1599 = vpop.f32.mrf.mxu0
    %v1600 = vadd.f32 %v1557, %v1599
    %1601 = vdwg.mxu0
    %1602 = vmatpush.msra.mxu0 %v1553
    %1603 = vmatpush.msra.mxu0 %v1550
    %1604 = vmatpush.msra.mxu0 %v1547
    %1605 = vmatpush.msra.mxu0 %v1544
    %1606 = vmatpush.msra.mxu0 %v1541
    %1607 = vmatpush.msra.mxu0 %v1538
    %1608 = vmatpush.msra.mxu0 %v1535
    %1609 = vmatpush.msra.mxu0 %v1532
    %1610 = vmatpush.msra.mxu0 %v1529
    %1611 = vmatpush.msra.mxu0 %v1526
    %1612 = vmatpush.msra.mxu0 %v1523
    %1613 = vmatpush.msra.mxu0 %v1520
    %1614 = vmatpush.msra.mxu0 %v1517
    %1615 = vmatpush.msra.mxu0 %v1514
    %1616 = vmatpush.msra.mxu0 %v1511
    %1617 = vmatpush.msra.mxu0 %v1508
    %1618 = vmatmul.f32.gmra.mxu0 %v1504
    %v1619 = vpop.f32.mrf.mxu0
    %v1620 = vadd.f32 %v1558, %v1619
    %1621 = vdwg.mxu0
    %v1623 = vrot.slane %v1580, 6
    %v1625 = vadd.f32 %v1291, %v1623
    %v1626 = vxor.u32 %v1625, 2147483648
    %v1627 = vmul.f32 %v1626, 1.442695
    %v1628 = vpow.pop %v1627
    %v1629 = vadd.f32 %v1628, 1.0
    %v1630 = vrcp.pop %v1629
    %v1631 = vmul.f32 %v1629, %v1630
    %v1632 = vsub.f32 1.0, %v1631
    %v1633 = vmul.f32 %v1630, %v1632
    %v1634 = vadd.f32 %v1630, %v1633
    %vm1635 = vweird.f32 %v1629
    %vm1636 = vweird.f32 %v1630
    %vm1637 = vmor %vm1635, %vm1636
    %v1638 = vsel %vm1637, %v1630, %v1634
    %v1639 = vand.u32 2147483647, %v1629
    %vm1640 = vcmp.eq.f32.partialorder %v1639, 8.507059e+37
    %v1641 = vand.u32 %v1629, 2147483648
    %v1642 = vor.u32 1.1754944e-38, %v1641
    %v1643 = vsel %vm1640, %v1642, %v1638
    %v1644 = vmul.f32 1.0, %v1643
    %v1646 = vrot.slane %v1600, 6
    %v1648 = vadd.f32 %v1314, %v1646
    %v1649 = vxor.u32 %v1648, 2147483648
    %v1650 = vmul.f32 %v1649, 1.442695
    %v1651 = vpow.pop %v1650
    %v1652 = vadd.f32 %v1651, 1.0
    %v1653 = vrcp.pop %v1652
    %v1654 = vmul.f32 %v1652, %v1653
    %v1655 = vsub.f32 1.0, %v1654
    %v1656 = vmul.f32 %v1653, %v1655
    %v1657 = vadd.f32 %v1653, %v1656
    %vm1658 = vweird.f32 %v1652
    %vm1659 = vweird.f32 %v1653
    %vm1660 = vmor %vm1658, %vm1659
    %v1661 = vsel %vm1660, %v1653, %v1657
    %v1662 = vand.u32 2147483647, %v1652
    %vm1663 = vcmp.eq.f32.partialorder %v1662, 8.507059e+37
    %v1664 = vand.u32 %v1652, 2147483648
    %v1665 = vor.u32 1.1754944e-38, %v1664
    %v1666 = vsel %vm1663, %v1665, %v1661
    %v1667 = vmul.f32 1.0, %v1666
    %v1669 = vrot.slane %v1620, 6
    %v1671 = vmul.f32 %v1644, %v1669
    %v1672 = vadd.f32 %v1337, %v1671
    %v1673 = vtanh.pop %v1672
    %v1674 = vsub.f32 1.0, %v1667
    %v1675 = vmul.f32 %v1674, %v1673
    %v1677 = vrot.slane %v1504, 6
    %v1679 = vmul.f32 %v1667, %v1677
    %v1680 = vadd.f32 %v1675, %v1679
    %1681 = vst [vmem:[#allocation2] sm:$0xc] %v1680
    %v1682 = vld [vmem:[#allocation9] sm:$0xff]
    %v1683 = vld [vmem:[#allocation9 + $0x8] sm:$0xff]
    %v1684 = vld [vmem:[#allocation9 + $0x10] sm:$0xff]
    %v1685 = vld [vmem:[#allocation9 + $0x18] sm:$0xff]
    %v1686 = vld [vmem:[#allocation9 + $0x20] sm:$0xff]
    %v1687 = vld [vmem:[#allocation9 + $0x28] sm:$0xff]
    %v1688 = vld [vmem:[#allocation9 + $0x30] sm:$0xff]
    %v1689 = vld [vmem:[#allocation9 + $0x38] sm:$0xff]
    %v1690 = vld [vmem:[#allocation9 + $0x40] sm:$0xff]
    %v1691 = vld [vmem:[#allocation9 + $0x48] sm:$0xff]
    %v1692 = vld [vmem:[#allocation9 + $0x50] sm:$0xff]
    %v1693 = vld [vmem:[#allocation9 + $0x58] sm:$0xff]
    %v1694 = vld [vmem:[#allocation9 + $0x60] sm:$0xff]
    %v1695 = vld [vmem:[#allocation9 + $0x68] sm:$0xff]
    %v1696 = vld [vmem:[#allocation9 + $0x70] sm:$0xff]
    %v1697 = vld [vmem:[#allocation9 + $0x78] sm:$0xff]
    %v1698 = vld [vmem:[#allocation9 + $0x80] sm:$0xff]
    %v1699 = vld [vmem:[#allocation9 + $0x88] sm:$0xff]
    %v1700 = vld [vmem:[#allocation9 + $0x90] sm:$0xff]
    %v1701 = vld [vmem:[#allocation9 + $0x98] sm:$0xff]
    %v1702 = vld [vmem:[#allocation9 + $0xa0] sm:$0xff]
    %v1703 = vld [vmem:[#allocation9 + $0xa8] sm:$0xff]
    %v1704 = vld [vmem:[#allocation9 + $0xb0] sm:$0xff]
    %v1705 = vld [vmem:[#allocation9 + $0xb8] sm:$0xff]
    %v1706 = vld [vmem:[#allocation9 + $0xc0] sm:$0xff]
    %v1707 = vld [vmem:[#allocation9 + $0xc8] sm:$0xff]
    %v1708 = vld [vmem:[#allocation9 + $0xd0] sm:$0xff]
    %v1709 = vld [vmem:[#allocation9 + $0xd8] sm:$0xff]
    %v1710 = vld [vmem:[#allocation9 + $0xe0] sm:$0xff]
    %v1711 = vld [vmem:[#allocation9 + $0xe8] sm:$0xff]
    %v1712 = vld [vmem:[#allocation9 + $0xf0] sm:$0xff]
    %v1713 = vld [vmem:[#allocation9 + $0xf8] sm:$0xff]
    %v1714 = vld [vmem:[#allocation9 + $0x100] sm:$0xff]
    %v1715 = vld [vmem:[#allocation9 + $0x108] sm:$0xff]
    %v1716 = vld [vmem:[#allocation9 + $0x110] sm:$0xff]
    %v1717 = vld [vmem:[#allocation9 + $0x118] sm:$0xff]
    %v1718 = vld [vmem:[#allocation9 + $0x120] sm:$0xff]
    %v1719 = vld [vmem:[#allocation9 + $0x128] sm:$0xff]
    %v1720 = vld [vmem:[#allocation9 + $0x130] sm:$0xff]
    %v1721 = vld [vmem:[#allocation9 + $0x138] sm:$0xff]
    %v1722 = vld [vmem:[#allocation9 + $0x140] sm:$0xff]
    %v1723 = vld [vmem:[#allocation9 + $0x148] sm:$0xff]
    %v1724 = vld [vmem:[#allocation9 + $0x150] sm:$0xff]
    %v1725 = vld [vmem:[#allocation9 + $0x158] sm:$0xff]
    %v1726 = vld [vmem:[#allocation9 + $0x160] sm:$0xff]
    %v1727 = vld [vmem:[#allocation9 + $0x168] sm:$0xff]
    %v1728 = vld [vmem:[#allocation9 + $0x170] sm:$0xff]
    %v1729 = vld [vmem:[#allocation9 + $0x178] sm:$0xff]
    %v1730 = vld [vmem:[%s13] sm:$0x7]
    %v1732 = vperm.slane %v1730, 0
    %v1733 = vperm.slane %v1730, 1
    %v1734 = vperm.slane %v1730, 2
    %v1739 = vrot.slane %v1680, 2
    %1741 = vmatpush.msra.mxu0 %v1727
    %1742 = vmatpush.msra.mxu0 %v1724
    %1743 = vmatpush.msra.mxu0 %v1721
    %1744 = vmatpush.msra.mxu0 %v1718
    %1745 = vmatpush.msra.mxu0 %v1715
    %1746 = vmatpush.msra.mxu0 %v1712
    %1747 = vmatpush.msra.mxu0 %v1709
    %1748 = vmatpush.msra.mxu0 %v1706
    %1749 = vmatpush.msra.mxu0 %v1703
    %1750 = vmatpush.msra.mxu0 %v1700
    %1751 = vmatpush.msra.mxu0 %v1697
    %1752 = vmatpush.msra.mxu0 %v1694
    %1753 = vmatpush.msra.mxu0 %v1691
    %1754 = vmatpush.msra.mxu0 %v1688
    %1755 = vmatpush.msra.mxu0 %v1685
    %1756 = vmatpush.msra.mxu0 %v1682
    %1757 = vmatmul.f32.gmra.mxu0 %v1739
    %v1758 = vpop.f32.mrf.mxu0
    %v1759 = vadd.f32 %v1732, %v1758
    %1760 = vdwg.mxu0
    %1761 = vmatpush.msra.mxu0 %v1728
    %1762 = vmatpush.msra.mxu0 %v1725
    %1763 = vmatpush.msra.mxu0 %v1722
    %1764 = vmatpush.msra.mxu0 %v1719
    %1765 = vmatpush.msra.mxu0 %v1716
    %1766 = vmatpush.msra.mxu0 %v1713
    %1767 = vmatpush.msra.mxu0 %v1710
    %1768 = vmatpush.msra.mxu0 %v1707
    %1769 = vmatpush.msra.mxu0 %v1704
    %1770 = vmatpush.msra.mxu0 %v1701
    %1771 = vmatpush.msra.mxu0 %v1698
    %1772 = vmatpush.msra.mxu0 %v1695
    %1773 = vmatpush.msra.mxu0 %v1692
    %1774 = vmatpush.msra.mxu0 %v1689
    %1775 = vmatpush.msra.mxu0 %v1686
    %1776 = vmatpush.msra.mxu0 %v1683
    %1777 = vmatmul.f32.gmra.mxu0 %v1739
    %v1778 = vpop.f32.mrf.mxu0
    %v1779 = vadd.f32 %v1733, %v1778
    %1780 = vdwg.mxu0
    %1781 = vmatpush.msra.mxu0 %v1729
    %1782 = vmatpush.msra.mxu0 %v1726
    %1783 = vmatpush.msra.mxu0 %v1723
    %1784 = vmatpush.msra.mxu0 %v1720
    %1785 = vmatpush.msra.mxu0 %v1717
    %1786 = vmatpush.msra.mxu0 %v1714
    %1787 = vmatpush.msra.mxu0 %v1711
    %1788 = vmatpush.msra.mxu0 %v1708
    %1789 = vmatpush.msra.mxu0 %v1705
    %1790 = vmatpush.msra.mxu0 %v1702
    %1791 = vmatpush.msra.mxu0 %v1699
    %1792 = vmatpush.msra.mxu0 %v1696
    %1793 = vmatpush.msra.mxu0 %v1693
    %1794 = vmatpush.msra.mxu0 %v1690
    %1795 = vmatpush.msra.mxu0 %v1687
    %1796 = vmatpush.msra.mxu0 %v1684
    %1797 = vmatmul.f32.gmra.mxu0 %v1739
    %v1798 = vpop.f32.mrf.mxu0
    %v1799 = vadd.f32 %v1734, %v1798
    %1800 = vdwg.mxu0
    %v1802 = vrot.slane %v1759, 4
    %v1804 = vadd.f32 %v1291, %v1802
    %v1805 = vxor.u32 %v1804, 2147483648
    %v1806 = vmul.f32 %v1805, 1.442695
    %v1807 = vpow.pop %v1806
    %v1808 = vadd.f32 %v1807, 1.0
    %v1809 = vrcp.pop %v1808
    %v1810 = vmul.f32 %v1808, %v1809
    %v1811 = vsub.f32 1.0, %v1810
    %v1812 = vmul.f32 %v1809, %v1811
    %v1813 = vadd.f32 %v1809, %v1812
    %vm1814 = vweird.f32 %v1808
    %vm1815 = vweird.f32 %v1809
    %vm1816 = vmor %vm1814, %vm1815
    %v1817 = vsel %vm1816, %v1809, %v1813
    %v1818 = vand.u32 2147483647, %v1808
    %vm1819 = vcmp.eq.f32.partialorder %v1818, 8.507059e+37
    %v1820 = vand.u32 %v1808, 2147483648
    %v1821 = vor.u32 1.1754944e-38, %v1820
    %v1822 = vsel %vm1819, %v1821, %v1817
    %v1823 = vmul.f32 1.0, %v1822
    %v1825 = vrot.slane %v1779, 4
    %v1827 = vadd.f32 %v1314, %v1825
    %v1828 = vxor.u32 %v1827, 2147483648
    %v1829 = vmul.f32 %v1828, 1.442695
    %v1830 = vpow.pop %v1829
    %v1831 = vadd.f32 %v1830, 1.0
    %v1832 = vrcp.pop %v1831
    %v1833 = vmul.f32 %v1831, %v1832
    %v1834 = vsub.f32 1.0, %v1833
    %v1835 = vmul.f32 %v1832, %v1834
    %v1836 = vadd.f32 %v1832, %v1835
    %vm1837 = vweird.f32 %v1831
    %vm1838 = vweird.f32 %v1832
    %vm1839 = vmor %vm1837, %vm1838
    %v1840 = vsel %vm1839, %v1832, %v1836
    %v1841 = vand.u32 2147483647, %v1831
    %vm1842 = vcmp.eq.f32.partialorder %v1841, 8.507059e+37
    %v1843 = vand.u32 %v1831, 2147483648
    %v1844 = vor.u32 1.1754944e-38, %v1843
    %v1845 = vsel %vm1842, %v1844, %v1840
    %v1846 = vmul.f32 1.0, %v1845
    %v1848 = vrot.slane %v1799, 4
    %v1850 = vmul.f32 %v1823, %v1848
    %v1851 = vadd.f32 %v1337, %v1850
    %v1852 = vtanh.pop %v1851
    %v1853 = vsub.f32 1.0, %v1846
    %v1854 = vmul.f32 %v1853, %v1852
    %v1855 = vrot.slane %v1680, 6
    %v1857 = vmul.f32 %v1846, %v1855
    %v1858 = vadd.f32 %v1854, %v1857
    %1859 = vst [vmem:[#allocation2] sm:$0x30] %v1858
    %v1860 = vld [vmem:[#allocation9] sm:$0xff]
    %v1861 = vld [vmem:[#allocation9 + $0x8] sm:$0xff]
    %v1862 = vld [vmem:[#allocation9 + $0x10] sm:$0xff]
    %v1863 = vld [vmem:[#allocation9 + $0x18] sm:$0xff]
    %v1864 = vld [vmem:[#allocation9 + $0x20] sm:$0xff]
    %v1865 = vld [vmem:[#allocation9 + $0x28] sm:$0xff]
    %v1866 = vld [vmem:[#allocation9 + $0x30] sm:$0xff]
    %v1867 = vld [vmem:[#allocation9 + $0x38] sm:$0xff]
    %v1868 = vld [vmem:[#allocation9 + $0x40] sm:$0xff]
    %v1869 = vld [vmem:[#allocation9 + $0x48] sm:$0xff]
    %v1870 = vld [vmem:[#allocation9 + $0x50] sm:$0xff]
    %v1871 = vld [vmem:[#allocation9 + $0x58] sm:$0xff]
    %v1872 = vld [vmem:[#allocation9 + $0x60] sm:$0xff]
    %v1873 = vld [vmem:[#allocation9 + $0x68] sm:$0xff]
    %v1874 = vld [vmem:[#allocation9 + $0x70] sm:$0xff]
    %v1875 = vld [vmem:[#allocation9 + $0x78] sm:$0xff]
    %v1876 = vld [vmem:[#allocation9 + $0x80] sm:$0xff]
    %v1877 = vld [vmem:[#allocation9 + $0x88] sm:$0xff]
    %v1878 = vld [vmem:[#allocation9 + $0x90] sm:$0xff]
    %v1879 = vld [vmem:[#allocation9 + $0x98] sm:$0xff]
    %v1880 = vld [vmem:[#allocation9 + $0xa0] sm:$0xff]
    %v1881 = vld [vmem:[#allocation9 + $0xa8] sm:$0xff]
    %v1882 = vld [vmem:[#allocation9 + $0xb0] sm:$0xff]
    %v1883 = vld [vmem:[#allocation9 + $0xb8] sm:$0xff]
    %v1884 = vld [vmem:[#allocation9 + $0xc0] sm:$0xff]
    %v1885 = vld [vmem:[#allocation9 + $0xc8] sm:$0xff]
    %v1886 = vld [vmem:[#allocation9 + $0xd0] sm:$0xff]
    %v1887 = vld [vmem:[#allocation9 + $0xd8] sm:$0xff]
    %v1888 = vld [vmem:[#allocation9 + $0xe0] sm:$0xff]
    %v1889 = vld [vmem:[#allocation9 + $0xe8] sm:$0xff]
    %v1890 = vld [vmem:[#allocation9 + $0xf0] sm:$0xff]
    %v1891 = vld [vmem:[#allocation9 + $0xf8] sm:$0xff]
    %v1892 = vld [vmem:[#allocation9 + $0x100] sm:$0xff]
    %v1893 = vld [vmem:[#allocation9 + $0x108] sm:$0xff]
    %v1894 = vld [vmem:[#allocation9 + $0x110] sm:$0xff]
    %v1895 = vld [vmem:[#allocation9 + $0x118] sm:$0xff]
    %v1896 = vld [vmem:[#allocation9 + $0x120] sm:$0xff]
    %v1897 = vld [vmem:[#allocation9 + $0x128] sm:$0xff]
    %v1898 = vld [vmem:[#allocation9 + $0x130] sm:$0xff]
    %v1899 = vld [vmem:[#allocation9 + $0x138] sm:$0xff]
    %v1900 = vld [vmem:[#allocation9 + $0x140] sm:$0xff]
    %v1901 = vld [vmem:[#allocation9 + $0x148] sm:$0xff]
    %v1902 = vld [vmem:[#allocation9 + $0x150] sm:$0xff]
    %v1903 = vld [vmem:[#allocation9 + $0x158] sm:$0xff]
    %v1904 = vld [vmem:[#allocation9 + $0x160] sm:$0xff]
    %v1905 = vld [vmem:[#allocation9 + $0x168] sm:$0xff]
    %v1906 = vld [vmem:[#allocation9 + $0x170] sm:$0xff]
    %v1907 = vld [vmem:[#allocation9 + $0x178] sm:$0xff]
    %v1908 = vld [vmem:[%s13] sm:$0x7]
    %v1910 = vperm.slane %v1908, 0
    %v1911 = vperm.slane %v1908, 1
    %v1912 = vperm.slane %v1908, 2
    %v1917 = vrot.slane %v1858, 4
    %1919 = vmatpush.msra.mxu0 %v1905
    %1920 = vmatpush.msra.mxu0 %v1902
    %1921 = vmatpush.msra.mxu0 %v1899
    %1922 = vmatpush.msra.mxu0 %v1896
    %1923 = vmatpush.msra.mxu0 %v1893
    %1924 = vmatpush.msra.mxu0 %v1890
    %1925 = vmatpush.msra.mxu0 %v1887
    %1926 = vmatpush.msra.mxu0 %v1884
    %1927 = vmatpush.msra.mxu0 %v1881
    %1928 = vmatpush.msra.mxu0 %v1878
    %1929 = vmatpush.msra.mxu0 %v1875
    %1930 = vmatpush.msra.mxu0 %v1872
    %1931 = vmatpush.msra.mxu0 %v1869
    %1932 = vmatpush.msra.mxu0 %v1866
    %1933 = vmatpush.msra.mxu0 %v1863
    %1934 = vmatpush.msra.mxu0 %v1860
    %1935 = vmatmul.f32.gmra.mxu0 %v1917
    %v1936 = vpop.f32.mrf.mxu0
    %v1937 = vadd.f32 %v1910, %v1936
    %1938 = vdwg.mxu0
    %1939 = vmatpush.msra.mxu0 %v1906
    %1940 = vmatpush.msra.mxu0 %v1903
    %1941 = vmatpush.msra.mxu0 %v1900
    %1942 = vmatpush.msra.mxu0 %v1897
    %1943 = vmatpush.msra.mxu0 %v1894
    %1944 = vmatpush.msra.mxu0 %v1891
    %1945 = vmatpush.msra.mxu0 %v1888
    %1946 = vmatpush.msra.mxu0 %v1885
    %1947 = vmatpush.msra.mxu0 %v1882
    %1948 = vmatpush.msra.mxu0 %v1879
    %1949 = vmatpush.msra.mxu0 %v1876
    %1950 = vmatpush.msra.mxu0 %v1873
    %1951 = vmatpush.msra.mxu0 %v1870
    %1952 = vmatpush.msra.mxu0 %v1867
    %1953 = vmatpush.msra.mxu0 %v1864
    %1954 = vmatpush.msra.mxu0 %v1861
    %1955 = vmatmul.f32.gmra.mxu0 %v1917
    %v1956 = vpop.f32.mrf.mxu0
    %v1957 = vadd.f32 %v1911, %v1956
    %1958 = vdwg.mxu0
    %1959 = vmatpush.msra.mxu0 %v1907
    %1960 = vmatpush.msra.mxu0 %v1904
    %1961 = vmatpush.msra.mxu0 %v1901
    %1962 = vmatpush.msra.mxu0 %v1898
    %1963 = vmatpush.msra.mxu0 %v1895
    %1964 = vmatpush.msra.mxu0 %v1892
    %1965 = vmatpush.msra.mxu0 %v1889
    %1966 = vmatpush.msra.mxu0 %v1886
    %1967 = vmatpush.msra.mxu0 %v1883
    %1968 = vmatpush.msra.mxu0 %v1880
    %1969 = vmatpush.msra.mxu0 %v1877
    %1970 = vmatpush.msra.mxu0 %v1874
    %1971 = vmatpush.msra.mxu0 %v1871
    %1972 = vmatpush.msra.mxu0 %v1868
    %1973 = vmatpush.msra.mxu0 %v1865
    %1974 = vmatpush.msra.mxu0 %v1862
    %1975 = vmatmul.f32.gmra.mxu0 %v1917
    %v1976 = vpop.f32.mrf.mxu0
    %v1977 = vadd.f32 %v1912, %v1976
    %1978 = vdwg.mxu0
    %v1980 = vrot.slane %v1937, 2
    %v1982 = vadd.f32 %v1291, %v1980
    %v1983 = vxor.u32 %v1982, 2147483648
    %v1984 = vmul.f32 %v1983, 1.442695
    %v1985 = vpow.pop %v1984
    %v1986 = vadd.f32 %v1985, 1.0
    %v1987 = vrcp.pop %v1986
    %v1988 = vmul.f32 %v1986, %v1987
    %v1989 = vsub.f32 1.0, %v1988
    %v1990 = vmul.f32 %v1987, %v1989
    %v1991 = vadd.f32 %v1987, %v1990
    %vm1992 = vweird.f32 %v1986
    %vm1993 = vweird.f32 %v1987
    %vm1994 = vmor %vm1992, %vm1993
    %v1995 = vsel %vm1994, %v1987, %v1991
    %v1996 = vand.u32 2147483647, %v1986
    %vm1997 = vcmp.eq.f32.partialorder %v1996, 8.507059e+37
    %v1998 = vand.u32 %v1986, 2147483648
    %v1999 = vor.u32 1.1754944e-38, %v1998
    %v2000 = vsel %vm1997, %v1999, %v1995
    %v2001 = vmul.f32 1.0, %v2000
    %v2003 = vrot.slane %v1957, 2
    %v2005 = vadd.f32 %v1314, %v2003
    %v2006 = vxor.u32 %v2005, 2147483648
    %v2007 = vmul.f32 %v2006, 1.442695
    %v2008 = vpow.pop %v2007
    %v2009 = vadd.f32 %v2008, 1.0
    %v2010 = vrcp.pop %v2009
    %v2011 = vmul.f32 %v2009, %v2010
    %v2012 = vsub.f32 1.0, %v2011
    %v2013 = vmul.f32 %v2010, %v2012
    %v2014 = vadd.f32 %v2010, %v2013
    %vm2015 = vweird.f32 %v2009
    %vm2016 = vweird.f32 %v2010
    %vm2017 = vmor %vm2015, %vm2016
    %v2018 = vsel %vm2017, %v2010, %v2014
    %v2019 = vand.u32 2147483647, %v2009
    %vm2020 = vcmp.eq.f32.partialorder %v2019, 8.507059e+37
    %v2021 = vand.u32 %v2009, 2147483648
    %v2022 = vor.u32 1.1754944e-38, %v2021
    %v2023 = vsel %vm2020, %v2022, %v2018
    %v2024 = vmul.f32 1.0, %v2023
    %v2026 = vrot.slane %v1977, 2
    %v2028 = vmul.f32 %v2001, %v2026
    %v2029 = vadd.f32 %v1337, %v2028
    %v2030 = vtanh.pop %v2029
    %v2031 = vsub.f32 1.0, %v2024
    %v2032 = vmul.f32 %v2031, %v2030
    %v2033 = vrot.slane %v1858, 6
    %v2035 = vmul.f32 %v2024, %v2033
    %v2036 = vadd.f32 %v2032, %v2035
    %2037 = vst [vmem:[#allocation2] sm:$0xc0] %v2036
    %v2038 = vld [vmem:[#allocation9] sm:$0xff]
    %v2039 = vld [vmem:[#allocation9 + $0x8] sm:$0xff]
    %v2040 = vld [vmem:[#allocation9 + $0x10] sm:$0xff]
    %v2041 = vld [vmem:[#allocation9 + $0x18] sm:$0xff]
    %v2042 = vld [vmem:[#allocation9 + $0x20] sm:$0xff]
    %v2043 = vld [vmem:[#allocation9 + $0x28] sm:$0xff]
    %v2044 = vld [vmem:[#allocation9 + $0x30] sm:$0xff]
    %v2045 = vld [vmem:[#allocation9 + $0x38] sm:$0xff]
    %v2046 = vld [vmem:[#allocation9 + $0x40] sm:$0xff]
    %v2047 = vld [vmem:[#allocation9 + $0x48] sm:$0xff]
    %v2048 = vld [vmem:[#allocation9 + $0x50] sm:$0xff]
    %v2049 = vld [vmem:[#allocation9 + $0x58] sm:$0xff]
    %v2050 = vld [vmem:[#allocation9 + $0x60] sm:$0xff]
    %v2051 = vld [vmem:[#allocation9 + $0x68] sm:$0xff]
    %v2052 = vld [vmem:[#allocation9 + $0x70] sm:$0xff]
    %v2053 = vld [vmem:[#allocation9 + $0x78] sm:$0xff]
    %v2054 = vld [vmem:[#allocation9 + $0x80] sm:$0xff]
    %v2055 = vld [vmem:[#allocation9 + $0x88] sm:$0xff]
    %v2056 = vld [vmem:[#allocation9 + $0x90] sm:$0xff]
    %v2057 = vld [vmem:[#allocation9 + $0x98] sm:$0xff]
    %v2058 = vld [vmem:[#allocation9 + $0xa0] sm:$0xff]
    %v2059 = vld [vmem:[#allocation9 + $0xa8] sm:$0xff]
    %v2060 = vld [vmem:[#allocation9 + $0xb0] sm:$0xff]
    %v2061 = vld [vmem:[#allocation9 + $0xb8] sm:$0xff]
    %v2062 = vld [vmem:[#allocation9 + $0xc0] sm:$0xff]
    %v2063 = vld [vmem:[#allocation9 + $0xc8] sm:$0xff]
    %v2064 = vld [vmem:[#allocation9 + $0xd0] sm:$0xff]
    %v2065 = vld [vmem:[#allocation9 + $0xd8] sm:$0xff]
    %v2066 = vld [vmem:[#allocation9 + $0xe0] sm:$0xff]
    %v2067 = vld [vmem:[#allocation9 + $0xe8] sm:$0xff]
    %v2068 = vld [vmem:[#allocation9 + $0xf0] sm:$0xff]
    %v2069 = vld [vmem:[#allocation9 + $0xf8] sm:$0xff]
    %v2070 = vld [vmem:[#allocation9 + $0x100] sm:$0xff]
    %v2071 = vld [vmem:[#allocation9 + $0x108] sm:$0xff]
    %v2072 = vld [vmem:[#allocation9 + $0x110] sm:$0xff]
    %v2073 = vld [vmem:[#allocation9 + $0x118] sm:$0xff]
    %v2074 = vld [vmem:[#allocation9 + $0x120] sm:$0xff]
    %v2075 = vld [vmem:[#allocation9 + $0x128] sm:$0xff]
    %v2076 = vld [vmem:[#allocation9 + $0x130] sm:$0xff]
    %v2077 = vld [vmem:[#allocation9 + $0x138] sm:$0xff]
    %v2078 = vld [vmem:[#allocation9 + $0x140] sm:$0xff]
    %v2079 = vld [vmem:[#allocation9 + $0x148] sm:$0xff]
    %v2080 = vld [vmem:[#allocation9 + $0x150] sm:$0xff]
    %v2081 = vld [vmem:[#allocation9 + $0x158] sm:$0xff]
    %v2082 = vld [vmem:[#allocation9 + $0x160] sm:$0xff]
    %v2083 = vld [vmem:[#allocation9 + $0x168] sm:$0xff]
    %v2084 = vld [vmem:[#allocation9 + $0x170] sm:$0xff]
    %v2085 = vld [vmem:[#allocation9 + $0x178] sm:$0xff]
    %v2086 = vld [vmem:[%s13] sm:$0x7]
    %v2088 = vperm.slane %v2086, 0
    %v2089 = vperm.slane %v2086, 1
    %v2090 = vperm.slane %v2086, 2
    %v2095 = vrot.slane %v2036, 6
    %2097 = vmatpush.msra.mxu0 %v2083
    %2098 = vmatpush.msra.mxu0 %v2080
    %2099 = vmatpush.msra.mxu0 %v2077
    %2100 = vmatpush.msra.mxu0 %v2074
    %2101 = vmatpush.msra.mxu0 %v2071
    %2102 = vmatpush.msra.mxu0 %v2068
    %2103 = vmatpush.msra.mxu0 %v2065
    %2104 = vmatpush.msra.mxu0 %v2062
    %2105 = vmatpush.msra.mxu0 %v2059
    %2106 = vmatpush.msra.mxu0 %v2056
    %2107 = vmatpush.msra.mxu0 %v2053
    %2108 = vmatpush.msra.mxu0 %v2050
    %2109 = vmatpush.msra.mxu0 %v2047
    %2110 = vmatpush.msra.mxu0 %v2044
    %2111 = vmatpush.msra.mxu0 %v2041
    %2112 = vmatpush.msra.mxu0 %v2038
    %2113 = vmatmul.f32.gmra.mxu0 %v2095
    %v2114 = vpop.f32.mrf.mxu0
    %v2115 = vadd.f32 %v2088, %v2114
    %2116 = vdwg.mxu0
    %2117 = vmatpush.msra.mxu0 %v2084
    %2118 = vmatpush.msra.mxu0 %v2081
    %2119 = vmatpush.msra.mxu0 %v2078
    %2120 = vmatpush.msra.mxu0 %v2075
    %2121 = vmatpush.msra.mxu0 %v2072
    %2122 = vmatpush.msra.mxu0 %v2069
    %2123 = vmatpush.msra.mxu0 %v2066
    %2124 = vmatpush.msra.mxu0 %v2063
    %2125 = vmatpush.msra.mxu0 %v2060
    %2126 = vmatpush.msra.mxu0 %v2057
    %2127 = vmatpush.msra.mxu0 %v2054
    %2128 = vmatpush.msra.mxu0 %v2051
    %2129 = vmatpush.msra.mxu0 %v2048
    %2130 = vmatpush.msra.mxu0 %v2045
    %2131 = vmatpush.msra.mxu0 %v2042
    %2132 = vmatpush.msra.mxu0 %v2039
    %2133 = vmatmul.f32.gmra.mxu0 %v2095
    %v2134 = vpop.f32.mrf.mxu0
    %v2135 = vadd.f32 %v2089, %v2134
    %2136 = vdwg.mxu0
    %2137 = vmatpush.msra.mxu0 %v2085
    %2138 = vmatpush.msra.mxu0 %v2082
    %2139 = vmatpush.msra.mxu0 %v2079
    %2140 = vmatpush.msra.mxu0 %v2076
    %2141 = vmatpush.msra.mxu0 %v2073
    %2142 = vmatpush.msra.mxu0 %v2070
    %2143 = vmatpush.msra.mxu0 %v2067
    %2144 = vmatpush.msra.mxu0 %v2064
    %2145 = vmatpush.msra.mxu0 %v2061
    %2146 = vmatpush.msra.mxu0 %v2058
    %2147 = vmatpush.msra.mxu0 %v2055
    %2148 = vmatpush.msra.mxu0 %v2052
    %2149 = vmatpush.msra.mxu0 %v2049
    %2150 = vmatpush.msra.mxu0 %v2046
    %2151 = vmatpush.msra.mxu0 %v2043
    %2152 = vmatpush.msra.mxu0 %v2040
    %2153 = vmatmul.f32.gmra.mxu0 %v2095
    %v2154 = vpop.f32.mrf.mxu0
    %v2155 = vadd.f32 %v2090, %v2154
    %2156 = vdwg.mxu0
    %v2157 = vadd.f32 %v1294, %v2115
    %v2158 = vxor.u32 %v2157, 2147483648
    %v2159 = vmul.f32 %v2158, 1.442695
    %v2160 = vpow.pop %v2159
    %v2161 = vadd.f32 %v2160, 1.0
    %v2162 = vrcp.pop %v2161
    %v2163 = vmul.f32 %v2161, %v2162
    %v2164 = vsub.f32 1.0, %v2163
    %v2165 = vmul.f32 %v2162, %v2164
    %v2166 = vadd.f32 %v2162, %v2165
    %vm2167 = vweird.f32 %v2161
    %vm2168 = vweird.f32 %v2162
    %vm2169 = vmor %vm2167, %vm2168
    %v2170 = vsel %vm2169, %v2162, %v2166
    %v2171 = vand.u32 2147483647, %v2161
    %vm2172 = vcmp.eq.f32.partialorder %v2171, 8.507059e+37
    %v2173 = vand.u32 %v2161, 2147483648
    %v2174 = vor.u32 1.1754944e-38, %v2173
    %v2175 = vsel %vm2172, %v2174, %v2170
    %v2176 = vmul.f32 1.0, %v2175
    %v2177 = vadd.f32 %v1317, %v2135
    %v2178 = vxor.u32 %v2177, 2147483648
    %v2179 = vmul.f32 %v2178, 1.442695
    %v2180 = vpow.pop %v2179
    %v2181 = vadd.f32 %v2180, 1.0
    %v2182 = vrcp.pop %v2181
    %v2183 = vmul.f32 %v2181, %v2182
    %v2184 = vsub.f32 1.0, %v2183
    %v2185 = vmul.f32 %v2182, %v2184
    %v2186 = vadd.f32 %v2182, %v2185
    %vm2187 = vweird.f32 %v2181
    %vm2188 = vweird.f32 %v2182
    %vm2189 = vmor %vm2187, %vm2188
    %v2190 = vsel %vm2189, %v2182, %v2186
    %v2191 = vand.u32 2147483647, %v2181
    %vm2192 = vcmp.eq.f32.partialorder %v2191, 8.507059e+37
    %v2193 = vand.u32 %v2181, 2147483648
    %v2194 = vor.u32 1.1754944e-38, %v2193
    %v2195 = vsel %vm2192, %v2194, %v2190
    %v2196 = vmul.f32 1.0, %v2195
    %v2197 = vmul.f32 %v2176, %v2155
    %v2198 = vadd.f32 %v1340, %v2197
    %v2199 = vtanh.pop %v2198
    %v2200 = vsub.f32 1.0, %v2196
    %v2201 = vmul.f32 %v2200, %v2199
    %v2202 = vmul.f32 %v2196, %v2095
    %v2203 = vadd.f32 %v2201, %v2202
    %2204 = vst [vmem:[#allocation2 + $0x8] sm:$0x3] %v2203
    %v2205 = vld [vmem:[#allocation2] sm:$0xff]
    %v2206 = vld [vmem:[#allocation2 + $0x8] sm:$0x3]
    %2207 = vst [vmem:[%s18] sm:$0xff] %v2205
    %2208 = vst [vmem:[%s18 + $0x8] sm:$0x3] %v2206
    %2209 = vadd.xlane.f32.xlu0 %v2205
    %v2210 = vpop.xlane.xlu0 %2209
    %v2211 = vsel %vm1155, %v2206, 0.0
    %2212 = vadd.xlane.f32.xlu0 %v2211
    %v2213 = vpop.xlane.xlu0 %2212
    %v2214 = vmul.f32 %v2210, %v1165
    %v2215 = vmul.f32 %v2213, %v1165
    %v2216 = vsub.f32 %v2205, %v2214
    %v2217 = vsub.f32 %v2206, %v2215
    %v2218 = vmul.f32 %v2216, %v2216
    %v2219 = vmul.f32 %v2217, %v2217
    %2220 = vadd.xlane.f32.xlu0 %v2218
    %v2221 = vpop.xlane.xlu0 %2220
    %v2222 = vsel %vm1155, %v2219, 0.0
    %2223 = vadd.xlane.f32.xlu0 %v2222
    %v2224 = vpop.xlane.xlu0 %2223
    %v2225 = vmul.f32 %v2221, %v1165
    %v2226 = vmul.f32 %v2224, %v1165
    %v2227 = vadd.f32 %v2225, 1e-05
    %v2228 = vadd.f32 %v2226, 1e-05
    %v2229 = vrsqrt.pop %v2227
    %v2230 = vmul.f32 %v2229, %v2227
    %v2231 = vmul.f32 %v2230, %v2229
    %v2232 = vmul.f32 0.5, %v2231
    %v2233 = vsub.f32 1.5, %v2232
    %v2234 = vmul.f32 %v2229, %v2233
    %vm2235 = vweird.f32 %v2227
    %vm2236 = vweird.f32 %v2229
    %vm2237 = vmor %vm2235, %vm2236
    %v2238 = vsel %vm2237, %v2229, %v2234
    %v2239 = vrsqrt.pop %v2228
    %v2240 = vmul.f32 %v2239, %v2228
    %v2241 = vmul.f32 %v2240, %v2239
    %v2242 = vmul.f32 0.5, %v2241
    %v2243 = vsub.f32 1.5, %v2242
    %v2244 = vmul.f32 %v2239, %v2243
    %vm2245 = vweird.f32 %v2228
    %vm2246 = vweird.f32 %v2239
    %vm2247 = vmor %vm2245, %vm2246
    %v2248 = vsel %vm2247, %v2239, %v2244
    %v2249 = vmul.f32 %v2216, %v2238
    %v2250 = vmul.f32 %v2217, %v2248
    %v2251 = vld [vmem:[%s14] sm:$0x1]
    %v2253 = vperm.slane %v2251, 0
    %v2255 = vmul.f32 %v2249, %v2253
    %v2256 = vmul.f32 %v2250, %v2253
    %v2257 = vld [vmem:[%s15] sm:$0x1]
    %v2259 = vperm.slane %v2257, 0
    %v2261 = vadd.f32 %v2255, %v2259
    %v2262 = vadd.f32 %v2256, %v2259
    %v2263 = vmax.f32 %v2261, 0.0
    %v2264 = vmax.f32 %v2262, 0.0
    %v2265 = vld [vmem:[%s1] sm:$0x3]
    %vm2266 = vcmask 80896
    %v2268 = vsel %vm2266, %v2265, 0
    %v2271 = vsel %vm1155, %v2264, 0
    %2273 = vmatpush.msra.mxu0 0.0
    %2274 = vmatpush.msra.mxu0 0.0
    %2275 = vmatpush.msra.mxu0 0.0
    %2276 = vmatpush.msra.mxu0 0.0
    %2277 = vmatpush.msra.mxu0 0.0
    %2278 = vmatpush.msra.mxu0 0.0
    %2279 = vmatpush.msra.mxu0 0.0
    %2280 = vmatpush.msra.mxu0 0.0
    %2281 = vmatpush.msra.mxu0 0.0
    %2282 = vmatpush.msra.mxu0 0.0
    %2283 = vmatpush.msra.mxu0 0.0
    %2284 = vmatpush.msra.mxu0 0.0
    %2285 = vmatpush.msra.mxu0 0.0
    %2286 = vmatpush.msra.mxu0 0.0
    %2287 = vmatpush.msra.mxu0 %v2271
    %2288 = vmatpush.msra.mxu0 %v2263
    %2289 = vmatmul.f32.gmra.mxu0 %v2268
    %v2290 = vpop.f32.mrf.mxu0
    %v2291 = vadd.f32 0.0, %v2290
    %2292 = vdwg.mxu0
    %2293 = vst [vmem:[#allocation11] sm:$0x3] %v2291
    // Predicated region
    $region82: #{forward.1} parent=1 // pred_check
      _
    $region83: #{forward.1} parent=1 // pred_check_branch
      %2295 = sbr.rel (0) target = $region85
    $region84: #{forward.1} parent=1 // pred_region
      %2297 = vsyncadd [#allocation5], 0
      %s2299 = sshll.u32 [#allocation11], 4
      %s2300 = int_to_ptr.vmem [resolvable:$true] %s2299
      %s2301 = sshll.u32 %s16, 4
      %s2302 = int_to_ptr.hbm [resolvable:$true] %s2301
      %2304 = dma.vmem_to_hbm [thread:$0]  %s2300, 32, %s2302, [#allocation5]
    $region85: #{forward.1} parent=1 // pred_fallthru
      _
    // Predicated region
    $region86: #{forward.1} parent=1 // pred_check
      _
    $region87: #{forward.1} parent=1 // pred_check_branch
      %2306 = sbr.rel (0) target = $region89
    $region88: #{forward.1} parent=1 // pred_region
      _
    $region89: #{forward.1} parent=1 // pred_fallthru
      _
    // Predicated region
    $region90: #{forward.1} parent=1 // pred_check
      _
    $region91: #{forward.1} parent=1 // pred_check_branch
      %2308 = sbr.rel (0) target = $region93
    $region92: #{forward.1} parent=1 // pred_region
      _
    $region93: #{forward.1} parent=1 // pred_fallthru
      _
    // Predicated region
    $region94: #{forward.1} parent=1 // pred_check
      _
    $region95: #{forward.1} parent=1 // pred_check_branch
      %2310 = sbr.rel (0) target = $region97
    $region96: #{forward.1} parent=1 // pred_region
      %2312 = dma.done [#allocation5], 32
    $region97: #{forward.1} parent=1 // pred_fallthru
      _
    // Predicated region
    $region98: #{forward.1} parent=1 // pred_check
      _
    $region99: #{forward.1} parent=1 // pred_check_branch
      %2314 = sbr.rel (0) target = $region101
    $region100: #{forward.1} parent=1 // pred_region
      _
    $region101: #{forward.1} parent=1 // pred_fallthru
      _
    // Predicated region
    $region102: #{forward.1} parent=1 // pred_check
      _
    $region103: #{forward.1} parent=1 // pred_check_branch
      %2316 = sbr.rel (0) target = $region105
    $region104: #{forward.1} parent=1 // pred_region
      _
    $region105: #{forward.1} parent=1 // pred_fallthru
      _
    %2317 = vsyncpa [#allocation4], 1
    %2318 = vsyncpa [#allocation7], 1
    %2319 = vsyncpa [#allocation10], 1
    %2320 = vsyncpa [#allocation5], 1

</llo_original>
